<compile_context>
chip_gen: v7x
topology: tpu7x:2x2x1
jax: 0.10.0
libtpu: 0.0.40
codegen_flags: <defaults>
</compile_context>

<pallas_src>
import functools

import jax
import jax.numpy as jnp
from jax.experimental import pallas as pl
from jax.experimental.pallas import tpu as pltpu

BN_EPS = 1e-5


def _conv_bias_stats_kernel(p_ref, w_ref, b_ref, mask_ref,
                            y_ref, sum_ref, sumsq_ref, *, mp, guard, wp):
    """3x3 conv as 9 shifted bf16 matmuls + bias + masked per-channel stats.

    p_ref   : (1, mp + 2*guard, Cin)  bf16, guard-padded flattened padded image
    w_ref   : (9, Cin, Cout)          bf16, tap-major weights
    b_ref   : (1, Cout)               f32 conv bias
    mask_ref: (mp, 1)                 f32, 1.0 on valid (non-padding) rows
    y_ref   : (1, mp, Cout)           f32 conv+bias on the padded grid
    sum_ref / sumsq_ref : (1, 1, Cout) f32 masked per-channel partial stats
    """
    cout = y_ref.shape[-1]
    acc = jnp.zeros((mp, cout), dtype=jnp.float32)
    # Static unrolled loop over the 9 kernel taps; each tap is a constant row
    # shift of the flattened padded image (guard rows keep all slices in-bounds).
    for t in range(9):
        dh, dw = divmod(t, 3)
        start = guard + (dh - 1) * wp + (dw - 1)
        shifted = p_ref[0, start:start + mp, :]            # (mp, Cin) bf16
        acc = acc + jnp.dot(shifted, w_ref[t],
                            preferred_element_type=jnp.float32)

    y = acc + b_ref[...]                                    # (mp, Cout) f32
    y_ref[0] = y

    ym = y * mask_ref[...]                                  # zero padding rows
    sum_ref[0] = jnp.sum(ym, axis=0, keepdims=True)         # (1, Cout)
    sumsq_ref[0] = jnp.sum(ym * y, axis=0, keepdims=True)   # (1, Cout)


def _bn_relu_kernel(y_ref, scale_ref, shift_ref, o_ref):
    """Apply precomputed per-channel scale/shift + ReLU (1 FMA + max / elem)."""
    o_ref[0] = jnp.maximum(y_ref[0] * scale_ref[...] + shift_ref[...], 0.0)


@jax.jit
def block_of_dmt3(x, conv_w, conv_b, bn_gamma, bn_beta):
    """x: (N, 256, H, W) f32 NCHW; conv_w: (256, 256, 3, 3) OIHW."""
    n, cin, h, w = x.shape
    cout = conv_w.shape[0]
    hp, wp = h + 2, w + 2
    mp = hp * wp                       # rows per image on the padded grid
    guard = wp + 1                     # max |row shift| of a 3x3 tap

    # --- layout plumbing (no im2col): NCHW -> NHWC, pad, flatten, guard rows.
    x_nhwc = jnp.transpose(x, (0, 2, 3, 1))                       # (N,H,W,C)
    x_pad = jnp.pad(x_nhwc, ((0, 0), (1, 1), (1, 1), (0, 0)))     # (N,Hp,Wp,C)
    p = x_pad.reshape(n, mp, cin)
    p = jnp.pad(p, ((0, 0), (guard, guard), (0, 0)))              # guard rows
    p = p.astype(jnp.bfloat16)                                    # (N, mp+2g, C)

    # (O,I,kh,kw) -> (kh,kw,I,O) -> (9, Cin, Cout), bf16 for the MXU.
    w_mat = jnp.transpose(conv_w, (2, 3, 1, 0)).reshape(9, cin, cout)
    w_mat = w_mat.astype(jnp.bfloat16)
    b_row = conv_b.reshape(1, cout).astype(jnp.float32)

    # Validity mask over the padded grid (same for every image).
    ii = jnp.arange(mp, dtype=jnp.int32) // wp
    jj = jnp.arange(mp, dtype=jnp.int32) % wp
    mask = ((ii >= 1) & (ii <= h) & (jj >= 1) & (jj <= w))
    mask = mask.astype(jnp.float32).reshape(mp, 1)

    kernel1 = functools.partial(_conv_bias_stats_kernel,
                                mp=mp, guard=guard, wp=wp)

    y_pad, sums, sumsqs = pl.pallas_call(
        kernel1,
        out_shape=(
            jax.ShapeDtypeStruct((n, mp, cout), jnp.float32),
            jax.ShapeDtypeStruct((n, 1, cout), jnp.float32),
            jax.ShapeDtypeStruct((n, 1, cout), jnp.float32),
        ),
        grid_spec=pltpu.PrefetchScalarGridSpec(
            num_scalar_prefetch=0,
            grid=(n,),
            in_specs=[
                pl.BlockSpec((1, mp + 2 * guard, cin), lambda i: (i, 0, 0)),
                pl.BlockSpec((9, cin, cout), lambda i: (0, 0, 0)),
                pl.BlockSpec((1, cout), lambda i: (0, 0)),
                pl.BlockSpec((mp, 1), lambda i: (0, 0)),
            ],
            out_specs=(
                pl.BlockSpec((1, mp, cout), lambda i: (i, 0, 0)),
                pl.BlockSpec((1, 1, cout), lambda i: (i, 0, 0)),
                pl.BlockSpec((1, 1, cout), lambda i: (i, 0, 0)),
            ),
        ),
        compiler_params=pltpu.CompilerParams(
            dimension_semantics=("parallel",),
            vmem_limit_bytes=64 * 1024 * 1024,
        ),
    )(p, w_mat, b_row, mask)

    # --- tiny per-channel BN finalize (cross-image reduction), in f32.
    count = jnp.float32(n * h * w)
    tot = jnp.sum(sums, axis=(0, 1))                 # (Cout,)
    totsq = jnp.sum(sumsqs, axis=(0, 1))             # (Cout,)
    mean = tot / count
    var = jnp.maximum(totsq / count - mean * mean, 0.0)   # biased variance
    inv = jax.lax.rsqrt(var + BN_EPS)
    gamma = bn_gamma.astype(jnp.float32)
    beta = bn_beta.astype(jnp.float32)
    scale = (gamma * inv).reshape(1, cout)
    shift = (beta - mean * gamma * inv).reshape(1, cout)

    # --- second cheap pass: normalize + ReLU (still on the padded grid).
    out_pad = pl.pallas_call(
        _bn_relu_kernel,
        out_shape=jax.ShapeDtypeStruct((n, mp, cout), jnp.float32),
        grid_spec=pltpu.PrefetchScalarGridSpec(
            num_scalar_prefetch=0,
            grid=(n,),
            in_specs=[
                pl.BlockSpec((1, mp, cout), lambda i: (i, 0, 0)),
                pl.BlockSpec((1, cout), lambda i: (0, 0)),
                pl.BlockSpec((1, cout), lambda i: (0, 0)),
            ],
            out_specs=pl.BlockSpec((1, mp, cout), lambda i: (i, 0, 0)),
        ),
        compiler_params=pltpu.CompilerParams(
            dimension_semantics=("parallel",),
            vmem_limit_bytes=64 * 1024 * 1024,
        ),
    )(y_pad, scale, shift)

    # Drop padding rows and return NCHW (single fused slice+transpose pass).
    out_nhwc = out_pad.reshape(n, hp, wp, cout)[:, 1:1 + h, 1:1 + w, :]
    return jnp.transpose(out_nhwc, (0, 3, 1, 2))


def _reference(x, conv_w, conv_b, bn_gamma, bn_beta):
    conv = jax.lax.conv_general_dilated(
        x, conv_w, window_strides=(1, 1), padding="SAME",
        dimension_numbers=("NCHW", "OIHW", "NCHW"),
    ) + conv_b[None, :, None, None]
    mean = conv.mean(axis=(0, 2, 3), keepdims=True)
    var = ((conv - mean) ** 2).mean(axis=(0, 2, 3), keepdims=True)
    y = (conv - mean) / jnp.sqrt(var + BN_EPS)
    y = y * bn_gamma[None, :, None, None] + bn_beta[None, :, None, None]
    return jnp.maximum(y, 0.0)


if __name__ == "__main__":
    key = jax.random.PRNGKey(0)
    k_x, k_w, k_b, k_g, k_bb = jax.random.split(key, 5)

    N, C, H, W = 2, 256, 8, 8   # channels fixed at 256 by the module
    x = jax.random.normal(k_x, (N, C, H, W), dtype=jnp.float32)

    conv_w = jax.random.normal(k_w, (256, 256, 3, 3), dtype=jnp.float32) * 0.05
    conv_b = jax.random.normal(k_b, (256,), dtype=jnp.float32) * 0.1
    bn_gamma = 1.0 + 0.1 * jax.random.normal(k_g, (256,), dtype=jnp.float32)
    bn_beta = 0.1 * jax.random.normal(k_bb, (256,), dtype=jnp.float32)

    out = block_of_dmt3(x, conv_w, conv_b, bn_gamma, bn_beta)
    out = jax.block_until_ready(out)

    ref = _reference(x, conv_w, conv_b, bn_gamma, bn_beta)
    assert out.shape == (N, 256, H, W), out.shape
    assert jnp.allclose(out, ref, atol=1e-2, rtol=1e-2), (
        float(jnp.max(jnp.abs(out - ref)))
    )

    print("KERNEL_OK")
</pallas_src>

<mosaic_0001>
module attributes {stable_mosaic.version = 11 : i64} {
  func.func @_conv_bias_stats_kernel(%arg0: i32, %arg1: memref<1x122x256xbf16, #tpu.memory_space<vmem>>, %arg2: memref<9x256x256xbf16, #tpu.memory_space<vmem>>, %arg3: memref<1x256xf32, #tpu.memory_space<vmem>>, %arg4: memref<100x1xf32, #tpu.memory_space<vmem>>, %arg5: memref<1x100x256xf32, #tpu.memory_space<vmem>>, %arg6: memref<1x1x256xf32, #tpu.memory_space<vmem>>, %arg7: memref<1x1x256xf32, #tpu.memory_space<vmem>>) attributes {dimension_semantics = [#tpu.dimension_semantics<parallel>], iteration_bounds = array<i64: 2>, scalar_prefetch = 0 : i64, scratch_operands = 0 : i64, tpu.core_type = #tpu.core_type<tc>, window_params = [{transform_indices = @transform_0, window_bounds = array<i64: 1, 122, 256>}, {pipeline_mode = #tpu.pipeline_mode<synchronous>, transform_indices = @transform_1, window_bounds = array<i64: 9, 256, 256>}, {pipeline_mode = #tpu.pipeline_mode<synchronous>, transform_indices = @transform_2, window_bounds = array<i64: 1, 256>}, {pipeline_mode = #tpu.pipeline_mode<synchronous>, transform_indices = @transform_3, window_bounds = array<i64: 100, 1>}, {transform_indices = @transform_4, window_bounds = array<i64: 1, 100, 256>}, {transform_indices = @transform_5, window_bounds = array<i64: 1, 1, 256>}, {transform_indices = @transform_6, window_bounds = array<i64: 1, 1, 256>}]} {
    %cst = arith.constant 0.000000e+00 : f32
    %0 = vector.broadcast %cst : f32 to vector<100x256xf32>
    %c0 = arith.constant 0 : index
    %c0_0 = arith.constant 0 : index
    %c0_1 = arith.constant 0 : index
    %1 = vector.load %arg1[%c0, %c0_0, %c0_1] : memref<1x122x256xbf16, #tpu.memory_space<vmem>>, vector<1x100x256xbf16>
    %2 = vector.shape_cast %1 : vector<1x100x256xbf16> to vector<100x256xbf16>
    %c0_2 = arith.constant 0 : index
    %c0_3 = arith.constant 0 : index
    %c0_4 = arith.constant 0 : index
    %3 = vector.load %arg2[%c0_2, %c0_3, %c0_4] : memref<9x256x256xbf16, #tpu.memory_space<vmem>>, vector<1x256x256xbf16>
    %4 = vector.shape_cast %3 : vector<1x256x256xbf16> to vector<256x256xbf16>
    %cst_5 = arith.constant dense<0.000000e+00> : vector<100x256xf32>
    %5 = tpu.matmul %2, %4, %cst_5 {dimension_numbers = #tpu.dot_dimension_numbers<[1], [0], [0], [1], [0, 0, 1, 1], [], []>} : vector<100x256xbf16>, vector<256x256xbf16>, vector<100x256xf32> -> vector<100x256xf32>
    %6 = arith.addf %0, %5 : vector<100x256xf32>
    %c0_6 = arith.constant 0 : index
    %c1 = arith.constant 1 : index
    %c0_7 = arith.constant 0 : index
    %7 = vector.load %arg1[%c0_6, %c1, %c0_7] : memref<1x122x256xbf16, #tpu.memory_space<vmem>>, vector<1x100x256xbf16>
    %8 = vector.shape_cast %7 : vector<1x100x256xbf16> to vector<100x256xbf16>
    %c1_8 = arith.constant 1 : index
    %c0_9 = arith.constant 0 : index
    %c0_10 = arith.constant 0 : index
    %9 = vector.load %arg2[%c1_8, %c0_9, %c0_10] : memref<9x256x256xbf16, #tpu.memory_space<vmem>>, vector<1x256x256xbf16>
    %10 = vector.shape_cast %9 : vector<1x256x256xbf16> to vector<256x256xbf16>
    %cst_11 = arith.constant dense<0.000000e+00> : vector<100x256xf32>
    %11 = tpu.matmul %8, %10, %cst_11 {dimension_numbers = #tpu.dot_dimension_numbers<[1], [0], [0], [1], [0, 0, 1, 1], [], []>} : vector<100x256xbf16>, vector<256x256xbf16>, vector<100x256xf32> -> vector<100x256xf32>
    %12 = arith.addf %6, %11 : vector<100x256xf32>
    %c0_12 = arith.constant 0 : index
    %c2 = arith.constant 2 : index
    %c0_13 = arith.constant 0 : index
    %13 = vector.load %arg1[%c0_12, %c2, %c0_13] : memref<1x122x256xbf16, #tpu.memory_space<vmem>>, vector<1x100x256xbf16>
    %14 = vector.shape_cast %13 : vector<1x100x256xbf16> to vector<100x256xbf16>
    %c2_14 = arith.constant 2 : index
    %c0_15 = arith.constant 0 : index
    %c0_16 = arith.constant 0 : index
    %15 = vector.load %arg2[%c2_14, %c0_15, %c0_16] : memref<9x256x256xbf16, #tpu.memory_space<vmem>>, vector<1x256x256xbf16>
    %16 = vector.shape_cast %15 : vector<1x256x256xbf16> to vector<256x256xbf16>
    %cst_17 = arith.constant dense<0.000000e+00> : vector<100x256xf32>
    %17 = tpu.matmul %14, %16, %cst_17 {dimension_numbers = #tpu.dot_dimension_numbers<[1], [0], [0], [1], [0, 0, 1, 1], [], []>} : vector<100x256xbf16>, vector<256x256xbf16>, vector<100x256xf32> -> vector<100x256xf32>
    %18 = arith.addf %12, %17 : vector<100x256xf32>
    %c0_18 = arith.constant 0 : index
    %c10 = arith.constant 10 : index
    %c0_19 = arith.constant 0 : index
    %19 = vector.load %arg1[%c0_18, %c10, %c0_19] : memref<1x122x256xbf16, #tpu.memory_space<vmem>>, vector<1x100x256xbf16>
    %20 = vector.shape_cast %19 : vector<1x100x256xbf16> to vector<100x256xbf16>
    %c3 = arith.constant 3 : index
    %c0_20 = arith.constant 0 : index
    %c0_21 = arith.constant 0 : index
    %21 = vector.load %arg2[%c3, %c0_20, %c0_21] : memref<9x256x256xbf16, #tpu.memory_space<vmem>>, vector<1x256x256xbf16>
    %22 = vector.shape_cast %21 : vector<1x256x256xbf16> to vector<256x256xbf16>
    %cst_22 = arith.constant dense<0.000000e+00> : vector<100x256xf32>
    %23 = tpu.matmul %20, %22, %cst_22 {dimension_numbers = #tpu.dot_dimension_numbers<[1], [0], [0], [1], [0, 0, 1, 1], [], []>} : vector<100x256xbf16>, vector<256x256xbf16>, vector<100x256xf32> -> vector<100x256xf32>
    %24 = arith.addf %18, %23 : vector<100x256xf32>
    %c0_23 = arith.constant 0 : index
    %c11 = arith.constant 11 : index
    %c0_24 = arith.constant 0 : index
    %25 = vector.load %arg1[%c0_23, %c11, %c0_24] : memref<1x122x256xbf16, #tpu.memory_space<vmem>>, vector<1x100x256xbf16>
    %26 = vector.shape_cast %25 : vector<1x100x256xbf16> to vector<100x256xbf16>
    %c4 = arith.constant 4 : index
    %c0_25 = arith.constant 0 : index
    %c0_26 = arith.constant 0 : index
    %27 = vector.load %arg2[%c4, %c0_25, %c0_26] : memref<9x256x256xbf16, #tpu.memory_space<vmem>>, vector<1x256x256xbf16>
    %28 = vector.shape_cast %27 : vector<1x256x256xbf16> to vector<256x256xbf16>
    %cst_27 = arith.constant dense<0.000000e+00> : vector<100x256xf32>
    %29 = tpu.matmul %26, %28, %cst_27 {dimension_numbers = #tpu.dot_dimension_numbers<[1], [0], [0], [1], [0, 0, 1, 1], [], []>} : vector<100x256xbf16>, vector<256x256xbf16>, vector<100x256xf32> -> vector<100x256xf32>
    %30 = arith.addf %24, %29 : vector<100x256xf32>
    %c0_28 = arith.constant 0 : index
    %c12 = arith.constant 12 : index
    %c0_29 = arith.constant 0 : index
    %31 = vector.load %arg1[%c0_28, %c12, %c0_29] : memref<1x122x256xbf16, #tpu.memory_space<vmem>>, vector<1x100x256xbf16>
    %32 = vector.shape_cast %31 : vector<1x100x256xbf16> to vector<100x256xbf16>
    %c5 = arith.constant 5 : index
    %c0_30 = arith.constant 0 : index
    %c0_31 = arith.constant 0 : index
    %33 = vector.load %arg2[%c5, %c0_30, %c0_31] : memref<9x256x256xbf16, #tpu.memory_space<vmem>>, vector<1x256x256xbf16>
    %34 = vector.shape_cast %33 : vector<1x256x256xbf16> to vector<256x256xbf16>
    %cst_32 = arith.constant dense<0.000000e+00> : vector<100x256xf32>
    %35 = tpu.matmul %32, %34, %cst_32 {dimension_numbers = #tpu.dot_dimension_numbers<[1], [0], [0], [1], [0, 0, 1, 1], [], []>} : vector<100x256xbf16>, vector<256x256xbf16>, vector<100x256xf32> -> vector<100x256xf32>
    %36 = arith.addf %30, %35 : vector<100x256xf32>
    %c0_33 = arith.constant 0 : index
    %c20 = arith.constant 20 : index
    %c0_34 = arith.constant 0 : index
    %37 = vector.load %arg1[%c0_33, %c20, %c0_34] : memref<1x122x256xbf16, #tpu.memory_space<vmem>>, vector<1x100x256xbf16>
    %38 = vector.shape_cast %37 : vector<1x100x256xbf16> to vector<100x256xbf16>
    %c6 = arith.constant 6 : index
    %c0_35 = arith.constant 0 : index
    %c0_36 = arith.constant 0 : index
    %39 = vector.load %arg2[%c6, %c0_35, %c0_36] : memref<9x256x256xbf16, #tpu.memory_space<vmem>>, vector<1x256x256xbf16>
    %40 = vector.shape_cast %39 : vector<1x256x256xbf16> to vector<256x256xbf16>
    %cst_37 = arith.constant dense<0.000000e+00> : vector<100x256xf32>
    %41 = tpu.matmul %38, %40, %cst_37 {dimension_numbers = #tpu.dot_dimension_numbers<[1], [0], [0], [1], [0, 0, 1, 1], [], []>} : vector<100x256xbf16>, vector<256x256xbf16>, vector<100x256xf32> -> vector<100x256xf32>
    %42 = arith.addf %36, %41 : vector<100x256xf32>
    %c0_38 = arith.constant 0 : index
    %c21 = arith.constant 21 : index
    %c0_39 = arith.constant 0 : index
    %43 = vector.load %arg1[%c0_38, %c21, %c0_39] : memref<1x122x256xbf16, #tpu.memory_space<vmem>>, vector<1x100x256xbf16>
    %44 = vector.shape_cast %43 : vector<1x100x256xbf16> to vector<100x256xbf16>
    %c7 = arith.constant 7 : index
    %c0_40 = arith.constant 0 : index
    %c0_41 = arith.constant 0 : index
    %45 = vector.load %arg2[%c7, %c0_40, %c0_41] : memref<9x256x256xbf16, #tpu.memory_space<vmem>>, vector<1x256x256xbf16>
    %46 = vector.shape_cast %45 : vector<1x256x256xbf16> to vector<256x256xbf16>
    %cst_42 = arith.constant dense<0.000000e+00> : vector<100x256xf32>
    %47 = tpu.matmul %44, %46, %cst_42 {dimension_numbers = #tpu.dot_dimension_numbers<[1], [0], [0], [1], [0, 0, 1, 1], [], []>} : vector<100x256xbf16>, vector<256x256xbf16>, vector<100x256xf32> -> vector<100x256xf32>
    %48 = arith.addf %42, %47 : vector<100x256xf32>
    %c0_43 = arith.constant 0 : index
    %c22 = arith.constant 22 : index
    %c0_44 = arith.constant 0 : index
    %49 = vector.load %arg1[%c0_43, %c22, %c0_44] : memref<1x122x256xbf16, #tpu.memory_space<vmem>>, vector<1x100x256xbf16>
    %50 = vector.shape_cast %49 : vector<1x100x256xbf16> to vector<100x256xbf16>
    %c8 = arith.constant 8 : index
    %c0_45 = arith.constant 0 : index
    %c0_46 = arith.constant 0 : index
    %51 = vector.load %arg2[%c8, %c0_45, %c0_46] : memref<9x256x256xbf16, #tpu.memory_space<vmem>>, vector<1x256x256xbf16>
    %52 = vector.shape_cast %51 : vector<1x256x256xbf16> to vector<256x256xbf16>
    %cst_47 = arith.constant dense<0.000000e+00> : vector<100x256xf32>
    %53 = tpu.matmul %50, %52, %cst_47 {dimension_numbers = #tpu.dot_dimension_numbers<[1], [0], [0], [1], [0, 0, 1, 1], [], []>} : vector<100x256xbf16>, vector<256x256xbf16>, vector<100x256xf32> -> vector<100x256xf32>
    %54 = arith.addf %48, %53 : vector<100x256xf32>
    %c0_48 = arith.constant 0 : index
    %c0_49 = arith.constant 0 : index
    %55 = vector.load %arg3[%c0_48, %c0_49] : memref<1x256xf32, #tpu.memory_space<vmem>>, vector<1x256xf32>
    %56 = vector.broadcast %55 : vector<1x256xf32> to vector<100x256xf32>
    %57 = arith.addf %54, %56 : vector<100x256xf32>
    %c0_50 = arith.constant 0 : index
    %c0_51 = arith.constant 0 : index
    %c0_52 = arith.constant 0 : index
    %58 = vector.load %arg5[%c0_50, %c0_51, %c0_52] : memref<1x100x256xf32, #tpu.memory_space<vmem>>, vector<1x100x256xf32>
    %59 = vector.shape_cast %58 : vector<1x100x256xf32> to vector<100x256xf32>
    %60 = vector.shape_cast %57 : vector<100x256xf32> to vector<1x100x256xf32>
    tpu.vector_store %arg5[%c0_50, %c0_51, %c0_52], %60 {strides = array<i32>} : memref<1x100x256xf32, #tpu.memory_space<vmem>>, vector<1x100x256xf32>,
    %c0_53 = arith.constant 0 : index
    %c0_54 = arith.constant 0 : index
    %61 = vector.load %arg4[%c0_53, %c0_54] : memref<100x1xf32, #tpu.memory_space<vmem>>, vector<100x1xf32>
    %62 = vector.broadcast %61 : vector<100x1xf32> to vector<100x256xf32>
    %63 = arith.mulf %57, %62 : vector<100x256xf32>
    %cst_55 = arith.constant dense<0.000000e+00> : vector<256xf32>
    %64 = vector.multi_reduction <add>, %63, %cst_55 [0] : vector<100x256xf32> to vector<256xf32>
    %65 = vector.shape_cast %64 : vector<256xf32> to vector<1x256xf32>
    %c0_56 = arith.constant 0 : index
    %c0_57 = arith.constant 0 : index
    %c0_58 = arith.constant 0 : index
    %66 = vector.load %arg6[%c0_56, %c0_57, %c0_58] : memref<1x1x256xf32, #tpu.memory_space<vmem>>, vector<1x1x256xf32>
    %67 = vector.shape_cast %66 : vector<1x1x256xf32> to vector<1x256xf32>
    %68 = vector.shape_cast %65 : vector<1x256xf32> to vector<1x1x256xf32>
    tpu.vector_store %arg6[%c0_56, %c0_57, %c0_58], %68 {strides = array<i32>} : memref<1x1x256xf32, #tpu.memory_space<vmem>>, vector<1x1x256xf32>,
    %69 = arith.mulf %63, %57 : vector<100x256xf32>
    %cst_59 = arith.constant dense<0.000000e+00> : vector<256xf32>
    %70 = vector.multi_reduction <add>, %69, %cst_59 [0] : vector<100x256xf32> to vector<256xf32>
    %71 = vector.shape_cast %70 : vector<256xf32> to vector<1x256xf32>
    %c0_60 = arith.constant 0 : index
    %c0_61 = arith.constant 0 : index
    %c0_62 = arith.constant 0 : index
    %72 = vector.load %arg7[%c0_60, %c0_61, %c0_62] : memref<1x1x256xf32, #tpu.memory_space<vmem>>, vector<1x1x256xf32>
    %73 = vector.shape_cast %72 : vector<1x1x256xf32> to vector<1x256xf32>
    %74 = vector.shape_cast %71 : vector<1x256xf32> to vector<1x1x256xf32>
    tpu.vector_store %arg7[%c0_60, %c0_61, %c0_62], %74 {strides = array<i32>} : memref<1x1x256xf32, #tpu.memory_space<vmem>>, vector<1x1x256xf32>,
    return
  }
  func.func @transform_0(%arg0: i32) -> (i32, i32, i32) {
    %c0_i32 = arith.constant 0 : i32
    %c0_i32_0 = arith.constant 0 : i32
    %c0_i32_1 = arith.constant 0 : i32
    return %arg0, %c0_i32, %c0_i32_0 : i32, i32, i32
  }
  func.func @transform_1(%arg0: i32) -> (i32, i32, i32) {
    %c0_i32 = arith.constant 0 : i32
    %c0_i32_0 = arith.constant 0 : i32
    %c0_i32_1 = arith.constant 0 : i32
    %c0_i32_2 = arith.constant 0 : i32
    return %c0_i32, %c0_i32_0, %c0_i32_1 : i32, i32, i32
  }
  func.func @transform_2(%arg0: i32) -> (i32, i32) {
    %c0_i32 = arith.constant 0 : i32
    %c0_i32_0 = arith.constant 0 : i32
    %c0_i32_1 = arith.constant 0 : i32
    return %c0_i32, %c0_i32_0 : i32, i32
  }
  func.func @transform_3(%arg0: i32) -> (i32, i32) {
    %c0_i32 = arith.constant 0 : i32
    %c0_i32_0 = arith.constant 0 : i32
    %c0_i32_1 = arith.constant 0 : i32
    return %c0_i32, %c0_i32_0 : i32, i32
  }
  func.func @transform_4(%arg0: i32) -> (i32, i32, i32) {
    %c0_i32 = arith.constant 0 : i32
    %c0_i32_0 = arith.constant 0 : i32
    %c0_i32_1 = arith.constant 0 : i32
    return %arg0, %c0_i32, %c0_i32_0 : i32, i32, i32
  }
  func.func @transform_5(%arg0: i32) -> (i32, i32, i32) {
    %c0_i32 = arith.constant 0 : i32
    %c0_i32_0 = arith.constant 0 : i32
    %c0_i32_1 = arith.constant 0 : i32
    return %arg0, %c0_i32, %c0_i32_0 : i32, i32, i32
  }
  func.func @transform_6(%arg0: i32) -> (i32, i32, i32) {
    %c0_i32 = arith.constant 0 : i32
    %c0_i32_0 = arith.constant 0 : i32
    %c0_i32_1 = arith.constant 0 : i32
    return %arg0, %c0_i32, %c0_i32_0 : i32, i32, i32
  }
}

module attributes {stable_mosaic.version = 11 : i64} {
  func.func @_bn_relu_kernel(%arg0: i32, %arg1: memref<1x100x256xf32, #tpu.memory_space<vmem>>, %arg2: memref<1x256xf32, #tpu.memory_space<vmem>>, %arg3: memref<1x256xf32, #tpu.memory_space<vmem>>, %arg4: memref<1x100x256xf32, #tpu.memory_space<vmem>>) attributes {dimension_semantics = [#tpu.dimension_semantics<parallel>], iteration_bounds = array<i64: 2>, scalar_prefetch = 0 : i64, scratch_operands = 0 : i64, tpu.core_type = #tpu.core_type<tc>, window_params = [{transform_indices = @transform_0, window_bounds = array<i64: 1, 100, 256>}, {pipeline_mode = #tpu.pipeline_mode<synchronous>, transform_indices = @transform_1, window_bounds = array<i64: 1, 256>}, {pipeline_mode = #tpu.pipeline_mode<synchronous>, transform_indices = @transform_2, window_bounds = array<i64: 1, 256>}, {transform_indices = @transform_3, window_bounds = array<i64: 1, 100, 256>}]} {
    %c0 = arith.constant 0 : index
    %c0_0 = arith.constant 0 : index
    %c0_1 = arith.constant 0 : index
    %0 = vector.load %arg1[%c0, %c0_0, %c0_1] : memref<1x100x256xf32, #tpu.memory_space<vmem>>, vector<1x100x256xf32>
    %1 = vector.shape_cast %0 : vector<1x100x256xf32> to vector<100x256xf32>
    %c0_2 = arith.constant 0 : index
    %c0_3 = arith.constant 0 : index
    %2 = vector.load %arg2[%c0_2, %c0_3] : memref<1x256xf32, #tpu.memory_space<vmem>>, vector<1x256xf32>
    %3 = vector.broadcast %2 : vector<1x256xf32> to vector<100x256xf32>
    %4 = arith.mulf %1, %3 : vector<100x256xf32>
    %c0_4 = arith.constant 0 : index
    %c0_5 = arith.constant 0 : index
    %5 = vector.load %arg3[%c0_4, %c0_5] : memref<1x256xf32, #tpu.memory_space<vmem>>, vector<1x256xf32>
    %6 = vector.broadcast %5 : vector<1x256xf32> to vector<100x256xf32>
    %7 = arith.addf %4, %6 : vector<100x256xf32>
    %cst = arith.constant 0.000000e+00 : f32
    %8 = vector.broadcast %cst : f32 to vector<100x256xf32>
    %9 = arith.maximumf %7, %8 : vector<100x256xf32>
    %c0_6 = arith.constant 0 : index
    %c0_7 = arith.constant 0 : index
    %c0_8 = arith.constant 0 : index
    %10 = vector.load %arg4[%c0_6, %c0_7, %c0_8] : memref<1x100x256xf32, #tpu.memory_space<vmem>>, vector<1x100x256xf32>
    %11 = vector.shape_cast %10 : vector<1x100x256xf32> to vector<100x256xf32>
    %12 = vector.shape_cast %9 : vector<100x256xf32> to vector<1x100x256xf32>
    tpu.vector_store %arg4[%c0_6, %c0_7, %c0_8], %12 {strides = array<i32>} : memref<1x100x256xf32, #tpu.memory_space<vmem>>, vector<1x100x256xf32>,
    return
  }
  func.func @transform_0(%arg0: i32) -> (i32, i32, i32) {
    %c0_i32 = arith.constant 0 : i32
    %c0_i32_0 = arith.constant 0 : i32
    %c0_i32_1 = arith.constant 0 : i32
    return %arg0, %c0_i32, %c0_i32_0 : i32, i32, i32
  }
  func.func @transform_1(%arg0: i32) -> (i32, i32) {
    %c0_i32 = arith.constant 0 : i32
    %c0_i32_0 = arith.constant 0 : i32
    %c0_i32_1 = arith.constant 0 : i32
    return %c0_i32, %c0_i32_0 : i32, i32
  }
  func.func @transform_2(%arg0: i32) -> (i32, i32) {
    %c0_i32 = arith.constant 0 : i32
    %c0_i32_0 = arith.constant 0 : i32
    %c0_i32_1 = arith.constant 0 : i32
    return %c0_i32, %c0_i32_0 : i32, i32
  }
  func.func @transform_3(%arg0: i32) -> (i32, i32, i32) {
    %c0_i32 = arith.constant 0 : i32
    %c0_i32_0 = arith.constant 0 : i32
    %c0_i32_1 = arith.constant 0 : i32
    return %arg0, %c0_i32, %c0_i32_0 : i32, i32, i32
  }
}

</mosaic_0001>

<llo_original>
// kernel: block_of_dmt3.3
$region0: #{block_of_dmt3.3}
  #allocation0 [shape = 'u32[]', space=smem, size = 0x4, offset = 0x4, fixed_abs, tag = 'smem constant byte address 0x4 - core index']
  #allocation1 [shape = 'u32[144,128]{1,0:T(1,128)}', space=vmem, size = 0x12000, scoped, tag = 'internal scratch']
  %s0 = inlined_call_operand.hbm [shape: f32[2,100,256], index: 0, kind: input, shape index: {}]
  %s1 = inlined_call_operand.hbm [shape: f32[1,256], index: 1, kind: input, shape index: {}]
  %s2 = inlined_call_operand.hbm [shape: f32[1,256], index: 2, kind: input, shape index: {}]
  %s3 = inlined_call_operand.hbm [shape: f32[2,100,256], index: 3, kind: output, shape index: {}]
  %s4 = sld [smem:[#allocation0]]
  $region57: #{block_of_dmt3.3} parent=0
    _
  %s6 = ssub.s32 1, %s4
  %s7 = scalar_select 0, %s6, %s4
  $region1: #{block_of_dmt3.3} parent=0
    #allocation2 [shape = 'u8[212992]{0}', space=vmem, size = 0x34000, scoped, tag = 'input window, operand 0']
    #allocation3 [shape = 's32[2]{0}', space=sflag, size = 0x8, scoped, tag = 'scoped memory for block_of_dmt3.3']
    #allocation4 [shape = 's32[2]{0}', space=sflag, size = 0x8, scoped, tag = 'scoped memory for block_of_dmt3.3']
    #allocation5 [shape = 'u8[1024]{0}', space=vmem, size = 0x400, scoped, tag = 'input window, operand 1, single buffered']
    #allocation6 [shape = 's32[1]{0}', space=sflag, size = 0x4, scoped, tag = 'scoped memory for block_of_dmt3.3']
    #allocation7 [shape = 'u8[1024]{0}', space=vmem, size = 0x400, scoped, tag = 'input window, operand 2, single buffered']
    #allocation8 [shape = 'u8[212992]{0}', space=vmem, size = 0x34000, scoped, tag = 'output window, operand 0']
    %8 = vsyncpa [#allocation3], 0
    %s9 = scalar_lea.sflag [#allocation3], 1
    %10 = vsyncpa %s9, 0
    %11 = vsyncpa [#allocation6], 0
    %12 = vsyncpa [#allocation4], 0
    %s13 = scalar_lea.sflag [#allocation4], 1
    %14 = vsyncpa %s13, 0
    loop: start=0, step=1, limit=4
    $region2: #{block_of_dmt3.3} parent=1 // loop_pre_header
      _
    $region3: #{block_of_dmt3.3} parent=1 // loop_header
      %s16 = sphi 0, %s20
      %p17 = scmp.ge.s32.totalorder %s16, 4
      %s26 = sphi 0, %s28
      %s29 = sphi 0, %s26
      %s30 = sphi 0, %s29
      %s46 = sphi 0, %s30
      %s50 = sphi 0, %s50
      %s52 = sphi 0, %s50
      %s53 = sphi 0, %s52
      %s67 = sphi 0, %s53
      %s71 = sphi 0, %s71
      %s73 = sphi 0, %s71
      %s74 = sphi 0, %s73
      %s88 = sphi 0, %s74
      %s94 = sphi 0, %s96
      %s97 = sphi 0, %s94
      %s98 = sphi 0, %s97
      %s114 = sphi 0, %s98
    $region4: #{block_of_dmt3.3} parent=1 // loop_header_branch
      %19 = sbr.rel (%p17) target = $region8
    $region5: #{block_of_dmt3.3} parent=1 // loop_body
      %s21 = ssub.s32 %s16, 1
      %s22 = ssub.s32 %s16, 2
      %s23 = sadd.s32 %s16, 1
      %s24 = ssub.s32 %s16, %s23
      %p25 = scmp.eq.s32.totalorder %s24, 0
      %s27 = sadd.s32 %s26, 1
      %s28 = scalar_select %p25, %s26, %s27
      %p31 = pneg %p25
      %p32 = scmp.eq.s32.totalorder %s16, 1
      %p33 = por %p31, %p32
      %p34 = scmp.ne.s32.totalorder %s26, %s29
      %p35 = scmp.eq.s32.totalorder %s16, 0
      %p36 = por %p34, %p35
      %p37 = scmp.ne.s32.totalorder %s26, %s29
      %p38 = scmp.eq.s32.totalorder %s21, 1
      %p39 = por %p37, %p38
      %p40 = scmp.ne.s32.totalorder %s29, %s30
      %p41 = scmp.eq.s32.totalorder %s21, 0
      %p42 = por %p40, %p41
      %p43 = scmp.ne.s32.totalorder %s29, %s30
      %p44 = scmp.eq.s32.totalorder %s22, 1
      %p45 = por %p43, %p44
      %p47 = scmp.ne.s32.totalorder %s30, %s46
      %p48 = scmp.eq.s32.totalorder %s22, 0
      %p49 = por %p47, %p48
      %s51 = sadd.s32 %s50, 1
      %p54 = scmp.eq.s32.totalorder %s16, 1
      %p55 = scmp.ne.s32.totalorder %s50, %s52
      %p56 = scmp.eq.s32.totalorder %s16, 0
      %p57 = por %p55, %p56
      %p58 = scmp.ne.s32.totalorder %s50, %s52
      %p59 = scmp.eq.s32.totalorder %s21, 1
      %p60 = por %p58, %p59
      %p61 = scmp.ne.s32.totalorder %s52, %s53
      %p62 = scmp.eq.s32.totalorder %s21, 0
      %p63 = por %p61, %p62
      %p64 = scmp.ne.s32.totalorder %s52, %s53
      %p65 = scmp.eq.s32.totalorder %s22, 1
      %p66 = por %p64, %p65
      %p68 = scmp.ne.s32.totalorder %s53, %s67
      %p69 = scmp.eq.s32.totalorder %s22, 0
      %p70 = por %p68, %p69
      %s72 = sadd.s32 %s71, 1
      %p75 = scmp.eq.s32.totalorder %s16, 1
      %p76 = scmp.ne.s32.totalorder %s71, %s73
      %p77 = scmp.eq.s32.totalorder %s16, 0
      %p78 = por %p76, %p77
      %p79 = scmp.ne.s32.totalorder %s71, %s73
      %p80 = scmp.eq.s32.totalorder %s21, 1
      %p81 = por %p79, %p80
      %p82 = scmp.ne.s32.totalorder %s73, %s74
      %p83 = scmp.eq.s32.totalorder %s21, 0
      %p84 = por %p82, %p83
      %p85 = scmp.ne.s32.totalorder %s73, %s74
      %p86 = scmp.eq.s32.totalorder %s22, 1
      %p87 = por %p85, %p86
      %p89 = scmp.ne.s32.totalorder %s74, %s88
      %p90 = scmp.eq.s32.totalorder %s22, 0
      %p91 = por %p89, %p90
      %s92 = ssub.s32 %s16, %s23
      %p93 = scmp.eq.s32.totalorder %s92, 0
      %s95 = sadd.s32 %s94, 1
      %s96 = scalar_select %p93, %s94, %s95
      %p99 = pneg %p93
      %p100 = scmp.eq.s32.totalorder %s16, 1
      %p101 = por %p99, %p100
      %p102 = scmp.ne.s32.totalorder %s94, %s97
      %p103 = scmp.eq.s32.totalorder %s16, 0
      %p104 = por %p102, %p103
      %p105 = scmp.ne.s32.totalorder %s94, %s97
      %p106 = scmp.eq.s32.totalorder %s21, 1
      %p107 = por %p105, %p106
      %p108 = scmp.ne.s32.totalorder %s97, %s98
      %p109 = scmp.eq.s32.totalorder %s21, 0
      %p110 = por %p108, %p109
      %p111 = scmp.ne.s32.totalorder %s97, %s98
      %p112 = scmp.eq.s32.totalorder %s22, 1
      %p113 = por %p111, %p112
      %p115 = scmp.ne.s32.totalorder %s98, %s114
      %p116 = scmp.eq.s32.totalorder %s22, 0
      %p117 = por %p115, %p116
      %p118 = scmp.le.s32.totalorder 1, %s16
      %p119 = scmp.lt.s32.totalorder %s16, 3
      %p120 = pnand %p118, %p119
      %p121 = pneg %p120
      // Predicated region
      $region9: #{block_of_dmt3.3} parent=5 // pred_check
        _
      $region10: #{block_of_dmt3.3} parent=5 // pred_check_branch
        %123 = sbr.rel (%p120) target = $region12
      $region11: #{block_of_dmt3.3} parent=5 // pred_region
        %s124 = ssub.s32 %s16, 1
        // Predicated region
        $region13: #{block_of_dmt3.3} parent=11 // pred_check
          %p125 = pneg %p63
        $region14: #{block_of_dmt3.3} parent=11 // pred_check_branch
          %127 = sbr.rel (%p125) target = $region16
        $region15: #{block_of_dmt3.3} parent=11 // pred_region
          %s129 = ssub.s32 32, 32
          %130 = vsyncadd [#allocation6], %s129
          %s132 = sshll.u32 [#allocation5], 4
          %s133 = int_to_ptr.vmem [resolvable:$true] %s132
          %135 = dma.hbm_to_vmem [thread:$0]  %s1, 32, %s133, [#allocation6]
        $region16: #{block_of_dmt3.3} parent=11 // pred_fallthru
          _
        // Predicated region
        $region17: #{block_of_dmt3.3} parent=11 // pred_check
          %p136 = pneg %p84
        $region18: #{block_of_dmt3.3} parent=11 // pred_check_branch
          %138 = sbr.rel (%p136) target = $region20
        $region19: #{block_of_dmt3.3} parent=11 // pred_region
          %s140 = ssub.s32 32, 32
          %141 = vsyncadd [#allocation6], %s140
          %s143 = sshll.u32 [#allocation7], 4
          %s144 = int_to_ptr.vmem [resolvable:$true] %s143
          %146 = dma.hbm_to_vmem [thread:$0]  %s2, 32, %s144, [#allocation6]
        $region20: #{block_of_dmt3.3} parent=11 // pred_fallthru
          _
      $region12: #{block_of_dmt3.3} parent=5 // pred_fallthru
        _
      %p147 = scmp.lt.s32.totalorder %s16, 2
      // Predicated region
      $region21: #{block_of_dmt3.3} parent=5 // pred_check
        %p148 = pneg %p147
      $region22: #{block_of_dmt3.3} parent=5 // pred_check_branch
        %150 = sbr.rel (%p148) target = $region24
      $region23: #{block_of_dmt3.3} parent=5 // pred_region
        // Predicated region
        $region25: #{block_of_dmt3.3} parent=23 // pred_check
          %p151 = pneg %p36
        $region26: #{block_of_dmt3.3} parent=23 // pred_check_branch
          %153 = sbr.rel (%p151) target = $region28
        $region27: #{block_of_dmt3.3} parent=23 // pred_region
          %s154 = sand.u32 %s26, 1
          %s155 = scalar_lea.sflag [#allocation3], %s154
          %s156 = sand.u32 %s26, 1
          %s157 = smul.addr %s156, 208
          %s158 = scalar_lea.vmem [#allocation2], %s157
          %s160 = ssub.s32 3328, 3328
          %161 = vsyncadd %s155, %s160
          %s162 = smul.addr %s16, 26
          %s163 = smul.addr %s162, 128
          %s164 = scalar_lea.hbm %s0, %s163
          %s165 = sshll.u32 %s158, 4
          %s166 = int_to_ptr.vmem [resolvable:$true] %s165
          %171 = dma.hbm_to_vmem [thread:$0]  %s164, 3328, %s166, %s155, 256, 256, 16
        $region28: #{block_of_dmt3.3} parent=23 // pred_fallthru
          _
      $region24: #{block_of_dmt3.3} parent=5 // pred_fallthru
        _
      %p172 = scmp.le.s32.totalorder 1, %s16
      %p173 = scmp.lt.s32.totalorder %s16, 3
      %p174 = pnand %p172, %p173
      %p175 = pneg %p174
      // Predicated region
      $region29: #{block_of_dmt3.3} parent=5 // pred_check
        _
      $region30: #{block_of_dmt3.3} parent=5 // pred_check_branch
        %177 = sbr.rel (%p174) target = $region32
      $region31: #{block_of_dmt3.3} parent=5 // pred_region
        %s178 = ssub.s32 %s16, 1
        %s179 = sand.u32 %s29, 1
        %s180 = scalar_lea.sflag [#allocation3], %s179
        %s181 = sand.u32 %s29, 1
        %s182 = smul.addr %s181, 208
        %s183 = scalar_lea.vmem [#allocation2], %s182
        // Predicated region
        $region33: #{block_of_dmt3.3} parent=31 // pred_check
          %p184 = pneg %p42
        $region34: #{block_of_dmt3.3} parent=31 // pred_check_branch
          %186 = sbr.rel (%p184) target = $region36
        $region35: #{block_of_dmt3.3} parent=31 // pred_region
          %187 = dma.done %s180, 3328
        $region36: #{block_of_dmt3.3} parent=31 // pred_fallthru
          _
        // Predicated region
        $region37: #{block_of_dmt3.3} parent=31 // pred_check
          %p188 = pneg %p63
        $region38: #{block_of_dmt3.3} parent=31 // pred_check_branch
          %190 = sbr.rel (%p188) target = $region40
        $region39: #{block_of_dmt3.3} parent=31 // pred_region
          %191 = dma.done [#allocation6], 32
        $region40: #{block_of_dmt3.3} parent=31 // pred_fallthru
          _
        // Predicated region
        $region41: #{block_of_dmt3.3} parent=31 // pred_check
          %p192 = pneg %p84
        $region42: #{block_of_dmt3.3} parent=31 // pred_check_branch
          %194 = sbr.rel (%p192) target = $region44
        $region43: #{block_of_dmt3.3} parent=31 // pred_region
          %195 = dma.done [#allocation6], 32
        $region44: #{block_of_dmt3.3} parent=31 // pred_fallthru
          _
        %s196 = sand.u32 %s29, 1
        %s197 = scalar_lea.sflag [#allocation3], %s196
        %s198 = sand.u32 %s29, 1
        %s199 = smul.addr %s198, 208
        %s200 = scalar_lea.vmem [#allocation2], %s199
        %p201 = pneg %p42
        %p202 = pneg %p39
        %p203 = pneg %p63
        %p204 = pneg %p60
        %p205 = pneg %p84
        %p206 = pneg %p81
        %p207 = pneg %p110
        %p208 = pneg %p107
        %s209 = sand.u32 %s97, 1
        %s210 = scalar_lea.sflag [#allocation4], %s209
        %s211 = sand.u32 %s97, 1
        %s212 = smul.addr %s211, 208
        %s213 = scalar_lea.vmem [#allocation8], %s212
        %v214 = vld [vmem:[%s183] sm:$0xff]
        %v215 = vld [vmem:[%s183 + $0x8] sm:$0xff]
        %v216 = vld [vmem:[%s183 + $0x10] sm:$0xff]
        %v217 = vld [vmem:[%s183 + $0x18] sm:$0xff]
        %v218 = vld [vmem:[%s183 + $0x20] sm:$0xff]
        %v219 = vld [vmem:[%s183 + $0x28] sm:$0xff]
        %v220 = vld [vmem:[%s183 + $0x30] sm:$0xff]
        %v221 = vld [vmem:[%s183 + $0x38] sm:$0xff]
        %v222 = vld [vmem:[%s183 + $0x40] sm:$0xff]
        %v223 = vld [vmem:[%s183 + $0x48] sm:$0xff]
        %v224 = vld [vmem:[%s183 + $0x50] sm:$0xff]
        %v225 = vld [vmem:[%s183 + $0x58] sm:$0xff]
        %v226 = vld [vmem:[%s183 + $0x60] sm:$0xff]
        %v227 = vld [vmem:[%s183 + $0x68] sm:$0xff]
        %v228 = vld [vmem:[%s183 + $0x70] sm:$0xff]
        %v229 = vld [vmem:[%s183 + $0x78] sm:$0xff]
        %v230 = vld [vmem:[%s183 + $0x80] sm:$0xff]
        %v231 = vld [vmem:[%s183 + $0x88] sm:$0xff]
        %v232 = vld [vmem:[%s183 + $0x90] sm:$0xff]
        %v233 = vld [vmem:[%s183 + $0x98] sm:$0xff]
        %v234 = vld [vmem:[%s183 + $0xa0] sm:$0xff]
        %v235 = vld [vmem:[%s183 + $0xa8] sm:$0xff]
        %v236 = vld [vmem:[%s183 + $0xb0] sm:$0xff]
        %v237 = vld [vmem:[%s183 + $0xb8] sm:$0xff]
        %v238 = vld [vmem:[%s183 + $0xc0] sm:$0xf]
        %v239 = vld [vmem:[%s183 + $0xc8] sm:$0xf]
        %v240 = vld [vmem:[#allocation5] sm:$0x3]
        %v242 = vlaneseq
        %v243 = vshrl.u32 %v242, 7
        %v244 = vsub.s32 0, %v243
        %v245 = vrot.slane %v240, %v244
        %v246 = vlaneseq
        %v247 = vshrl.u32 %v246, 7
        %v248 = vsub.s32 1, %v247
        %v249 = vrot.slane %v240, %v248
        %v252 = vmul.f32 %v214, %v245
        %v253 = vmul.f32 %v215, %v249
        %v254 = vmul.f32 %v216, %v245
        %v255 = vmul.f32 %v217, %v249
        %v256 = vmul.f32 %v218, %v245
        %v257 = vmul.f32 %v219, %v249
        %v258 = vmul.f32 %v220, %v245
        %v259 = vmul.f32 %v221, %v249
        %v260 = vmul.f32 %v222, %v245
        %v261 = vmul.f32 %v223, %v249
        %v262 = vmul.f32 %v224, %v245
        %v263 = vmul.f32 %v225, %v249
        %v264 = vmul.f32 %v226, %v245
        %v265 = vmul.f32 %v227, %v249
        %v266 = vmul.f32 %v228, %v245
        %v267 = vmul.f32 %v229, %v249
        %v268 = vmul.f32 %v230, %v245
        %v269 = vmul.f32 %v231, %v249
        %v270 = vmul.f32 %v232, %v245
        %v271 = vmul.f32 %v233, %v249
        %v272 = vmul.f32 %v234, %v245
        %v273 = vmul.f32 %v235, %v249
        %v274 = vmul.f32 %v236, %v245
        %v275 = vmul.f32 %v237, %v249
        %v276 = vmul.f32 %v238, %v245
        %v277 = vmul.f32 %v239, %v249
        %v278 = vld [vmem:[#allocation7] sm:$0x3]
        %v280 = vlaneseq
        %v281 = vshrl.u32 %v280, 7
        %v282 = vsub.s32 0, %v281
        %v283 = vrot.slane %v278, %v282
        %v284 = vlaneseq
        %v285 = vshrl.u32 %v284, 7
        %v286 = vsub.s32 1, %v285
        %v287 = vrot.slane %v278, %v286
        %v290 = vadd.f32 %v252, %v283
        %v291 = vadd.f32 %v253, %v287
        %v292 = vadd.f32 %v254, %v283
        %v293 = vadd.f32 %v255, %v287
        %v294 = vadd.f32 %v256, %v283
        %v295 = vadd.f32 %v257, %v287
        %v296 = vadd.f32 %v258, %v283
        %v297 = vadd.f32 %v259, %v287
        %v298 = vadd.f32 %v260, %v283
        %v299 = vadd.f32 %v261, %v287
        %v300 = vadd.f32 %v262, %v283
        %v301 = vadd.f32 %v263, %v287
        %v302 = vadd.f32 %v264, %v283
        %v303 = vadd.f32 %v265, %v287
        %v304 = vadd.f32 %v266, %v283
        %v305 = vadd.f32 %v267, %v287
        %v306 = vadd.f32 %v268, %v283
        %v307 = vadd.f32 %v269, %v287
        %v308 = vadd.f32 %v270, %v283
        %v309 = vadd.f32 %v271, %v287
        %v310 = vadd.f32 %v272, %v283
        %v311 = vadd.f32 %v273, %v287
        %v312 = vadd.f32 %v274, %v283
        %v313 = vadd.f32 %v275, %v287
        %v314 = vadd.f32 %v276, %v283
        %v315 = vadd.f32 %v277, %v287
        %v316 = vmax.f32 %v290, 0.0
        %v317 = vmax.f32 %v291, 0.0
        %v318 = vmax.f32 %v292, 0.0
        %v319 = vmax.f32 %v293, 0.0
        %v320 = vmax.f32 %v294, 0.0
        %v321 = vmax.f32 %v295, 0.0
        %v322 = vmax.f32 %v296, 0.0
        %v323 = vmax.f32 %v297, 0.0
        %v324 = vmax.f32 %v298, 0.0
        %v325 = vmax.f32 %v299, 0.0
        %v326 = vmax.f32 %v300, 0.0
        %v327 = vmax.f32 %v301, 0.0
        %v328 = vmax.f32 %v302, 0.0
        %v329 = vmax.f32 %v303, 0.0
        %v330 = vmax.f32 %v304, 0.0
        %v331 = vmax.f32 %v305, 0.0
        %v332 = vmax.f32 %v306, 0.0
        %v333 = vmax.f32 %v307, 0.0
        %v334 = vmax.f32 %v308, 0.0
        %v335 = vmax.f32 %v309, 0.0
        %v336 = vmax.f32 %v310, 0.0
        %v337 = vmax.f32 %v311, 0.0
        %v338 = vmax.f32 %v312, 0.0
        %v339 = vmax.f32 %v313, 0.0
        %v340 = vmax.f32 %v314, 0.0
        %v341 = vmax.f32 %v315, 0.0
        %342 = vst [vmem:[%s213] sm:$0xff] %v316
        %343 = vst [vmem:[%s213 + $0x8] sm:$0xff] %v317
        %344 = vst [vmem:[%s213 + $0x10] sm:$0xff] %v318
        %345 = vst [vmem:[%s213 + $0x18] sm:$0xff] %v319
        %346 = vst [vmem:[%s213 + $0x20] sm:$0xff] %v320
        %347 = vst [vmem:[%s213 + $0x28] sm:$0xff] %v321
        %348 = vst [vmem:[%s213 + $0x30] sm:$0xff] %v322
        %349 = vst [vmem:[%s213 + $0x38] sm:$0xff] %v323
        %350 = vst [vmem:[%s213 + $0x40] sm:$0xff] %v324
        %351 = vst [vmem:[%s213 + $0x48] sm:$0xff] %v325
        %352 = vst [vmem:[%s213 + $0x50] sm:$0xff] %v326
        %353 = vst [vmem:[%s213 + $0x58] sm:$0xff] %v327
        %354 = vst [vmem:[%s213 + $0x60] sm:$0xff] %v328
        %355 = vst [vmem:[%s213 + $0x68] sm:$0xff] %v329
        %356 = vst [vmem:[%s213 + $0x70] sm:$0xff] %v330
        %357 = vst [vmem:[%s213 + $0x78] sm:$0xff] %v331
        %358 = vst [vmem:[%s213 + $0x80] sm:$0xff] %v332
        %359 = vst [vmem:[%s213 + $0x88] sm:$0xff] %v333
        %360 = vst [vmem:[%s213 + $0x90] sm:$0xff] %v334
        %361 = vst [vmem:[%s213 + $0x98] sm:$0xff] %v335
        %362 = vst [vmem:[%s213 + $0xa0] sm:$0xff] %v336
        %363 = vst [vmem:[%s213 + $0xa8] sm:$0xff] %v337
        %364 = vst [vmem:[%s213 + $0xb0] sm:$0xff] %v338
        %365 = vst [vmem:[%s213 + $0xb8] sm:$0xff] %v339
        %366 = vst [vmem:[%s213 + $0xc0] sm:$0xf] %v340
        %367 = vst [vmem:[%s213 + $0xc8] sm:$0xf] %v341
        %s368 = sand.u32 %s97, 1
        %s369 = scalar_lea.sflag [#allocation4], %s368
        %s370 = sand.u32 %s97, 1
        %s371 = smul.addr %s370, 208
        %s372 = scalar_lea.vmem [#allocation8], %s371
        // Predicated region
        $region45: #{block_of_dmt3.3} parent=31 // pred_check
          %p373 = pneg %p107
        $region46: #{block_of_dmt3.3} parent=31 // pred_check_branch
          %375 = sbr.rel (%p373) target = $region48
        $region47: #{block_of_dmt3.3} parent=31 // pred_region
          %s377 = ssub.s32 3328, 3328
          %378 = vsyncadd %s369, %s377
          %s379 = smul.addr %s21, 26
          %s380 = smul.addr %s379, 128
          %s381 = scalar_lea.hbm %s3, %s380
          %s382 = sshll.u32 %s372, 4
          %s383 = int_to_ptr.vmem [resolvable:$true] %s382
          %388 = dma.vmem_to_hbm [thread:$0]  %s383, 3328, %s381, %s369, 256, 256, 16
        $region48: #{block_of_dmt3.3} parent=31 // pred_fallthru
          _
      $region32: #{block_of_dmt3.3} parent=5 // pred_fallthru
        _
      %p389 = scmp.le.s32.totalorder 2, %s16
      // Predicated region
      $region49: #{block_of_dmt3.3} parent=5 // pred_check
        %p390 = pneg %p389
      $region50: #{block_of_dmt3.3} parent=5 // pred_check_branch
        %392 = sbr.rel (%p390) target = $region52
      $region51: #{block_of_dmt3.3} parent=5 // pred_region
        %s393 = ssub.s32 %s16, 2
        // Predicated region
        $region53: #{block_of_dmt3.3} parent=51 // pred_check
          %p394 = pneg %p113
        $region54: #{block_of_dmt3.3} parent=51 // pred_check_branch
          %396 = sbr.rel (%p394) target = $region56
        $region55: #{block_of_dmt3.3} parent=51 // pred_region
          %s397 = sand.u32 %s98, 1
          %s398 = scalar_lea.sflag [#allocation4], %s397
          %s399 = sand.u32 %s98, 1
          %s400 = smul.addr %s399, 208
          %s401 = scalar_lea.vmem [#allocation8], %s400
          %402 = dma.done %s398, 3328
        $region56: #{block_of_dmt3.3} parent=51 // pred_fallthru
          _
      $region52: #{block_of_dmt3.3} parent=5 // pred_fallthru
        _
    $region6: #{block_of_dmt3.3} parent=1 // loop_footer
      %s20 = sadd.s32 1, %s16
    $region7: #{block_of_dmt3.3} parent=1 // loop_footer_branch
      %15 = sbr.rel target = $region3
    $region8: #{block_of_dmt3.3} parent=1 // loop_exit
      _
    %403 = vsyncpa [#allocation3], 1
    %s404 = scalar_lea.sflag [#allocation3], 1
    %405 = vsyncpa %s404, 1
    %406 = vsyncpa [#allocation6], 1
    %407 = vsyncpa [#allocation4], 1
    %s408 = scalar_lea.sflag [#allocation4], 1
    %409 = vsyncpa %s408, 1

// kernel: block_of_dmt3.2
$region0: #{block_of_dmt3.2}
  #allocation0 [shape = 'u32[]', space=smem, size = 0x4, offset = 0x4, fixed_abs, tag = 'smem constant byte address 0x4 - core index']
  #allocation1 [shape = 'u32[144,128]{1,0:T(1,128)}', space=vmem, size = 0x12000, scoped, tag = 'internal scratch']
  %s0 = inlined_call_operand.hbm [shape: bf16[2,122,256], index: 0, kind: input, shape index: {}]
  %s1 = inlined_call_operand.hbm [shape: bf16[9,256,256], index: 1, kind: input, shape index: {}]
  %s2 = inlined_call_operand.hbm [shape: f32[1,256], index: 2, kind: input, shape index: {}]
  %s3 = inlined_call_operand.hbm [shape: f32[100,1], index: 3, kind: input, shape index: {}]
  %s4 = inlined_call_operand.hbm [shape: f32[2,100,256], index: 4, kind: output, shape index: {0}]
  %s5 = inlined_call_operand.hbm [shape: f32[2,1,256], index: 5, kind: output, shape index: {1}]
  %s6 = inlined_call_operand.hbm [shape: f32[2,1,256], index: 6, kind: output, shape index: {2}]
  %7 = xla_tuple %s4, %s5, %s6
  %s8 = sld [smem:[#allocation0]]
  $region81: #{block_of_dmt3.2} parent=0
    _
  %s10 = ssub.s32 1, %s8
  %s11 = scalar_select 0, %s10, %s8
  $region1: #{block_of_dmt3.2} parent=0
    #allocation2 [shape = 'u8[131072]{0}', space=vmem, size = 0x20000, scoped, tag = 'input window, operand 0']
    #allocation3 [shape = 's32[2]{0}', space=sflag, size = 0x8, scoped, tag = 'scoped memory for block_of_dmt3.2']
    #allocation4 [shape = 's32[2]{0}', space=sflag, size = 0x8, scoped, tag = 'scoped memory for block_of_dmt3.2']
    #allocation5 [shape = 'u8[1179648]{0}', space=vmem, size = 0x120000, scoped, tag = 'input window, operand 1, single buffered']
    #allocation6 [shape = 's32[1]{0}', space=sflag, size = 0x4, scoped, tag = 'scoped memory for block_of_dmt3.2']
    #allocation7 [shape = 'u8[1024]{0}', space=vmem, size = 0x400, scoped, tag = 'input window, operand 2, single buffered']
    #allocation8 [shape = 'u8[53248]{0}', space=vmem, size = 0xd000, scoped, tag = 'input window, operand 3, single buffered']
    #allocation9 [shape = 's32[1]{0}', space=sflag, size = 0x4, scoped, tag = 'scoped memory for block_of_dmt3.2']
    #allocation10 [shape = 'u8[212992]{0}', space=vmem, size = 0x34000, scoped, tag = 'output window, operand 0']
    #allocation11 [shape = 'u8[2048]{0}', space=vmem, size = 0x800, scoped, tag = 'output window, operand 1']
    #allocation12 [shape = 's32[2]{0}', space=sflag, size = 0x8, scoped, tag = 'scoped memory for block_of_dmt3.2']
    #allocation13 [shape = 'u8[2048]{0}', space=vmem, size = 0x800, scoped, tag = 'output window, operand 2']
    %12 = vsyncpa [#allocation3], 0
    %s13 = scalar_lea.sflag [#allocation3], 1
    %14 = vsyncpa %s13, 0
    %15 = vsyncpa [#allocation6], 0
    %16 = vsyncpa [#allocation9], 0
    %17 = vsyncpa [#allocation4], 0
    %s18 = scalar_lea.sflag [#allocation4], 1
    %19 = vsyncpa %s18, 0
    %20 = vsyncpa [#allocation12], 0
    %s21 = scalar_lea.sflag [#allocation12], 1
    %22 = vsyncpa %s21, 0
    loop: start=0, step=1, limit=4
    $region2: #{block_of_dmt3.2} parent=1 // loop_pre_header
      _
    $region3: #{block_of_dmt3.2} parent=1 // loop_header
      %s24 = sphi 0, %s28
      %p25 = scmp.ge.s32.totalorder %s24, 4
      %s34 = sphi 0, %s36
      %s37 = sphi 0, %s34
      %s38 = sphi 0, %s37
      %s54 = sphi 0, %s38
      %s58 = sphi 0, %s58
      %s60 = sphi 0, %s58
      %s61 = sphi 0, %s60
      %s75 = sphi 0, %s61
      %s79 = sphi 0, %s79
      %s81 = sphi 0, %s79
      %s82 = sphi 0, %s81
      %s96 = sphi 0, %s82
      %s100 = sphi 0, %s100
      %s102 = sphi 0, %s100
      %s103 = sphi 0, %s102
      %s117 = sphi 0, %s103
      %s123 = sphi 0, %s125
      %s126 = sphi 0, %s123
      %s127 = sphi 0, %s126
      %s143 = sphi 0, %s127
      %s149 = sphi 0, %s151
      %s152 = sphi 0, %s149
      %s153 = sphi 0, %s152
      %s169 = sphi 0, %s153
      %s175 = sphi 0, %s177
      %s178 = sphi 0, %s175
      %s179 = sphi 0, %s178
      %s195 = sphi 0, %s179
    $region4: #{block_of_dmt3.2} parent=1 // loop_header_branch
      %27 = sbr.rel (%p25) target = $region8
    $region5: #{block_of_dmt3.2} parent=1 // loop_body
      %s29 = ssub.s32 %s24, 1
      %s30 = ssub.s32 %s24, 2
      %s31 = sadd.s32 %s24, 1
      %s32 = ssub.s32 %s24, %s31
      %p33 = scmp.eq.s32.totalorder %s32, 0
      %s35 = sadd.s32 %s34, 1
      %s36 = scalar_select %p33, %s34, %s35
      %p39 = pneg %p33
      %p40 = scmp.eq.s32.totalorder %s24, 1
      %p41 = por %p39, %p40
      %p42 = scmp.ne.s32.totalorder %s34, %s37
      %p43 = scmp.eq.s32.totalorder %s24, 0
      %p44 = por %p42, %p43
      %p45 = scmp.ne.s32.totalorder %s34, %s37
      %p46 = scmp.eq.s32.totalorder %s29, 1
      %p47 = por %p45, %p46
      %p48 = scmp.ne.s32.totalorder %s37, %s38
      %p49 = scmp.eq.s32.totalorder %s29, 0
      %p50 = por %p48, %p49
      %p51 = scmp.ne.s32.totalorder %s37, %s38
      %p52 = scmp.eq.s32.totalorder %s30, 1
      %p53 = por %p51, %p52
      %p55 = scmp.ne.s32.totalorder %s38, %s54
      %p56 = scmp.eq.s32.totalorder %s30, 0
      %p57 = por %p55, %p56
      %s59 = sadd.s32 %s58, 1
      %p62 = scmp.eq.s32.totalorder %s24, 1
      %p63 = scmp.ne.s32.totalorder %s58, %s60
      %p64 = scmp.eq.s32.totalorder %s24, 0
      %p65 = por %p63, %p64
      %p66 = scmp.ne.s32.totalorder %s58, %s60
      %p67 = scmp.eq.s32.totalorder %s29, 1
      %p68 = por %p66, %p67
      %p69 = scmp.ne.s32.totalorder %s60, %s61
      %p70 = scmp.eq.s32.totalorder %s29, 0
      %p71 = por %p69, %p70
      %p72 = scmp.ne.s32.totalorder %s60, %s61
      %p73 = scmp.eq.s32.totalorder %s30, 1
      %p74 = por %p72, %p73
      %p76 = scmp.ne.s32.totalorder %s61, %s75
      %p77 = scmp.eq.s32.totalorder %s30, 0
      %p78 = por %p76, %p77
      %s80 = sadd.s32 %s79, 1
      %p83 = scmp.eq.s32.totalorder %s24, 1
      %p84 = scmp.ne.s32.totalorder %s79, %s81
      %p85 = scmp.eq.s32.totalorder %s24, 0
      %p86 = por %p84, %p85
      %p87 = scmp.ne.s32.totalorder %s79, %s81
      %p88 = scmp.eq.s32.totalorder %s29, 1
      %p89 = por %p87, %p88
      %p90 = scmp.ne.s32.totalorder %s81, %s82
      %p91 = scmp.eq.s32.totalorder %s29, 0
      %p92 = por %p90, %p91
      %p93 = scmp.ne.s32.totalorder %s81, %s82
      %p94 = scmp.eq.s32.totalorder %s30, 1
      %p95 = por %p93, %p94
      %p97 = scmp.ne.s32.totalorder %s82, %s96
      %p98 = scmp.eq.s32.totalorder %s30, 0
      %p99 = por %p97, %p98
      %s101 = sadd.s32 %s100, 1
      %p104 = scmp.eq.s32.totalorder %s24, 1
      %p105 = scmp.ne.s32.totalorder %s100, %s102
      %p106 = scmp.eq.s32.totalorder %s24, 0
      %p107 = por %p105, %p106
      %p108 = scmp.ne.s32.totalorder %s100, %s102
      %p109 = scmp.eq.s32.totalorder %s29, 1
      %p110 = por %p108, %p109
      %p111 = scmp.ne.s32.totalorder %s102, %s103
      %p112 = scmp.eq.s32.totalorder %s29, 0
      %p113 = por %p111, %p112
      %p114 = scmp.ne.s32.totalorder %s102, %s103
      %p115 = scmp.eq.s32.totalorder %s30, 1
      %p116 = por %p114, %p115
      %p118 = scmp.ne.s32.totalorder %s103, %s117
      %p119 = scmp.eq.s32.totalorder %s30, 0
      %p120 = por %p118, %p119
      %s121 = ssub.s32 %s24, %s31
      %p122 = scmp.eq.s32.totalorder %s121, 0
      %s124 = sadd.s32 %s123, 1
      %s125 = scalar_select %p122, %s123, %s124
      %p128 = pneg %p122
      %p129 = scmp.eq.s32.totalorder %s24, 1
      %p130 = por %p128, %p129
      %p131 = scmp.ne.s32.totalorder %s123, %s126
      %p132 = scmp.eq.s32.totalorder %s24, 0
      %p133 = por %p131, %p132
      %p134 = scmp.ne.s32.totalorder %s123, %s126
      %p135 = scmp.eq.s32.totalorder %s29, 1
      %p136 = por %p134, %p135
      %p137 = scmp.ne.s32.totalorder %s126, %s127
      %p138 = scmp.eq.s32.totalorder %s29, 0
      %p139 = por %p137, %p138
      %p140 = scmp.ne.s32.totalorder %s126, %s127
      %p141 = scmp.eq.s32.totalorder %s30, 1
      %p142 = por %p140, %p141
      %p144 = scmp.ne.s32.totalorder %s127, %s143
      %p145 = scmp.eq.s32.totalorder %s30, 0
      %p146 = por %p144, %p145
      %s147 = ssub.s32 %s24, %s31
      %p148 = scmp.eq.s32.totalorder %s147, 0
      %s150 = sadd.s32 %s149, 1
      %s151 = scalar_select %p148, %s149, %s150
      %p154 = pneg %p148
      %p155 = scmp.eq.s32.totalorder %s24, 1
      %p156 = por %p154, %p155
      %p157 = scmp.ne.s32.totalorder %s149, %s152
      %p158 = scmp.eq.s32.totalorder %s24, 0
      %p159 = por %p157, %p158
      %p160 = scmp.ne.s32.totalorder %s149, %s152
      %p161 = scmp.eq.s32.totalorder %s29, 1
      %p162 = por %p160, %p161
      %p163 = scmp.ne.s32.totalorder %s152, %s153
      %p164 = scmp.eq.s32.totalorder %s29, 0
      %p165 = por %p163, %p164
      %p166 = scmp.ne.s32.totalorder %s152, %s153
      %p167 = scmp.eq.s32.totalorder %s30, 1
      %p168 = por %p166, %p167
      %p170 = scmp.ne.s32.totalorder %s153, %s169
      %p171 = scmp.eq.s32.totalorder %s30, 0
      %p172 = por %p170, %p171
      %s173 = ssub.s32 %s24, %s31
      %p174 = scmp.eq.s32.totalorder %s173, 0
      %s176 = sadd.s32 %s175, 1
      %s177 = scalar_select %p174, %s175, %s176
      %p180 = pneg %p174
      %p181 = scmp.eq.s32.totalorder %s24, 1
      %p182 = por %p180, %p181
      %p183 = scmp.ne.s32.totalorder %s175, %s178
      %p184 = scmp.eq.s32.totalorder %s24, 0
      %p185 = por %p183, %p184
      %p186 = scmp.ne.s32.totalorder %s175, %s178
      %p187 = scmp.eq.s32.totalorder %s29, 1
      %p188 = por %p186, %p187
      %p189 = scmp.ne.s32.totalorder %s178, %s179
      %p190 = scmp.eq.s32.totalorder %s29, 0
      %p191 = por %p189, %p190
      %p192 = scmp.ne.s32.totalorder %s178, %s179
      %p193 = scmp.eq.s32.totalorder %s30, 1
      %p194 = por %p192, %p193
      %p196 = scmp.ne.s32.totalorder %s179, %s195
      %p197 = scmp.eq.s32.totalorder %s30, 0
      %p198 = por %p196, %p197
      %p199 = scmp.le.s32.totalorder 1, %s24
      %p200 = scmp.lt.s32.totalorder %s24, 3
      %p201 = pnand %p199, %p200
      %p202 = pneg %p201
      // Predicated region
      $region9: #{block_of_dmt3.2} parent=5 // pred_check
        _
      $region10: #{block_of_dmt3.2} parent=5 // pred_check_branch
        %204 = sbr.rel (%p201) target = $region12
      $region11: #{block_of_dmt3.2} parent=5 // pred_region
        %s205 = ssub.s32 %s24, 1
        // Predicated region
        $region13: #{block_of_dmt3.2} parent=11 // pred_check
          %p206 = pneg %p71
        $region14: #{block_of_dmt3.2} parent=11 // pred_check_branch
          %208 = sbr.rel (%p206) target = $region16
        $region15: #{block_of_dmt3.2} parent=11 // pred_region
          %s210 = ssub.s32 36864, 36864
          %211 = vsyncadd [#allocation6], %s210
          %s212 = sshll.u32 [#allocation5], 4
          %s213 = int_to_ptr.vmem [resolvable:$true] %s212
          %218 = dma.hbm_to_vmem [thread:$0]  %s1, 36864, %s213, [#allocation6], 128, 128, 8
        $region16: #{block_of_dmt3.2} parent=11 // pred_fallthru
          _
        // Predicated region
        $region17: #{block_of_dmt3.2} parent=11 // pred_check
          %p219 = pneg %p92
        $region18: #{block_of_dmt3.2} parent=11 // pred_check_branch
          %221 = sbr.rel (%p219) target = $region20
        $region19: #{block_of_dmt3.2} parent=11 // pred_region
          %s223 = ssub.s32 32, 32
          %224 = vsyncadd [#allocation6], %s223
          %s226 = sshll.u32 [#allocation7], 4
          %s227 = int_to_ptr.vmem [resolvable:$true] %s226
          %229 = dma.hbm_to_vmem [thread:$0]  %s2, 32, %s227, [#allocation6]
        $region20: #{block_of_dmt3.2} parent=11 // pred_fallthru
          _
        // Predicated region
        $region21: #{block_of_dmt3.2} parent=11 // pred_check
          %p230 = pneg %p113
        $region22: #{block_of_dmt3.2} parent=11 // pred_check_branch
          %232 = sbr.rel (%p230) target = $region24
        $region23: #{block_of_dmt3.2} parent=11 // pred_region
          %s234 = ssub.s32 1664, 1664
          %235 = vsyncadd [#allocation9], %s234
          %s236 = sshll.u32 [#allocation8], 4
          %s237 = int_to_ptr.vmem [resolvable:$true] %s236
          %242 = dma.hbm_to_vmem [thread:$0]  %s3, 1664, %s237, [#allocation9], 128, 128, 8
        $region24: #{block_of_dmt3.2} parent=11 // pred_fallthru
          _
      $region12: #{block_of_dmt3.2} parent=5 // pred_fallthru
        _
      %p243 = scmp.lt.s32.totalorder %s24, 2
      // Predicated region
      $region25: #{block_of_dmt3.2} parent=5 // pred_check
        %p244 = pneg %p243
      $region26: #{block_of_dmt3.2} parent=5 // pred_check_branch
        %246 = sbr.rel (%p244) target = $region28
      $region27: #{block_of_dmt3.2} parent=5 // pred_region
        // Predicated region
        $region29: #{block_of_dmt3.2} parent=27 // pred_check
          %p247 = pneg %p44
        $region30: #{block_of_dmt3.2} parent=27 // pred_check_branch
          %249 = sbr.rel (%p247) target = $region32
        $region31: #{block_of_dmt3.2} parent=27 // pred_region
          %s250 = sand.u32 %s34, 1
          %s251 = scalar_lea.sflag [#allocation3], %s250
          %s252 = sand.u32 %s34, 1
          %s253 = smul.addr %s252, 128
          %s254 = scalar_lea.vmem [#allocation2], %s253
          %s256 = ssub.s32 2048, 2048
          %257 = vsyncadd %s251, %s256
          %s258 = smul.addr %s24, 32
          %s259 = smul.addr %s258, 64
          %s260 = scalar_lea.hbm %s0, %s259
          %s261 = sshll.u32 %s254, 4
          %s262 = int_to_ptr.vmem [resolvable:$true] %s261
          %267 = dma.hbm_to_vmem [thread:$0]  %s260, 2048, %s262, %s251, 128, 128, 8
        $region32: #{block_of_dmt3.2} parent=27 // pred_fallthru
          _
      $region28: #{block_of_dmt3.2} parent=5 // pred_fallthru
        _
      %p268 = scmp.le.s32.totalorder 1, %s24
      %p269 = scmp.lt.s32.totalorder %s24, 3
      %p270 = pnand %p268, %p269
      %p271 = pneg %p270
      // Predicated region
      $region33: #{block_of_dmt3.2} parent=5 // pred_check
        _
      $region34: #{block_of_dmt3.2} parent=5 // pred_check_branch
        %273 = sbr.rel (%p270) target = $region36
      $region35: #{block_of_dmt3.2} parent=5 // pred_region
        %s274 = ssub.s32 %s24, 1
        %s275 = sand.u32 %s37, 1
        %s276 = scalar_lea.sflag [#allocation3], %s275
        %s277 = sand.u32 %s37, 1
        %s278 = smul.addr %s277, 128
        %s279 = scalar_lea.vmem [#allocation2], %s278
        // Predicated region
        $region37: #{block_of_dmt3.2} parent=35 // pred_check
          %p280 = pneg %p50
        $region38: #{block_of_dmt3.2} parent=35 // pred_check_branch
          %282 = sbr.rel (%p280) target = $region40
        $region39: #{block_of_dmt3.2} parent=35 // pred_region
          %283 = dma.done %s276, 2048
        $region40: #{block_of_dmt3.2} parent=35 // pred_fallthru
          _
        // Predicated region
        $region41: #{block_of_dmt3.2} parent=35 // pred_check
          %p284 = pneg %p71
        $region42: #{block_of_dmt3.2} parent=35 // pred_check_branch
          %286 = sbr.rel (%p284) target = $region44
        $region43: #{block_of_dmt3.2} parent=35 // pred_region
          %287 = dma.done [#allocation6], 36864
        $region44: #{block_of_dmt3.2} parent=35 // pred_fallthru
          _
        // Predicated region
        $region45: #{block_of_dmt3.2} parent=35 // pred_check
          %p288 = pneg %p92
        $region46: #{block_of_dmt3.2} parent=35 // pred_check_branch
          %290 = sbr.rel (%p288) target = $region48
        $region47: #{block_of_dmt3.2} parent=35 // pred_region
          %291 = dma.done [#allocation6], 32
        $region48: #{block_of_dmt3.2} parent=35 // pred_fallthru
          _
        // Predicated region
        $region49: #{block_of_dmt3.2} parent=35 // pred_check
          %p292 = pneg %p113
        $region50: #{block_of_dmt3.2} parent=35 // pred_check_branch
          %294 = sbr.rel (%p292) target = $region52
        $region51: #{block_of_dmt3.2} parent=35 // pred_region
          %295 = dma.done [#allocation9], 1664
        $region52: #{block_of_dmt3.2} parent=35 // pred_fallthru
          _
        %s296 = sand.u32 %s37, 1
        %s297 = scalar_lea.sflag [#allocation3], %s296
        %s298 = sand.u32 %s37, 1
        %s299 = smul.addr %s298, 128
        %s300 = scalar_lea.vmem [#allocation2], %s299
        %p301 = pneg %p50
        %p302 = pneg %p47
        %p303 = pneg %p71
        %p304 = pneg %p68
        %p305 = pneg %p92
        %p306 = pneg %p89
        %p307 = pneg %p113
        %p308 = pneg %p110
        %p309 = pneg %p139
        %p310 = pneg %p136
        %s311 = sand.u32 %s126, 1
        %s312 = scalar_lea.sflag [#allocation4], %s311
        %s313 = sand.u32 %s126, 1
        %s314 = smul.addr %s313, 208
        %s315 = scalar_lea.vmem [#allocation10], %s314
        %p316 = pneg %p165
        %p317 = pneg %p162
        %s318 = sand.u32 %s29, 1
        %s319 = scalar_lea.sflag [#allocation12], %s318
        %s320 = sand.u32 %s152, 1
        %s321 = smul.addr %s320, 2
        %s322 = scalar_lea.vmem [#allocation11], %s321
        %p323 = pneg %p191
        %p324 = pneg %p188
        %s325 = sand.u32 %s29, 1
        %s326 = scalar_lea.sflag [#allocation12], %s325
        %s327 = sand.u32 %s178, 1
        %s328 = smul.addr %s327, 2
        %s329 = scalar_lea.vmem [#allocation13], %s328
        %v330 = vld [vmem:[%s279] sm:$0xff]
        %v331 = vld [vmem:[%s279 + $0x8] sm:$0xff]
        %v332 = vld [vmem:[%s279 + $0x10] sm:$0xff]
        %v333 = vld [vmem:[%s279 + $0x18] sm:$0xff]
        %v334 = vld [vmem:[%s279 + $0x20] sm:$0xff]
        %v335 = vld [vmem:[%s279 + $0x28] sm:$0xff]
        %v336 = vld [vmem:[%s279 + $0x30] sm:$0xff]
        %v337 = vld [vmem:[%s279 + $0x38] sm:$0xff]
        %v338 = vld [vmem:[%s279 + $0x40] sm:$0xff]
        %v339 = vld [vmem:[%s279 + $0x48] sm:$0xff]
        %v340 = vld [vmem:[%s279 + $0x50] sm:$0xff]
        %v341 = vld [vmem:[%s279 + $0x58] sm:$0xff]
        %v342 = vld [vmem:[%s279 + $0x60] sm:$0x33]
        %v343 = vld [vmem:[#allocation5] sm:$0xff]
        %v344 = vld [vmem:[#allocation5 + $0x8] sm:$0xff]
        %v345 = vld [vmem:[#allocation5 + $0x10] sm:$0xff]
        %v346 = vld [vmem:[#allocation5 + $0x18] sm:$0xff]
        %v347 = vld [vmem:[#allocation5 + $0x20] sm:$0xff]
        %v348 = vld [vmem:[#allocation5 + $0x28] sm:$0xff]
        %v349 = vld [vmem:[#allocation5 + $0x30] sm:$0xff]
        %v350 = vld [vmem:[#allocation5 + $0x38] sm:$0xff]
        %v351 = vld [vmem:[#allocation5 + $0x40] sm:$0xff]
        %v352 = vld [vmem:[#allocation5 + $0x48] sm:$0xff]
        %v353 = vld [vmem:[#allocation5 + $0x50] sm:$0xff]
        %v354 = vld [vmem:[#allocation5 + $0x58] sm:$0xff]
        %v355 = vld [vmem:[#allocation5 + $0x60] sm:$0xff]
        %v356 = vld [vmem:[#allocation5 + $0x68] sm:$0xff]
        %v357 = vld [vmem:[#allocation5 + $0x70] sm:$0xff]
        %v358 = vld [vmem:[#allocation5 + $0x78] sm:$0xff]
        %v359 = vld [vmem:[#allocation5 + $0x80] sm:$0xff]
        %v360 = vld [vmem:[#allocation5 + $0x88] sm:$0xff]
        %v361 = vld [vmem:[#allocation5 + $0x90] sm:$0xff]
        %v362 = vld [vmem:[#allocation5 + $0x98] sm:$0xff]
        %v363 = vld [vmem:[#allocation5 + $0xa0] sm:$0xff]
        %v364 = vld [vmem:[#allocation5 + $0xa8] sm:$0xff]
        %v365 = vld [vmem:[#allocation5 + $0xb0] sm:$0xff]
        %v366 = vld [vmem:[#allocation5 + $0xb8] sm:$0xff]
        %v367 = vld [vmem:[#allocation5 + $0xc0] sm:$0xff]
        %v368 = vld [vmem:[#allocation5 + $0xc8] sm:$0xff]
        %v369 = vld [vmem:[#allocation5 + $0xd0] sm:$0xff]
        %v370 = vld [vmem:[#allocation5 + $0xd8] sm:$0xff]
        %v371 = vld [vmem:[#allocation5 + $0xe0] sm:$0xff]
        %v372 = vld [vmem:[#allocation5 + $0xe8] sm:$0xff]
        %v373 = vld [vmem:[#allocation5 + $0xf0] sm:$0xff]
        %v374 = vld [vmem:[#allocation5 + $0xf8] sm:$0xff]
        %v375 = vld [vmem:[%s279 + $0x60] sm:$0x77]
        %s376 = scalar_lea.vmem [#allocation5], 256
        %v377 = vld [vmem:[%s376] sm:$0xff]
        %v378 = vld [vmem:[%s376 + $0x8] sm:$0xff]
        %v379 = vld [vmem:[%s376 + $0x10] sm:$0xff]
        %v380 = vld [vmem:[%s376 + $0x18] sm:$0xff]
        %v381 = vld [vmem:[%s376 + $0x20] sm:$0xff]
        %v382 = vld [vmem:[%s376 + $0x28] sm:$0xff]
        %v383 = vld [vmem:[%s376 + $0x30] sm:$0xff]
        %v384 = vld [vmem:[%s376 + $0x38] sm:$0xff]
        %v385 = vld [vmem:[%s376 + $0x40] sm:$0xff]
        %v386 = vld [vmem:[%s376 + $0x48] sm:$0xff]
        %v387 = vld [vmem:[%s376 + $0x50] sm:$0xff]
        %v388 = vld [vmem:[%s376 + $0x58] sm:$0xff]
        %v389 = vld [vmem:[%s376 + $0x60] sm:$0xff]
        %v390 = vld [vmem:[%s376 + $0x68] sm:$0xff]
        %v391 = vld [vmem:[%s376 + $0x70] sm:$0xff]
        %v392 = vld [vmem:[%s376 + $0x78] sm:$0xff]
        %v393 = vld [vmem:[%s376 + $0x80] sm:$0xff]
        %v394 = vld [vmem:[%s376 + $0x88] sm:$0xff]
        %v395 = vld [vmem:[%s376 + $0x90] sm:$0xff]
        %v396 = vld [vmem:[%s376 + $0x98] sm:$0xff]
        %v397 = vld [vmem:[%s376 + $0xa0] sm:$0xff]
        %v398 = vld [vmem:[%s376 + $0xa8] sm:$0xff]
        %v399 = vld [vmem:[%s376 + $0xb0] sm:$0xff]
        %v400 = vld [vmem:[%s376 + $0xb8] sm:$0xff]
        %v401 = vld [vmem:[%s376 + $0xc0] sm:$0xff]
        %v402 = vld [vmem:[%s376 + $0xc8] sm:$0xff]
        %v403 = vld [vmem:[%s376 + $0xd0] sm:$0xff]
        %v404 = vld [vmem:[%s376 + $0xd8] sm:$0xff]
        %v405 = vld [vmem:[%s376 + $0xe0] sm:$0xff]
        %v406 = vld [vmem:[%s376 + $0xe8] sm:$0xff]
        %v407 = vld [vmem:[%s376 + $0xf0] sm:$0xff]
        %v408 = vld [vmem:[%s376 + $0xf8] sm:$0xff]
        %v422 = vunpack.c.l.b16 %v330
        %v423 = vunpack.c.h.b16 %v330
        %v424 = vunpack.c.l.b16 %v331
        %v425 = vunpack.c.h.b16 %v331
        %v426 = vunpack.c.l.b16 %v332
        %v427 = vunpack.c.h.b16 %v332
        %v428 = vunpack.c.l.b16 %v333
        %v429 = vunpack.c.h.b16 %v333
        %v430 = vunpack.c.l.b16 %v334
        %v431 = vunpack.c.h.b16 %v334
        %v432 = vunpack.c.l.b16 %v335
        %v433 = vunpack.c.h.b16 %v335
        %v434 = vunpack.c.l.b16 %v336
        %v435 = vunpack.c.h.b16 %v336
        %v436 = vunpack.c.l.b16 %v337
        %v437 = vunpack.c.h.b16 %v337
        %v438 = vunpack.c.l.b16 %v338
        %v439 = vunpack.c.h.b16 %v338
        %v440 = vunpack.c.l.b16 %v339
        %v441 = vunpack.c.h.b16 %v339
        %v442 = vunpack.c.l.b16 %v340
        %v443 = vunpack.c.h.b16 %v340
        %v444 = vunpack.c.l.b16 %v341
        %v445 = vunpack.c.h.b16 %v341
        %v446 = vunpack.c.l.b16 %v375
        %v447 = vunpack.c.h.b16 %v375
        %v448 = vpack.c.b16 %v424, %v422
        %v449 = vpack.c.b16 %v425, %v423
        %v450 = vpack.c.b16 %v428, %v426
        %v451 = vpack.c.b16 %v429, %v427
        %v452 = vpack.c.b16 %v432, %v430
        %v453 = vpack.c.b16 %v433, %v431
        %v454 = vpack.c.b16 %v436, %v434
        %v455 = vpack.c.b16 %v437, %v435
        %v456 = vpack.c.b16 %v440, %v438
        %v457 = vpack.c.b16 %v441, %v439
        %v458 = vpack.c.b16 %v444, %v442
        %v459 = vpack.c.b16 %v445, %v443
        %v460 = vpack.c.b16 %v446, %v446
        %v461 = vpack.c.b16 %v447, %v447
        %vm462 = vsmask.f32 7424
        %v464 = vshrl.u32 %v448, 16
        %v466 = vshll.u32 %v448, 16
        %v468 = vrot.slane %v466, 1
        %v469 = vor.u32 %v464, %v468
        %v471 = vshll.u32 %v450, 16
        %v473 = vrot.slane %v471, 1
        %v474 = vsel %vm462, %v469, %v473
        %v476 = vshrl.u32 %v449, 16
        %v478 = vshll.u32 %v449, 16
        %v480 = vrot.slane %v478, 1
        %v481 = vor.u32 %v476, %v480
        %v483 = vshll.u32 %v451, 16
        %v485 = vrot.slane %v483, 1
        %v486 = vsel %vm462, %v481, %v485
        %v487 = vshrl.u32 %v450, 16
        %v489 = vor.u32 %v487, %v473
        %v491 = vshll.u32 %v452, 16
        %v493 = vrot.slane %v491, 1
        %v494 = vsel %vm462, %v489, %v493
        %v495 = vshrl.u32 %v451, 16
        %v497 = vor.u32 %v495, %v485
        %v499 = vshll.u32 %v453, 16
        %v501 = vrot.slane %v499, 1
        %v502 = vsel %vm462, %v497, %v501
        %v503 = vshrl.u32 %v452, 16
        %v505 = vor.u32 %v503, %v493
        %v507 = vshll.u32 %v454, 16
        %v509 = vrot.slane %v507, 1
        %v510 = vsel %vm462, %v505, %v509
        %v511 = vshrl.u32 %v453, 16
        %v513 = vor.u32 %v511, %v501
        %v515 = vshll.u32 %v455, 16
        %v517 = vrot.slane %v515, 1
        %v518 = vsel %vm462, %v513, %v517
        %v519 = vshrl.u32 %v454, 16
        %v521 = vor.u32 %v519, %v509
        %v523 = vshll.u32 %v456, 16
        %v525 = vrot.slane %v523, 1
        %v526 = vsel %vm462, %v521, %v525
        %v527 = vshrl.u32 %v455, 16
        %v529 = vor.u32 %v527, %v517
        %v531 = vshll.u32 %v457, 16
        %v533 = vrot.slane %v531, 1
        %v534 = vsel %vm462, %v529, %v533
        %v535 = vshrl.u32 %v456, 16
        %v537 = vor.u32 %v535, %v525
        %v539 = vshll.u32 %v458, 16
        %v541 = vrot.slane %v539, 1
        %v542 = vsel %vm462, %v537, %v541
        %v543 = vshrl.u32 %v457, 16
        %v545 = vor.u32 %v543, %v533
        %v547 = vshll.u32 %v459, 16
        %v549 = vrot.slane %v547, 1
        %v550 = vsel %vm462, %v545, %v549
        %v551 = vshrl.u32 %v458, 16
        %v553 = vor.u32 %v551, %v541
        %v555 = vshll.u32 %v460, 16
        %v557 = vrot.slane %v555, 1
        %v558 = vsel %vm462, %v553, %v557
        %v559 = vshrl.u32 %v459, 16
        %v561 = vor.u32 %v559, %v549
        %v563 = vshll.u32 %v461, 16
        %v565 = vrot.slane %v563, 1
        %v566 = vsel %vm462, %v561, %v565
        %v567 = vshrl.u32 %v460, 16
        %v569 = vor.u32 %v567, %v557
        %v570 = vshrl.u32 %v461, 16
        %v572 = vor.u32 %v570, %v565
        %v619 = vunpack.c.l.b16 %v377
        %v620 = vunpack.c.h.b16 %v377
        %v621 = vunpack.c.l.b16 %v378
        %v622 = vunpack.c.h.b16 %v378
        %v623 = vunpack.c.l.b16 %v379
        %v624 = vunpack.c.h.b16 %v379
        %v625 = vunpack.c.l.b16 %v380
        %v626 = vunpack.c.h.b16 %v380
        %v627 = vunpack.c.l.b16 %v381
        %v628 = vunpack.c.h.b16 %v381
        %v629 = vunpack.c.l.b16 %v382
        %v630 = vunpack.c.h.b16 %v382
        %v631 = vunpack.c.l.b16 %v383
        %v632 = vunpack.c.h.b16 %v383
        %v633 = vunpack.c.l.b16 %v384
        %v634 = vunpack.c.h.b16 %v384
        %v635 = vunpack.c.l.b16 %v385
        %v636 = vunpack.c.h.b16 %v385
        %v637 = vunpack.c.l.b16 %v386
        %v638 = vunpack.c.h.b16 %v386
        %v639 = vunpack.c.l.b16 %v387
        %v640 = vunpack.c.h.b16 %v387
        %v641 = vunpack.c.l.b16 %v388
        %v642 = vunpack.c.h.b16 %v388
        %v643 = vunpack.c.l.b16 %v389
        %v644 = vunpack.c.h.b16 %v389
        %v645 = vunpack.c.l.b16 %v390
        %v646 = vunpack.c.h.b16 %v390
        %v647 = vunpack.c.l.b16 %v391
        %v648 = vunpack.c.h.b16 %v391
        %v649 = vunpack.c.l.b16 %v392
        %v650 = vunpack.c.h.b16 %v392
        %v651 = vunpack.c.l.b16 %v393
        %v652 = vunpack.c.h.b16 %v393
        %v653 = vunpack.c.l.b16 %v394
        %v654 = vunpack.c.h.b16 %v394
        %v655 = vunpack.c.l.b16 %v395
        %v656 = vunpack.c.h.b16 %v395
        %v657 = vunpack.c.l.b16 %v396
        %v658 = vunpack.c.h.b16 %v396
        %v659 = vunpack.c.l.b16 %v397
        %v660 = vunpack.c.h.b16 %v397
        %v661 = vunpack.c.l.b16 %v398
        %v662 = vunpack.c.h.b16 %v398
        %v663 = vunpack.c.l.b16 %v399
        %v664 = vunpack.c.h.b16 %v399
        %v665 = vunpack.c.l.b16 %v400
        %v666 = vunpack.c.h.b16 %v400
        %v667 = vunpack.c.l.b16 %v401
        %v668 = vunpack.c.h.b16 %v401
        %v669 = vunpack.c.l.b16 %v402
        %v670 = vunpack.c.h.b16 %v402
        %v671 = vunpack.c.l.b16 %v403
        %v672 = vunpack.c.h.b16 %v403
        %v673 = vunpack.c.l.b16 %v404
        %v674 = vunpack.c.h.b16 %v404
        %v675 = vunpack.c.l.b16 %v405
        %v676 = vunpack.c.h.b16 %v405
        %v677 = vunpack.c.l.b16 %v406
        %v678 = vunpack.c.h.b16 %v406
        %v679 = vunpack.c.l.b16 %v407
        %v680 = vunpack.c.h.b16 %v407
        %v681 = vunpack.c.l.b16 %v408
        %v682 = vunpack.c.h.b16 %v408
        %v683 = vpack.c.b16 %v621, %v619
        %v684 = vpack.c.b16 %v622, %v620
        %v685 = vpack.c.b16 %v625, %v623
        %v686 = vpack.c.b16 %v626, %v624
        %v687 = vpack.c.b16 %v629, %v627
        %v688 = vpack.c.b16 %v630, %v628
        %v689 = vpack.c.b16 %v633, %v631
        %v690 = vpack.c.b16 %v634, %v632
        %v691 = vpack.c.b16 %v637, %v635
        %v692 = vpack.c.b16 %v638, %v636
        %v693 = vpack.c.b16 %v641, %v639
        %v694 = vpack.c.b16 %v642, %v640
        %v695 = vpack.c.b16 %v645, %v643
        %v696 = vpack.c.b16 %v646, %v644
        %v697 = vpack.c.b16 %v649, %v647
        %v698 = vpack.c.b16 %v650, %v648
        %v699 = vpack.c.b16 %v653, %v651
        %v700 = vpack.c.b16 %v654, %v652
        %v701 = vpack.c.b16 %v657, %v655
        %v702 = vpack.c.b16 %v658, %v656
        %v703 = vpack.c.b16 %v661, %v659
        %v704 = vpack.c.b16 %v662, %v660
        %v705 = vpack.c.b16 %v665, %v663
        %v706 = vpack.c.b16 %v666, %v664
        %v707 = vpack.c.b16 %v669, %v667
        %v708 = vpack.c.b16 %v670, %v668
        %v709 = vpack.c.b16 %v673, %v671
        %v710 = vpack.c.b16 %v674, %v672
        %v711 = vpack.c.b16 %v677, %v675
        %v712 = vpack.c.b16 %v678, %v676
        %v713 = vpack.c.b16 %v681, %v679
        %v714 = vpack.c.b16 %v682, %v680
        %747 = vmatprep.subr.bf16.mxu0 %v684
        %748 = vmatpush1.bf16.msra.mxu0 %v683
        %749 = vmatprep.subr.bf16.mxu0 %v686
        %750 = vmatpush1.bf16.msra.mxu0 %v685
        %751 = vmatprep.subr.bf16.mxu0 %v688
        %752 = vmatpush1.bf16.msra.mxu0 %v687
        %753 = vmatprep.subr.bf16.mxu0 %v690
        %754 = vmatpush1.bf16.msra.mxu0 %v689
        %755 = vmatprep.subr.bf16.mxu0 %v692
        %756 = vmatpush1.bf16.msra.mxu0 %v691
        %757 = vmatprep.subr.bf16.mxu0 %v694
        %758 = vmatpush1.bf16.msra.mxu0 %v693
        %759 = vmatprep.subr.bf16.mxu0 %v696
        %760 = vmatpush1.bf16.msra.mxu0 %v695
        %761 = vmatprep.subr.bf16.mxu0 %v698
        %762 = vmatpush1.bf16.msra.mxu0 %v697
        %763 = vmatprep.subr.bf16.mxu0 %v700
        %764 = vmatpush1.bf16.msra.mxu0 %v699
        %765 = vmatprep.subr.bf16.mxu0 %v702
        %766 = vmatpush1.bf16.msra.mxu0 %v701
        %767 = vmatprep.subr.bf16.mxu0 %v704
        %768 = vmatpush1.bf16.msra.mxu0 %v703
        %769 = vmatprep.subr.bf16.mxu0 %v706
        %770 = vmatpush1.bf16.msra.mxu0 %v705
        %771 = vmatprep.subr.bf16.mxu0 %v708
        %772 = vmatpush1.bf16.msra.mxu0 %v707
        %773 = vmatprep.subr.bf16.mxu0 %v710
        %774 = vmatpush1.bf16.msra.mxu0 %v709
        %775 = vmatprep.subr.bf16.mxu0 %v712
        %776 = vmatpush1.bf16.msra.mxu0 %v711
        %777 = vmatprep.subr.bf16.mxu0 %v714
        %778 = vmatpush1.bf16.msra.mxu0 %v713
        %779 = vmatprep.mubr.bf16.mxu0 %v486
        %780 = vmatmul.mubr.bf16.gmra.mrb[0].mxu0 %v474
        %v781 = vpop.f32.mrb[0].mxu0
        %v782 = vadd.f32 0.0, %v781
        %v783 = vpop.f32.mrb[0].mxu0
        %v784 = vadd.f32 0.0, %v783
        %v785 = vpop.f32.mrb[0].mxu0
        %v786 = vadd.f32 0.0, %v785
        %v787 = vpop.f32.mrb[0].mxu0
        %v788 = vadd.f32 0.0, %v787
        %789 = vmatprep.mubr.bf16.mxu0 %v502
        %790 = vmatmul.mubr.bf16.gmra.mrb[0].mxu0 %v494
        %v791 = vpop.f32.mrb[0].mxu0
        %v792 = vadd.f32 0.0, %v791
        %v793 = vpop.f32.mrb[0].mxu0
        %v794 = vadd.f32 0.0, %v793
        %v795 = vpop.f32.mrb[0].mxu0
        %v796 = vadd.f32 0.0, %v795
        %v797 = vpop.f32.mrb[0].mxu0
        %v798 = vadd.f32 0.0, %v797
        %799 = vmatprep.mubr.bf16.mxu0 %v518
        %800 = vmatmul.mubr.bf16.gmra.mrb[0].mxu0 %v510
        %v801 = vpop.f32.mrb[0].mxu0
        %v802 = vadd.f32 0.0, %v801
        %v803 = vpop.f32.mrb[0].mxu0
        %v804 = vadd.f32 0.0, %v803
        %v805 = vpop.f32.mrb[0].mxu0
        %v806 = vadd.f32 0.0, %v805
        %v807 = vpop.f32.mrb[0].mxu0
        %v808 = vadd.f32 0.0, %v807
        %809 = vmatprep.mubr.bf16.mxu0 %v534
        %810 = vmatmul.mubr.bf16.gmra.mrb[0].mxu0 %v526
        %v811 = vpop.f32.mrb[0].mxu0
        %v812 = vadd.f32 0.0, %v811
        %v813 = vpop.f32.mrb[0].mxu0
        %v814 = vadd.f32 0.0, %v813
        %v815 = vpop.f32.mrb[0].mxu0
        %v816 = vadd.f32 0.0, %v815
        %v817 = vpop.f32.mrb[0].mxu0
        %v818 = vadd.f32 0.0, %v817
        %819 = vmatprep.mubr.bf16.mxu0 %v550
        %820 = vmatmul.mubr.bf16.gmra.mrb[0].mxu0 %v542
        %v821 = vpop.f32.mrb[0].mxu0
        %v822 = vadd.f32 0.0, %v821
        %v823 = vpop.f32.mrb[0].mxu0
        %v824 = vadd.f32 0.0, %v823
        %v825 = vpop.f32.mrb[0].mxu0
        %v826 = vadd.f32 0.0, %v825
        %v827 = vpop.f32.mrb[0].mxu0
        %v828 = vadd.f32 0.0, %v827
        %829 = vmatprep.mubr.bf16.mxu0 %v566
        %830 = vmatmul.mubr.bf16.gmra.mrb[0].mxu0 %v558
        %v831 = vpop.f32.mrb[0].mxu0
        %v832 = vadd.f32 0.0, %v831
        %v833 = vpop.f32.mrb[0].mxu0
        %v834 = vadd.f32 0.0, %v833
        %v835 = vpop.f32.mrb[0].mxu0
        %v836 = vadd.f32 0.0, %v835
        %v837 = vpop.f32.mrb[0].mxu0
        %v838 = vadd.f32 0.0, %v837
        %839 = vmatprep.mubr.bf16.mxu0 %v572
        %840 = vmatmul.mubr.bf16.gmra.mrb[0].mxu0 %v569
        %v841 = vpop.f32.mrb[0].mxu0
        %v842 = vadd.f32 0.0, %v841
        %v843 = vpop.f32.mrb[0].mxu0
        %v844 = vadd.f32 0.0, %v843
        %v845 = vpop.f32.mrb[0].mxu0
        %v846 = vpop.f32.mrb[0].mxu0
        %847 = vdwg.mxu0
        %v849 = vunpack.c.l.b16 %v342
        %v850 = vunpack.c.h.b16 %v342
        %v851 = vpack.c.b16 %v849, %v849
        %v852 = vpack.c.b16 %v850, %v850
        %v899 = vunpack.c.l.b16 %v343
        %v900 = vunpack.c.h.b16 %v343
        %v901 = vunpack.c.l.b16 %v344
        %v902 = vunpack.c.h.b16 %v344
        %v903 = vunpack.c.l.b16 %v345
        %v904 = vunpack.c.h.b16 %v345
        %v905 = vunpack.c.l.b16 %v346
        %v906 = vunpack.c.h.b16 %v346
        %v907 = vunpack.c.l.b16 %v347
        %v908 = vunpack.c.h.b16 %v347
        %v909 = vunpack.c.l.b16 %v348
        %v910 = vunpack.c.h.b16 %v348
        %v911 = vunpack.c.l.b16 %v349
        %v912 = vunpack.c.h.b16 %v349
        %v913 = vunpack.c.l.b16 %v350
        %v914 = vunpack.c.h.b16 %v350
        %v915 = vunpack.c.l.b16 %v351
        %v916 = vunpack.c.h.b16 %v351
        %v917 = vunpack.c.l.b16 %v352
        %v918 = vunpack.c.h.b16 %v352
        %v919 = vunpack.c.l.b16 %v353
        %v920 = vunpack.c.h.b16 %v353
        %v921 = vunpack.c.l.b16 %v354
        %v922 = vunpack.c.h.b16 %v354
        %v923 = vunpack.c.l.b16 %v355
        %v924 = vunpack.c.h.b16 %v355
        %v925 = vunpack.c.l.b16 %v356
        %v926 = vunpack.c.h.b16 %v356
        %v927 = vunpack.c.l.b16 %v357
        %v928 = vunpack.c.h.b16 %v357
        %v929 = vunpack.c.l.b16 %v358
        %v930 = vunpack.c.h.b16 %v358
        %v931 = vunpack.c.l.b16 %v359
        %v932 = vunpack.c.h.b16 %v359
        %v933 = vunpack.c.l.b16 %v360
        %v934 = vunpack.c.h.b16 %v360
        %v935 = vunpack.c.l.b16 %v361
        %v936 = vunpack.c.h.b16 %v361
        %v937 = vunpack.c.l.b16 %v362
        %v938 = vunpack.c.h.b16 %v362
        %v939 = vunpack.c.l.b16 %v363
        %v940 = vunpack.c.h.b16 %v363
        %v941 = vunpack.c.l.b16 %v364
        %v942 = vunpack.c.h.b16 %v364
        %v943 = vunpack.c.l.b16 %v365
        %v944 = vunpack.c.h.b16 %v365
        %v945 = vunpack.c.l.b16 %v366
        %v946 = vunpack.c.h.b16 %v366
        %v947 = vunpack.c.l.b16 %v367
        %v948 = vunpack.c.h.b16 %v367
        %v949 = vunpack.c.l.b16 %v368
        %v950 = vunpack.c.h.b16 %v368
        %v951 = vunpack.c.l.b16 %v369
        %v952 = vunpack.c.h.b16 %v369
        %v953 = vunpack.c.l.b16 %v370
        %v954 = vunpack.c.h.b16 %v370
        %v955 = vunpack.c.l.b16 %v371
        %v956 = vunpack.c.h.b16 %v371
        %v957 = vunpack.c.l.b16 %v372
        %v958 = vunpack.c.h.b16 %v372
        %v959 = vunpack.c.l.b16 %v373
        %v960 = vunpack.c.h.b16 %v373
        %v961 = vunpack.c.l.b16 %v374
        %v962 = vunpack.c.h.b16 %v374
        %v963 = vpack.c.b16 %v901, %v899
        %v964 = vpack.c.b16 %v902, %v900
        %v965 = vpack.c.b16 %v905, %v903
        %v966 = vpack.c.b16 %v906, %v904
        %v967 = vpack.c.b16 %v909, %v907
        %v968 = vpack.c.b16 %v910, %v908
        %v969 = vpack.c.b16 %v913, %v911
        %v970 = vpack.c.b16 %v914, %v912
        %v971 = vpack.c.b16 %v917, %v915
        %v972 = vpack.c.b16 %v918, %v916
        %v973 = vpack.c.b16 %v921, %v919
        %v974 = vpack.c.b16 %v922, %v920
        %v975 = vpack.c.b16 %v925, %v923
        %v976 = vpack.c.b16 %v926, %v924
        %v977 = vpack.c.b16 %v929, %v927
        %v978 = vpack.c.b16 %v930, %v928
        %v979 = vpack.c.b16 %v933, %v931
        %v980 = vpack.c.b16 %v934, %v932
        %v981 = vpack.c.b16 %v937, %v935
        %v982 = vpack.c.b16 %v938, %v936
        %v983 = vpack.c.b16 %v941, %v939
        %v984 = vpack.c.b16 %v942, %v940
        %v985 = vpack.c.b16 %v945, %v943
        %v986 = vpack.c.b16 %v946, %v944
        %v987 = vpack.c.b16 %v949, %v947
        %v988 = vpack.c.b16 %v950, %v948
        %v989 = vpack.c.b16 %v953, %v951
        %v990 = vpack.c.b16 %v954, %v952
        %v991 = vpack.c.b16 %v957, %v955
        %v992 = vpack.c.b16 %v958, %v956
        %v993 = vpack.c.b16 %v961, %v959
        %v994 = vpack.c.b16 %v962, %v960
        %1027 = vmatprep.subr.bf16.mxu0 %v964
        %1028 = vmatpush1.bf16.msra.mxu0 %v963
        %1029 = vmatprep.subr.bf16.mxu0 %v966
        %1030 = vmatpush1.bf16.msra.mxu0 %v965
        %1031 = vmatprep.subr.bf16.mxu0 %v968
        %1032 = vmatpush1.bf16.msra.mxu0 %v967
        %1033 = vmatprep.subr.bf16.mxu0 %v970
        %1034 = vmatpush1.bf16.msra.mxu0 %v969
        %1035 = vmatprep.subr.bf16.mxu0 %v972
        %1036 = vmatpush1.bf16.msra.mxu0 %v971
        %1037 = vmatprep.subr.bf16.mxu0 %v974
        %1038 = vmatpush1.bf16.msra.mxu0 %v973
        %1039 = vmatprep.subr.bf16.mxu0 %v976
        %1040 = vmatpush1.bf16.msra.mxu0 %v975
        %1041 = vmatprep.subr.bf16.mxu0 %v978
        %1042 = vmatpush1.bf16.msra.mxu0 %v977
        %1043 = vmatprep.subr.bf16.mxu0 %v980
        %1044 = vmatpush1.bf16.msra.mxu0 %v979
        %1045 = vmatprep.subr.bf16.mxu0 %v982
        %1046 = vmatpush1.bf16.msra.mxu0 %v981
        %1047 = vmatprep.subr.bf16.mxu0 %v984
        %1048 = vmatpush1.bf16.msra.mxu0 %v983
        %1049 = vmatprep.subr.bf16.mxu0 %v986
        %1050 = vmatpush1.bf16.msra.mxu0 %v985
        %1051 = vmatprep.subr.bf16.mxu0 %v988
        %1052 = vmatpush1.bf16.msra.mxu0 %v987
        %1053 = vmatprep.subr.bf16.mxu0 %v990
        %1054 = vmatpush1.bf16.msra.mxu0 %v989
        %1055 = vmatprep.subr.bf16.mxu0 %v992
        %1056 = vmatpush1.bf16.msra.mxu0 %v991
        %1057 = vmatprep.subr.bf16.mxu0 %v994
        %1058 = vmatpush1.bf16.msra.mxu0 %v993
        %1059 = vmatprep.mubr.bf16.mxu0 %v449
        %1060 = vmatmul.mubr.bf16.gmra.mrb[0].mxu0 %v448
        %v1061 = vpop.f32.mrb[0].mxu0
        %v1062 = vadd.f32 %v782, %v1061
        %v1063 = vpop.f32.mrb[0].mxu0
        %v1064 = vadd.f32 %v784, %v1063
        %v1065 = vpop.f32.mrb[0].mxu0
        %v1066 = vadd.f32 %v786, %v1065
        %v1067 = vpop.f32.mrb[0].mxu0
        %v1068 = vadd.f32 %v788, %v1067
        %1069 = vmatprep.mubr.bf16.mxu0 %v451
        %1070 = vmatmul.mubr.bf16.gmra.mrb[0].mxu0 %v450
        %v1071 = vpop.f32.mrb[0].mxu0
        %v1072 = vadd.f32 %v792, %v1071
        %v1073 = vpop.f32.mrb[0].mxu0
        %v1074 = vadd.f32 %v794, %v1073
        %v1075 = vpop.f32.mrb[0].mxu0
        %v1076 = vadd.f32 %v796, %v1075
        %v1077 = vpop.f32.mrb[0].mxu0
        %v1078 = vadd.f32 %v798, %v1077
        %1079 = vmatprep.mubr.bf16.mxu0 %v453
        %1080 = vmatmul.mubr.bf16.gmra.mrb[0].mxu0 %v452
        %v1081 = vpop.f32.mrb[0].mxu0
        %v1082 = vadd.f32 %v802, %v1081
        %v1083 = vpop.f32.mrb[0].mxu0
        %v1084 = vadd.f32 %v804, %v1083
        %v1085 = vpop.f32.mrb[0].mxu0
        %v1086 = vadd.f32 %v806, %v1085
        %v1087 = vpop.f32.mrb[0].mxu0
        %v1088 = vadd.f32 %v808, %v1087
        %1089 = vmatprep.mubr.bf16.mxu0 %v455
        %1090 = vmatmul.mubr.bf16.gmra.mrb[0].mxu0 %v454
        %v1091 = vpop.f32.mrb[0].mxu0
        %v1092 = vadd.f32 %v812, %v1091
        %v1093 = vpop.f32.mrb[0].mxu0
        %v1094 = vadd.f32 %v814, %v1093
        %v1095 = vpop.f32.mrb[0].mxu0
        %v1096 = vadd.f32 %v816, %v1095
        %v1097 = vpop.f32.mrb[0].mxu0
        %v1098 = vadd.f32 %v818, %v1097
        %1099 = vmatprep.mubr.bf16.mxu0 %v457
        %1100 = vmatmul.mubr.bf16.gmra.mrb[0].mxu0 %v456
        %v1101 = vpop.f32.mrb[0].mxu0
        %v1102 = vadd.f32 %v822, %v1101
        %v1103 = vpop.f32.mrb[0].mxu0
        %v1104 = vadd.f32 %v824, %v1103
        %v1105 = vpop.f32.mrb[0].mxu0
        %v1106 = vadd.f32 %v826, %v1105
        %v1107 = vpop.f32.mrb[0].mxu0
        %v1108 = vadd.f32 %v828, %v1107
        %1109 = vmatprep.mubr.bf16.mxu0 %v459
        %1110 = vmatmul.mubr.bf16.gmra.mrb[0].mxu0 %v458
        %v1111 = vpop.f32.mrb[0].mxu0
        %v1112 = vadd.f32 %v832, %v1111
        %v1113 = vpop.f32.mrb[0].mxu0
        %v1114 = vadd.f32 %v834, %v1113
        %v1115 = vpop.f32.mrb[0].mxu0
        %v1116 = vadd.f32 %v836, %v1115
        %v1117 = vpop.f32.mrb[0].mxu0
        %v1118 = vadd.f32 %v838, %v1117
        %1119 = vmatprep.mubr.bf16.mxu0 %v852
        %1120 = vmatmul.mubr.bf16.gmra.mrb[0].mxu0 %v851
        %v1121 = vpop.f32.mrb[0].mxu0
        %v1122 = vadd.f32 %v842, %v1121
        %v1123 = vpop.f32.mrb[0].mxu0
        %v1124 = vadd.f32 %v844, %v1123
        %v1125 = vpop.f32.mrb[0].mxu0
        %v1126 = vpop.f32.mrb[0].mxu0
        %1127 = vdwg.mxu0
        %v1128 = vld [vmem:[%s279] sm:$0xee]
        %s1129 = scalar_lea.vmem [#allocation5], 512
        %v1130 = vld [vmem:[%s1129] sm:$0xff]
        %v1131 = vld [vmem:[%s1129 + $0x8] sm:$0xff]
        %v1132 = vld [vmem:[%s1129 + $0x10] sm:$0xff]
        %v1133 = vld [vmem:[%s1129 + $0x18] sm:$0xff]
        %v1134 = vld [vmem:[%s1129 + $0x20] sm:$0xff]
        %v1135 = vld [vmem:[%s1129 + $0x28] sm:$0xff]
        %v1136 = vld [vmem:[%s1129 + $0x30] sm:$0xff]
        %v1137 = vld [vmem:[%s1129 + $0x38] sm:$0xff]
        %v1138 = vld [vmem:[%s1129 + $0x40] sm:$0xff]
        %v1139 = vld [vmem:[%s1129 + $0x48] sm:$0xff]
        %v1140 = vld [vmem:[%s1129 + $0x50] sm:$0xff]
        %v1141 = vld [vmem:[%s1129 + $0x58] sm:$0xff]
        %v1142 = vld [vmem:[%s1129 + $0x60] sm:$0xff]
        %v1143 = vld [vmem:[%s1129 + $0x68] sm:$0xff]
        %v1144 = vld [vmem:[%s1129 + $0x70] sm:$0xff]
        %v1145 = vld [vmem:[%s1129 + $0x78] sm:$0xff]
        %v1146 = vld [vmem:[%s1129 + $0x80] sm:$0xff]
        %v1147 = vld [vmem:[%s1129 + $0x88] sm:$0xff]
        %v1148 = vld [vmem:[%s1129 + $0x90] sm:$0xff]
        %v1149 = vld [vmem:[%s1129 + $0x98] sm:$0xff]
        %v1150 = vld [vmem:[%s1129 + $0xa0] sm:$0xff]
        %v1151 = vld [vmem:[%s1129 + $0xa8] sm:$0xff]
        %v1152 = vld [vmem:[%s1129 + $0xb0] sm:$0xff]
        %v1153 = vld [vmem:[%s1129 + $0xb8] sm:$0xff]
        %v1154 = vld [vmem:[%s1129 + $0xc0] sm:$0xff]
        %v1155 = vld [vmem:[%s1129 + $0xc8] sm:$0xff]
        %v1156 = vld [vmem:[%s1129 + $0xd0] sm:$0xff]
        %v1157 = vld [vmem:[%s1129 + $0xd8] sm:$0xff]
        %v1158 = vld [vmem:[%s1129 + $0xe0] sm:$0xff]
        %v1159 = vld [vmem:[%s1129 + $0xe8] sm:$0xff]
        %v1160 = vld [vmem:[%s1129 + $0xf0] sm:$0xff]
        %v1161 = vld [vmem:[%s1129 + $0xf8] sm:$0xff]
        %v1163 = vunpack.c.l.b16 %v1128
        %v1164 = vunpack.c.h.b16 %v1128
        %v1165 = vpack.c.b16 %v424, %v1163
        %v1166 = vpack.c.b16 %v425, %v1164
        %vm1167 = vcmask 1046528
        %v1168 = vrot.slane %v1165, 1
        %v1169 = vrot.slane %v450, 1
        %v1170 = vsel %vm1167, %v1168, %v1169
        %v1171 = vrot.slane %v1166, 1
        %v1172 = vrot.slane %v451, 1
        %v1173 = vsel %vm1167, %v1171, %v1172
        %v1174 = vrot.slane %v452, 1
        %v1175 = vsel %vm1167, %v1169, %v1174
        %v1176 = vrot.slane %v453, 1
        %v1177 = vsel %vm1167, %v1172, %v1176
        %v1178 = vrot.slane %v454, 1
        %v1179 = vsel %vm1167, %v1174, %v1178
        %v1180 = vrot.slane %v455, 1
        %v1181 = vsel %vm1167, %v1176, %v1180
        %v1182 = vrot.slane %v456, 1
        %v1183 = vsel %vm1167, %v1178, %v1182
        %v1184 = vrot.slane %v457, 1
        %v1185 = vsel %vm1167, %v1180, %v1184
        %v1186 = vrot.slane %v458, 1
        %v1187 = vsel %vm1167, %v1182, %v1186
        %v1188 = vrot.slane %v459, 1
        %v1189 = vsel %vm1167, %v1184, %v1188
        %v1190 = vrot.slane %v460, 1
        %v1191 = vsel %vm1167, %v1186, %v1190
        %v1192 = vrot.slane %v461, 1
        %v1193 = vsel %vm1167, %v1188, %v1192
        %v1240 = vunpack.c.l.b16 %v1130
        %v1241 = vunpack.c.h.b16 %v1130
        %v1242 = vunpack.c.l.b16 %v1131
        %v1243 = vunpack.c.h.b16 %v1131
        %v1244 = vunpack.c.l.b16 %v1132
        %v1245 = vunpack.c.h.b16 %v1132
        %v1246 = vunpack.c.l.b16 %v1133
        %v1247 = vunpack.c.h.b16 %v1133
        %v1248 = vunpack.c.l.b16 %v1134
        %v1249 = vunpack.c.h.b16 %v1134
        %v1250 = vunpack.c.l.b16 %v1135
        %v1251 = vunpack.c.h.b16 %v1135
        %v1252 = vunpack.c.l.b16 %v1136
        %v1253 = vunpack.c.h.b16 %v1136
        %v1254 = vunpack.c.l.b16 %v1137
        %v1255 = vunpack.c.h.b16 %v1137
        %v1256 = vunpack.c.l.b16 %v1138
        %v1257 = vunpack.c.h.b16 %v1138
        %v1258 = vunpack.c.l.b16 %v1139
        %v1259 = vunpack.c.h.b16 %v1139
        %v1260 = vunpack.c.l.b16 %v1140
        %v1261 = vunpack.c.h.b16 %v1140
        %v1262 = vunpack.c.l.b16 %v1141
        %v1263 = vunpack.c.h.b16 %v1141
        %v1264 = vunpack.c.l.b16 %v1142
        %v1265 = vunpack.c.h.b16 %v1142
        %v1266 = vunpack.c.l.b16 %v1143
        %v1267 = vunpack.c.h.b16 %v1143
        %v1268 = vunpack.c.l.b16 %v1144
        %v1269 = vunpack.c.h.b16 %v1144
        %v1270 = vunpack.c.l.b16 %v1145
        %v1271 = vunpack.c.h.b16 %v1145
        %v1272 = vunpack.c.l.b16 %v1146
        %v1273 = vunpack.c.h.b16 %v1146
        %v1274 = vunpack.c.l.b16 %v1147
        %v1275 = vunpack.c.h.b16 %v1147
        %v1276 = vunpack.c.l.b16 %v1148
        %v1277 = vunpack.c.h.b16 %v1148
        %v1278 = vunpack.c.l.b16 %v1149
        %v1279 = vunpack.c.h.b16 %v1149
        %v1280 = vunpack.c.l.b16 %v1150
        %v1281 = vunpack.c.h.b16 %v1150
        %v1282 = vunpack.c.l.b16 %v1151
        %v1283 = vunpack.c.h.b16 %v1151
        %v1284 = vunpack.c.l.b16 %v1152
        %v1285 = vunpack.c.h.b16 %v1152
        %v1286 = vunpack.c.l.b16 %v1153
        %v1287 = vunpack.c.h.b16 %v1153
        %v1288 = vunpack.c.l.b16 %v1154
        %v1289 = vunpack.c.h.b16 %v1154
        %v1290 = vunpack.c.l.b16 %v1155
        %v1291 = vunpack.c.h.b16 %v1155
        %v1292 = vunpack.c.l.b16 %v1156
        %v1293 = vunpack.c.h.b16 %v1156
        %v1294 = vunpack.c.l.b16 %v1157
        %v1295 = vunpack.c.h.b16 %v1157
        %v1296 = vunpack.c.l.b16 %v1158
        %v1297 = vunpack.c.h.b16 %v1158
        %v1298 = vunpack.c.l.b16 %v1159
        %v1299 = vunpack.c.h.b16 %v1159
        %v1300 = vunpack.c.l.b16 %v1160
        %v1301 = vunpack.c.h.b16 %v1160
        %v1302 = vunpack.c.l.b16 %v1161
        %v1303 = vunpack.c.h.b16 %v1161
        %v1304 = vpack.c.b16 %v1242, %v1240
        %v1305 = vpack.c.b16 %v1243, %v1241
        %v1306 = vpack.c.b16 %v1246, %v1244
        %v1307 = vpack.c.b16 %v1247, %v1245
        %v1308 = vpack.c.b16 %v1250, %v1248
        %v1309 = vpack.c.b16 %v1251, %v1249
        %v1310 = vpack.c.b16 %v1254, %v1252
        %v1311 = vpack.c.b16 %v1255, %v1253
        %v1312 = vpack.c.b16 %v1258, %v1256
        %v1313 = vpack.c.b16 %v1259, %v1257
        %v1314 = vpack.c.b16 %v1262, %v1260
        %v1315 = vpack.c.b16 %v1263, %v1261
        %v1316 = vpack.c.b16 %v1266, %v1264
        %v1317 = vpack.c.b16 %v1267, %v1265
        %v1318 = vpack.c.b16 %v1270, %v1268
        %v1319 = vpack.c.b16 %v1271, %v1269
        %v1320 = vpack.c.b16 %v1274, %v1272
        %v1321 = vpack.c.b16 %v1275, %v1273
        %v1322 = vpack.c.b16 %v1278, %v1276
        %v1323 = vpack.c.b16 %v1279, %v1277
        %v1324 = vpack.c.b16 %v1282, %v1280
        %v1325 = vpack.c.b16 %v1283, %v1281
        %v1326 = vpack.c.b16 %v1286, %v1284
        %v1327 = vpack.c.b16 %v1287, %v1285
        %v1328 = vpack.c.b16 %v1290, %v1288
        %v1329 = vpack.c.b16 %v1291, %v1289
        %v1330 = vpack.c.b16 %v1294, %v1292
        %v1331 = vpack.c.b16 %v1295, %v1293
        %v1332 = vpack.c.b16 %v1298, %v1296
        %v1333 = vpack.c.b16 %v1299, %v1297
        %v1334 = vpack.c.b16 %v1302, %v1300
        %v1335 = vpack.c.b16 %v1303, %v1301
        %1368 = vmatprep.subr.bf16.mxu0 %v1305
        %1369 = vmatpush1.bf16.msra.mxu0 %v1304
        %1370 = vmatprep.subr.bf16.mxu0 %v1307
        %1371 = vmatpush1.bf16.msra.mxu0 %v1306
        %1372 = vmatprep.subr.bf16.mxu0 %v1309
        %1373 = vmatpush1.bf16.msra.mxu0 %v1308
        %1374 = vmatprep.subr.bf16.mxu0 %v1311
        %1375 = vmatpush1.bf16.msra.mxu0 %v1310
        %1376 = vmatprep.subr.bf16.mxu0 %v1313
        %1377 = vmatpush1.bf16.msra.mxu0 %v1312
        %1378 = vmatprep.subr.bf16.mxu0 %v1315
        %1379 = vmatpush1.bf16.msra.mxu0 %v1314
        %1380 = vmatprep.subr.bf16.mxu0 %v1317
        %1381 = vmatpush1.bf16.msra.mxu0 %v1316
        %1382 = vmatprep.subr.bf16.mxu0 %v1319
        %1383 = vmatpush1.bf16.msra.mxu0 %v1318
        %1384 = vmatprep.subr.bf16.mxu0 %v1321
        %1385 = vmatpush1.bf16.msra.mxu0 %v1320
        %1386 = vmatprep.subr.bf16.mxu0 %v1323
        %1387 = vmatpush1.bf16.msra.mxu0 %v1322
        %1388 = vmatprep.subr.bf16.mxu0 %v1325
        %1389 = vmatpush1.bf16.msra.mxu0 %v1324
        %1390 = vmatprep.subr.bf16.mxu0 %v1327
        %1391 = vmatpush1.bf16.msra.mxu0 %v1326
        %1392 = vmatprep.subr.bf16.mxu0 %v1329
        %1393 = vmatpush1.bf16.msra.mxu0 %v1328
        %1394 = vmatprep.subr.bf16.mxu0 %v1331
        %1395 = vmatpush1.bf16.msra.mxu0 %v1330
        %1396 = vmatprep.subr.bf16.mxu0 %v1333
        %1397 = vmatpush1.bf16.msra.mxu0 %v1332
        %1398 = vmatprep.subr.bf16.mxu0 %v1335
        %1399 = vmatpush1.bf16.msra.mxu0 %v1334
        %1400 = vmatprep.mubr.bf16.mxu0 %v1173
        %1401 = vmatmul.mubr.bf16.gmra.mrb[0].mxu0 %v1170
        %v1402 = vpop.f32.mrb[0].mxu0
        %v1403 = vadd.f32 0.0, %v1402
        %v1404 = vpop.f32.mrb[0].mxu0
        %v1405 = vadd.f32 0.0, %v1404
        %v1406 = vpop.f32.mrb[0].mxu0
        %v1407 = vadd.f32 0.0, %v1406
        %v1408 = vpop.f32.mrb[0].mxu0
        %v1409 = vadd.f32 0.0, %v1408
        %1410 = vmatprep.mubr.bf16.mxu0 %v1177
        %1411 = vmatmul.mubr.bf16.gmra.mrb[0].mxu0 %v1175
        %v1412 = vpop.f32.mrb[0].mxu0
        %v1413 = vadd.f32 0.0, %v1412
        %v1414 = vpop.f32.mrb[0].mxu0
        %v1415 = vadd.f32 0.0, %v1414
        %v1416 = vpop.f32.mrb[0].mxu0
        %v1417 = vadd.f32 0.0, %v1416
        %v1418 = vpop.f32.mrb[0].mxu0
        %v1419 = vadd.f32 0.0, %v1418
        %1420 = vmatprep.mubr.bf16.mxu0 %v1181
        %1421 = vmatmul.mubr.bf16.gmra.mrb[0].mxu0 %v1179
        %v1422 = vpop.f32.mrb[0].mxu0
        %v1423 = vadd.f32 0.0, %v1422
        %v1424 = vpop.f32.mrb[0].mxu0
        %v1425 = vadd.f32 0.0, %v1424
        %v1426 = vpop.f32.mrb[0].mxu0
        %v1427 = vadd.f32 0.0, %v1426
        %v1428 = vpop.f32.mrb[0].mxu0
        %v1429 = vadd.f32 0.0, %v1428
        %1430 = vmatprep.mubr.bf16.mxu0 %v1185
        %1431 = vmatmul.mubr.bf16.gmra.mrb[0].mxu0 %v1183
        %v1432 = vpop.f32.mrb[0].mxu0
        %v1433 = vadd.f32 0.0, %v1432
        %v1434 = vpop.f32.mrb[0].mxu0
        %v1435 = vadd.f32 0.0, %v1434
        %v1436 = vpop.f32.mrb[0].mxu0
        %v1437 = vadd.f32 0.0, %v1436
        %v1438 = vpop.f32.mrb[0].mxu0
        %v1439 = vadd.f32 0.0, %v1438
        %1440 = vmatprep.mubr.bf16.mxu0 %v1189
        %1441 = vmatmul.mubr.bf16.gmra.mrb[0].mxu0 %v1187
        %v1442 = vpop.f32.mrb[0].mxu0
        %v1443 = vadd.f32 0.0, %v1442
        %v1444 = vpop.f32.mrb[0].mxu0
        %v1445 = vadd.f32 0.0, %v1444
        %v1446 = vpop.f32.mrb[0].mxu0
        %v1447 = vadd.f32 0.0, %v1446
        %v1448 = vpop.f32.mrb[0].mxu0
        %v1449 = vadd.f32 0.0, %v1448
        %1450 = vmatprep.mubr.bf16.mxu0 %v1193
        %1451 = vmatmul.mubr.bf16.gmra.mrb[0].mxu0 %v1191
        %v1452 = vpop.f32.mrb[0].mxu0
        %v1453 = vadd.f32 0.0, %v1452
        %v1454 = vpop.f32.mrb[0].mxu0
        %v1455 = vadd.f32 0.0, %v1454
        %v1456 = vpop.f32.mrb[0].mxu0
        %v1457 = vadd.f32 0.0, %v1456
        %v1458 = vpop.f32.mrb[0].mxu0
        %v1459 = vadd.f32 0.0, %v1458
        %1460 = vmatprep.mubr.bf16.mxu0 %v1192
        %1461 = vmatmul.mubr.bf16.gmra.mrb[0].mxu0 %v1190
        %v1462 = vpop.f32.mrb[0].mxu0
        %v1463 = vadd.f32 0.0, %v1462
        %v1464 = vpop.f32.mrb[0].mxu0
        %v1465 = vadd.f32 0.0, %v1464
        %v1466 = vpop.f32.mrb[0].mxu0
        %v1467 = vpop.f32.mrb[0].mxu0
        %1468 = vdwg.mxu0
        %v1469 = vadd.f32 %v1062, %v1403
        %v1470 = vadd.f32 %v1064, %v1405
        %v1471 = vadd.f32 %v1066, %v1407
        %v1472 = vadd.f32 %v1068, %v1409
        %v1473 = vadd.f32 %v1072, %v1413
        %v1474 = vadd.f32 %v1074, %v1415
        %v1475 = vadd.f32 %v1076, %v1417
        %v1476 = vadd.f32 %v1078, %v1419
        %v1477 = vadd.f32 %v1082, %v1423
        %v1478 = vadd.f32 %v1084, %v1425
        %v1479 = vadd.f32 %v1086, %v1427
        %v1480 = vadd.f32 %v1088, %v1429
        %v1481 = vadd.f32 %v1092, %v1433
        %v1482 = vadd.f32 %v1094, %v1435
        %v1483 = vadd.f32 %v1096, %v1437
        %v1484 = vadd.f32 %v1098, %v1439
        %v1485 = vadd.f32 %v1102, %v1443
        %v1486 = vadd.f32 %v1104, %v1445
        %v1487 = vadd.f32 %v1106, %v1447
        %v1488 = vadd.f32 %v1108, %v1449
        %v1489 = vadd.f32 %v1112, %v1453
        %v1490 = vadd.f32 %v1114, %v1455
        %v1491 = vadd.f32 %v1116, %v1457
        %v1492 = vadd.f32 %v1118, %v1459
        %v1493 = vadd.f32 %v1122, %v1463
        %v1494 = vadd.f32 %v1124, %v1465
        %v1495 = vld [vmem:[%s279 + $0x8] sm:$0xee]
        %v1496 = vld [vmem:[%s279 + $0x10] sm:$0xff]
        %v1497 = vld [vmem:[%s279 + $0x18] sm:$0xff]
        %v1498 = vld [vmem:[%s279 + $0x20] sm:$0xff]
        %v1499 = vld [vmem:[%s279 + $0x28] sm:$0xff]
        %v1500 = vld [vmem:[%s279 + $0x30] sm:$0xff]
        %v1501 = vld [vmem:[%s279 + $0x38] sm:$0xff]
        %v1502 = vld [vmem:[%s279 + $0x40] sm:$0xff]
        %v1503 = vld [vmem:[%s279 + $0x48] sm:$0xff]
        %v1504 = vld [vmem:[%s279 + $0x50] sm:$0xff]
        %v1505 = vld [vmem:[%s279 + $0x58] sm:$0xff]
        %v1506 = vld [vmem:[%s279 + $0x60] sm:$0xff]
        %v1507 = vld [vmem:[%s279 + $0x68] sm:$0x77]
        %s1508 = scalar_lea.vmem [#allocation5], 768
        %v1509 = vld [vmem:[%s1508] sm:$0xff]
        %v1510 = vld [vmem:[%s1508 + $0x8] sm:$0xff]
        %v1511 = vld [vmem:[%s1508 + $0x10] sm:$0xff]
        %v1512 = vld [vmem:[%s1508 + $0x18] sm:$0xff]
        %v1513 = vld [vmem:[%s1508 + $0x20] sm:$0xff]
        %v1514 = vld [vmem:[%s1508 + $0x28] sm:$0xff]
        %v1515 = vld [vmem:[%s1508 + $0x30] sm:$0xff]
        %v1516 = vld [vmem:[%s1508 + $0x38] sm:$0xff]
        %v1517 = vld [vmem:[%s1508 + $0x40] sm:$0xff]
        %v1518 = vld [vmem:[%s1508 + $0x48] sm:$0xff]
        %v1519 = vld [vmem:[%s1508 + $0x50] sm:$0xff]
        %v1520 = vld [vmem:[%s1508 + $0x58] sm:$0xff]
        %v1521 = vld [vmem:[%s1508 + $0x60] sm:$0xff]
        %v1522 = vld [vmem:[%s1508 + $0x68] sm:$0xff]
        %v1523 = vld [vmem:[%s1508 + $0x70] sm:$0xff]
        %v1524 = vld [vmem:[%s1508 + $0x78] sm:$0xff]
        %v1525 = vld [vmem:[%s1508 + $0x80] sm:$0xff]
        %v1526 = vld [vmem:[%s1508 + $0x88] sm:$0xff]
        %v1527 = vld [vmem:[%s1508 + $0x90] sm:$0xff]
        %v1528 = vld [vmem:[%s1508 + $0x98] sm:$0xff]
        %v1529 = vld [vmem:[%s1508 + $0xa0] sm:$0xff]
        %v1530 = vld [vmem:[%s1508 + $0xa8] sm:$0xff]
        %v1531 = vld [vmem:[%s1508 + $0xb0] sm:$0xff]
        %v1532 = vld [vmem:[%s1508 + $0xb8] sm:$0xff]
        %v1533 = vld [vmem:[%s1508 + $0xc0] sm:$0xff]
        %v1534 = vld [vmem:[%s1508 + $0xc8] sm:$0xff]
        %v1535 = vld [vmem:[%s1508 + $0xd0] sm:$0xff]
        %v1536 = vld [vmem:[%s1508 + $0xd8] sm:$0xff]
        %v1537 = vld [vmem:[%s1508 + $0xe0] sm:$0xff]
        %v1538 = vld [vmem:[%s1508 + $0xe8] sm:$0xff]
        %v1539 = vld [vmem:[%s1508 + $0xf0] sm:$0xff]
        %v1540 = vld [vmem:[%s1508 + $0xf8] sm:$0xff]
        %v1554 = vunpack.c.l.b16 %v1495
        %v1555 = vunpack.c.h.b16 %v1495
        %v1556 = vunpack.c.l.b16 %v1496
        %v1557 = vunpack.c.h.b16 %v1496
        %v1558 = vunpack.c.l.b16 %v1497
        %v1559 = vunpack.c.h.b16 %v1497
        %v1560 = vunpack.c.l.b16 %v1498
        %v1561 = vunpack.c.h.b16 %v1498
        %v1562 = vunpack.c.l.b16 %v1499
        %v1563 = vunpack.c.h.b16 %v1499
        %v1564 = vunpack.c.l.b16 %v1500
        %v1565 = vunpack.c.h.b16 %v1500
        %v1566 = vunpack.c.l.b16 %v1501
        %v1567 = vunpack.c.h.b16 %v1501
        %v1568 = vunpack.c.l.b16 %v1502
        %v1569 = vunpack.c.h.b16 %v1502
        %v1570 = vunpack.c.l.b16 %v1503
        %v1571 = vunpack.c.h.b16 %v1503
        %v1572 = vunpack.c.l.b16 %v1504
        %v1573 = vunpack.c.h.b16 %v1504
        %v1574 = vunpack.c.l.b16 %v1505
        %v1575 = vunpack.c.h.b16 %v1505
        %v1576 = vunpack.c.l.b16 %v1506
        %v1577 = vunpack.c.h.b16 %v1506
        %v1578 = vunpack.c.l.b16 %v1507
        %v1579 = vunpack.c.h.b16 %v1507
        %v1580 = vpack.c.b16 %v1556, %v1554
        %v1581 = vpack.c.b16 %v1557, %v1555
        %v1582 = vpack.c.b16 %v1560, %v1558
        %v1583 = vpack.c.b16 %v1561, %v1559
        %v1584 = vpack.c.b16 %v1564, %v1562
        %v1585 = vpack.c.b16 %v1565, %v1563
        %v1586 = vpack.c.b16 %v1568, %v1566
        %v1587 = vpack.c.b16 %v1569, %v1567
        %v1588 = vpack.c.b16 %v1572, %v1570
        %v1589 = vpack.c.b16 %v1573, %v1571
        %v1590 = vpack.c.b16 %v1576, %v1574
        %v1591 = vpack.c.b16 %v1577, %v1575
        %v1592 = vpack.c.b16 %v1578, %v1578
        %v1593 = vpack.c.b16 %v1579, %v1579
        %v1594 = vrot.slane %v1580, 1
        %v1595 = vrot.slane %v1582, 1
        %v1596 = vsel %vm1167, %v1594, %v1595
        %v1597 = vrot.slane %v1581, 1
        %v1598 = vrot.slane %v1583, 1
        %v1599 = vsel %vm1167, %v1597, %v1598
        %v1600 = vrot.slane %v1584, 1
        %v1601 = vsel %vm1167, %v1595, %v1600
        %v1602 = vrot.slane %v1585, 1
        %v1603 = vsel %vm1167, %v1598, %v1602
        %v1604 = vrot.slane %v1586, 1
        %v1605 = vsel %vm1167, %v1600, %v1604
        %v1606 = vrot.slane %v1587, 1
        %v1607 = vsel %vm1167, %v1602, %v1606
        %v1608 = vrot.slane %v1588, 1
        %v1609 = vsel %vm1167, %v1604, %v1608
        %v1610 = vrot.slane %v1589, 1
        %v1611 = vsel %vm1167, %v1606, %v1610
        %v1612 = vrot.slane %v1590, 1
        %v1613 = vsel %vm1167, %v1608, %v1612
        %v1614 = vrot.slane %v1591, 1
        %v1615 = vsel %vm1167, %v1610, %v1614
        %v1616 = vrot.slane %v1592, 1
        %v1617 = vsel %vm1167, %v1612, %v1616
        %v1618 = vrot.slane %v1593, 1
        %v1619 = vsel %vm1167, %v1614, %v1618
        %v1666 = vunpack.c.l.b16 %v1509
        %v1667 = vunpack.c.h.b16 %v1509
        %v1668 = vunpack.c.l.b16 %v1510
        %v1669 = vunpack.c.h.b16 %v1510
        %v1670 = vunpack.c.l.b16 %v1511
        %v1671 = vunpack.c.h.b16 %v1511
        %v1672 = vunpack.c.l.b16 %v1512
        %v1673 = vunpack.c.h.b16 %v1512
        %v1674 = vunpack.c.l.b16 %v1513
        %v1675 = vunpack.c.h.b16 %v1513
        %v1676 = vunpack.c.l.b16 %v1514
        %v1677 = vunpack.c.h.b16 %v1514
        %v1678 = vunpack.c.l.b16 %v1515
        %v1679 = vunpack.c.h.b16 %v1515
        %v1680 = vunpack.c.l.b16 %v1516
        %v1681 = vunpack.c.h.b16 %v1516
        %v1682 = vunpack.c.l.b16 %v1517
        %v1683 = vunpack.c.h.b16 %v1517
        %v1684 = vunpack.c.l.b16 %v1518
        %v1685 = vunpack.c.h.b16 %v1518
        %v1686 = vunpack.c.l.b16 %v1519
        %v1687 = vunpack.c.h.b16 %v1519
        %v1688 = vunpack.c.l.b16 %v1520
        %v1689 = vunpack.c.h.b16 %v1520
        %v1690 = vunpack.c.l.b16 %v1521
        %v1691 = vunpack.c.h.b16 %v1521
        %v1692 = vunpack.c.l.b16 %v1522
        %v1693 = vunpack.c.h.b16 %v1522
        %v1694 = vunpack.c.l.b16 %v1523
        %v1695 = vunpack.c.h.b16 %v1523
        %v1696 = vunpack.c.l.b16 %v1524
        %v1697 = vunpack.c.h.b16 %v1524
        %v1698 = vunpack.c.l.b16 %v1525
        %v1699 = vunpack.c.h.b16 %v1525
        %v1700 = vunpack.c.l.b16 %v1526
        %v1701 = vunpack.c.h.b16 %v1526
        %v1702 = vunpack.c.l.b16 %v1527
        %v1703 = vunpack.c.h.b16 %v1527
        %v1704 = vunpack.c.l.b16 %v1528
        %v1705 = vunpack.c.h.b16 %v1528
        %v1706 = vunpack.c.l.b16 %v1529
        %v1707 = vunpack.c.h.b16 %v1529
        %v1708 = vunpack.c.l.b16 %v1530
        %v1709 = vunpack.c.h.b16 %v1530
        %v1710 = vunpack.c.l.b16 %v1531
        %v1711 = vunpack.c.h.b16 %v1531
        %v1712 = vunpack.c.l.b16 %v1532
        %v1713 = vunpack.c.h.b16 %v1532
        %v1714 = vunpack.c.l.b16 %v1533
        %v1715 = vunpack.c.h.b16 %v1533
        %v1716 = vunpack.c.l.b16 %v1534
        %v1717 = vunpack.c.h.b16 %v1534
        %v1718 = vunpack.c.l.b16 %v1535
        %v1719 = vunpack.c.h.b16 %v1535
        %v1720 = vunpack.c.l.b16 %v1536
        %v1721 = vunpack.c.h.b16 %v1536
        %v1722 = vunpack.c.l.b16 %v1537
        %v1723 = vunpack.c.h.b16 %v1537
        %v1724 = vunpack.c.l.b16 %v1538
        %v1725 = vunpack.c.h.b16 %v1538
        %v1726 = vunpack.c.l.b16 %v1539
        %v1727 = vunpack.c.h.b16 %v1539
        %v1728 = vunpack.c.l.b16 %v1540
        %v1729 = vunpack.c.h.b16 %v1540
        %v1730 = vpack.c.b16 %v1668, %v1666
        %v1731 = vpack.c.b16 %v1669, %v1667
        %v1732 = vpack.c.b16 %v1672, %v1670
        %v1733 = vpack.c.b16 %v1673, %v1671
        %v1734 = vpack.c.b16 %v1676, %v1674
        %v1735 = vpack.c.b16 %v1677, %v1675
        %v1736 = vpack.c.b16 %v1680, %v1678
        %v1737 = vpack.c.b16 %v1681, %v1679
        %v1738 = vpack.c.b16 %v1684, %v1682
        %v1739 = vpack.c.b16 %v1685, %v1683
        %v1740 = vpack.c.b16 %v1688, %v1686
        %v1741 = vpack.c.b16 %v1689, %v1687
        %v1742 = vpack.c.b16 %v1692, %v1690
        %v1743 = vpack.c.b16 %v1693, %v1691
        %v1744 = vpack.c.b16 %v1696, %v1694
        %v1745 = vpack.c.b16 %v1697, %v1695
        %v1746 = vpack.c.b16 %v1700, %v1698
        %v1747 = vpack.c.b16 %v1701, %v1699
        %v1748 = vpack.c.b16 %v1704, %v1702
        %v1749 = vpack.c.b16 %v1705, %v1703
        %v1750 = vpack.c.b16 %v1708, %v1706
        %v1751 = vpack.c.b16 %v1709, %v1707
        %v1752 = vpack.c.b16 %v1712, %v1710
        %v1753 = vpack.c.b16 %v1713, %v1711
        %v1754 = vpack.c.b16 %v1716, %v1714
        %v1755 = vpack.c.b16 %v1717, %v1715
        %v1756 = vpack.c.b16 %v1720, %v1718
        %v1757 = vpack.c.b16 %v1721, %v1719
        %v1758 = vpack.c.b16 %v1724, %v1722
        %v1759 = vpack.c.b16 %v1725, %v1723
        %v1760 = vpack.c.b16 %v1728, %v1726
        %v1761 = vpack.c.b16 %v1729, %v1727
        %1794 = vmatprep.subr.bf16.mxu0 %v1731
        %1795 = vmatpush1.bf16.msra.mxu0 %v1730
        %1796 = vmatprep.subr.bf16.mxu0 %v1733
        %1797 = vmatpush1.bf16.msra.mxu0 %v1732
        %1798 = vmatprep.subr.bf16.mxu0 %v1735
        %1799 = vmatpush1.bf16.msra.mxu0 %v1734
        %1800 = vmatprep.subr.bf16.mxu0 %v1737
        %1801 = vmatpush1.bf16.msra.mxu0 %v1736
        %1802 = vmatprep.subr.bf16.mxu0 %v1739
        %1803 = vmatpush1.bf16.msra.mxu0 %v1738
        %1804 = vmatprep.subr.bf16.mxu0 %v1741
        %1805 = vmatpush1.bf16.msra.mxu0 %v1740
        %1806 = vmatprep.subr.bf16.mxu0 %v1743
        %1807 = vmatpush1.bf16.msra.mxu0 %v1742
        %1808 = vmatprep.subr.bf16.mxu0 %v1745
        %1809 = vmatpush1.bf16.msra.mxu0 %v1744
        %1810 = vmatprep.subr.bf16.mxu0 %v1747
        %1811 = vmatpush1.bf16.msra.mxu0 %v1746
        %1812 = vmatprep.subr.bf16.mxu0 %v1749
        %1813 = vmatpush1.bf16.msra.mxu0 %v1748
        %1814 = vmatprep.subr.bf16.mxu0 %v1751
        %1815 = vmatpush1.bf16.msra.mxu0 %v1750
        %1816 = vmatprep.subr.bf16.mxu0 %v1753
        %1817 = vmatpush1.bf16.msra.mxu0 %v1752
        %1818 = vmatprep.subr.bf16.mxu0 %v1755
        %1819 = vmatpush1.bf16.msra.mxu0 %v1754
        %1820 = vmatprep.subr.bf16.mxu0 %v1757
        %1821 = vmatpush1.bf16.msra.mxu0 %v1756
        %1822 = vmatprep.subr.bf16.mxu0 %v1759
        %1823 = vmatpush1.bf16.msra.mxu0 %v1758
        %1824 = vmatprep.subr.bf16.mxu0 %v1761
        %1825 = vmatpush1.bf16.msra.mxu0 %v1760
        %1826 = vmatprep.mubr.bf16.mxu0 %v1599
        %1827 = vmatmul.mubr.bf16.gmra.mrb[0].mxu0 %v1596
        %v1828 = vpop.f32.mrb[0].mxu0
        %v1829 = vadd.f32 0.0, %v1828
        %v1830 = vpop.f32.mrb[0].mxu0
        %v1831 = vadd.f32 0.0, %v1830
        %v1832 = vpop.f32.mrb[0].mxu0
        %v1833 = vadd.f32 0.0, %v1832
        %v1834 = vpop.f32.mrb[0].mxu0
        %v1835 = vadd.f32 0.0, %v1834
        %1836 = vmatprep.mubr.bf16.mxu0 %v1603
        %1837 = vmatmul.mubr.bf16.gmra.mrb[0].mxu0 %v1601
        %v1838 = vpop.f32.mrb[0].mxu0
        %v1839 = vadd.f32 0.0, %v1838
        %v1840 = vpop.f32.mrb[0].mxu0
        %v1841 = vadd.f32 0.0, %v1840
        %v1842 = vpop.f32.mrb[0].mxu0
        %v1843 = vadd.f32 0.0, %v1842
        %v1844 = vpop.f32.mrb[0].mxu0
        %v1845 = vadd.f32 0.0, %v1844
        %1846 = vmatprep.mubr.bf16.mxu0 %v1607
        %1847 = vmatmul.mubr.bf16.gmra.mrb[0].mxu0 %v1605
        %v1848 = vpop.f32.mrb[0].mxu0
        %v1849 = vadd.f32 0.0, %v1848
        %v1850 = vpop.f32.mrb[0].mxu0
        %v1851 = vadd.f32 0.0, %v1850
        %v1852 = vpop.f32.mrb[0].mxu0
        %v1853 = vadd.f32 0.0, %v1852
        %v1854 = vpop.f32.mrb[0].mxu0
        %v1855 = vadd.f32 0.0, %v1854
        %1856 = vmatprep.mubr.bf16.mxu0 %v1611
        %1857 = vmatmul.mubr.bf16.gmra.mrb[0].mxu0 %v1609
        %v1858 = vpop.f32.mrb[0].mxu0
        %v1859 = vadd.f32 0.0, %v1858
        %v1860 = vpop.f32.mrb[0].mxu0
        %v1861 = vadd.f32 0.0, %v1860
        %v1862 = vpop.f32.mrb[0].mxu0
        %v1863 = vadd.f32 0.0, %v1862
        %v1864 = vpop.f32.mrb[0].mxu0
        %v1865 = vadd.f32 0.0, %v1864
        %1866 = vmatprep.mubr.bf16.mxu0 %v1615
        %1867 = vmatmul.mubr.bf16.gmra.mrb[0].mxu0 %v1613
        %v1868 = vpop.f32.mrb[0].mxu0
        %v1869 = vadd.f32 0.0, %v1868
        %v1870 = vpop.f32.mrb[0].mxu0
        %v1871 = vadd.f32 0.0, %v1870
        %v1872 = vpop.f32.mrb[0].mxu0
        %v1873 = vadd.f32 0.0, %v1872
        %v1874 = vpop.f32.mrb[0].mxu0
        %v1875 = vadd.f32 0.0, %v1874
        %1876 = vmatprep.mubr.bf16.mxu0 %v1619
        %1877 = vmatmul.mubr.bf16.gmra.mrb[0].mxu0 %v1617
        %v1878 = vpop.f32.mrb[0].mxu0
        %v1879 = vadd.f32 0.0, %v1878
        %v1880 = vpop.f32.mrb[0].mxu0
        %v1881 = vadd.f32 0.0, %v1880
        %v1882 = vpop.f32.mrb[0].mxu0
        %v1883 = vadd.f32 0.0, %v1882
        %v1884 = vpop.f32.mrb[0].mxu0
        %v1885 = vadd.f32 0.0, %v1884
        %1886 = vmatprep.mubr.bf16.mxu0 %v1618
        %1887 = vmatmul.mubr.bf16.gmra.mrb[0].mxu0 %v1616
        %v1888 = vpop.f32.mrb[0].mxu0
        %v1889 = vadd.f32 0.0, %v1888
        %v1890 = vpop.f32.mrb[0].mxu0
        %v1891 = vadd.f32 0.0, %v1890
        %v1892 = vpop.f32.mrb[0].mxu0
        %v1893 = vpop.f32.mrb[0].mxu0
        %1894 = vdwg.mxu0
        %v1895 = vadd.f32 %v1469, %v1829
        %v1896 = vadd.f32 %v1470, %v1831
        %v1897 = vadd.f32 %v1471, %v1833
        %v1898 = vadd.f32 %v1472, %v1835
        %v1899 = vadd.f32 %v1473, %v1839
        %v1900 = vadd.f32 %v1474, %v1841
        %v1901 = vadd.f32 %v1475, %v1843
        %v1902 = vadd.f32 %v1476, %v1845
        %v1903 = vadd.f32 %v1477, %v1849
        %v1904 = vadd.f32 %v1478, %v1851
        %v1905 = vadd.f32 %v1479, %v1853
        %v1906 = vadd.f32 %v1480, %v1855
        %v1907 = vadd.f32 %v1481, %v1859
        %v1908 = vadd.f32 %v1482, %v1861
        %v1909 = vadd.f32 %v1483, %v1863
        %v1910 = vadd.f32 %v1484, %v1865
        %v1911 = vadd.f32 %v1485, %v1869
        %v1912 = vadd.f32 %v1486, %v1871
        %v1913 = vadd.f32 %v1487, %v1873
        %v1914 = vadd.f32 %v1488, %v1875
        %v1915 = vadd.f32 %v1489, %v1879
        %v1916 = vadd.f32 %v1490, %v1881
        %v1917 = vadd.f32 %v1491, %v1883
        %v1918 = vadd.f32 %v1492, %v1885
        %v1919 = vadd.f32 %v1493, %v1889
        %v1920 = vadd.f32 %v1494, %v1891
        %v1921 = vld [vmem:[%s279 + $0x68] sm:$0xff]
        %s1922 = scalar_lea.vmem [#allocation5], 1024
        %v1923 = vld [vmem:[%s1922] sm:$0xff]
        %v1924 = vld [vmem:[%s1922 + $0x8] sm:$0xff]
        %v1925 = vld [vmem:[%s1922 + $0x10] sm:$0xff]
        %v1926 = vld [vmem:[%s1922 + $0x18] sm:$0xff]
        %v1927 = vld [vmem:[%s1922 + $0x20] sm:$0xff]
        %v1928 = vld [vmem:[%s1922 + $0x28] sm:$0xff]
        %v1929 = vld [vmem:[%s1922 + $0x30] sm:$0xff]
        %v1930 = vld [vmem:[%s1922 + $0x38] sm:$0xff]
        %v1931 = vld [vmem:[%s1922 + $0x40] sm:$0xff]
        %v1932 = vld [vmem:[%s1922 + $0x48] sm:$0xff]
        %v1933 = vld [vmem:[%s1922 + $0x50] sm:$0xff]
        %v1934 = vld [vmem:[%s1922 + $0x58] sm:$0xff]
        %v1935 = vld [vmem:[%s1922 + $0x60] sm:$0xff]
        %v1936 = vld [vmem:[%s1922 + $0x68] sm:$0xff]
        %v1937 = vld [vmem:[%s1922 + $0x70] sm:$0xff]
        %v1938 = vld [vmem:[%s1922 + $0x78] sm:$0xff]
        %v1939 = vld [vmem:[%s1922 + $0x80] sm:$0xff]
        %v1940 = vld [vmem:[%s1922 + $0x88] sm:$0xff]
        %v1941 = vld [vmem:[%s1922 + $0x90] sm:$0xff]
        %v1942 = vld [vmem:[%s1922 + $0x98] sm:$0xff]
        %v1943 = vld [vmem:[%s1922 + $0xa0] sm:$0xff]
        %v1944 = vld [vmem:[%s1922 + $0xa8] sm:$0xff]
        %v1945 = vld [vmem:[%s1922 + $0xb0] sm:$0xff]
        %v1946 = vld [vmem:[%s1922 + $0xb8] sm:$0xff]
        %v1947 = vld [vmem:[%s1922 + $0xc0] sm:$0xff]
        %v1948 = vld [vmem:[%s1922 + $0xc8] sm:$0xff]
        %v1949 = vld [vmem:[%s1922 + $0xd0] sm:$0xff]
        %v1950 = vld [vmem:[%s1922 + $0xd8] sm:$0xff]
        %v1951 = vld [vmem:[%s1922 + $0xe0] sm:$0xff]
        %v1952 = vld [vmem:[%s1922 + $0xe8] sm:$0xff]
        %v1953 = vld [vmem:[%s1922 + $0xf0] sm:$0xff]
        %v1954 = vld [vmem:[%s1922 + $0xf8] sm:$0xff]
        %v1956 = vunpack.c.l.b16 %v1921
        %v1957 = vunpack.c.h.b16 %v1921
        %v1958 = vpack.c.b16 %v1956, %v1956
        %v1959 = vpack.c.b16 %v1957, %v1957
        %vm1960 = vsmask.f32 6400
        %v1962 = vshrl.u32 %v1580, 16
        %v1964 = vrot.slane %v1962, 1
        %v1965 = vshll.u32 %v1580, 16
        %v1967 = vrot.slane %v1965, 2
        %v1968 = vor.u32 %v1964, %v1967
        %v1970 = vshrl.u32 %v1582, 16
        %v1972 = vrot.slane %v1970, 1
        %v1973 = vshll.u32 %v1582, 16
        %v1975 = vrot.slane %v1973, 2
        %v1976 = vor.u32 %v1972, %v1975
        %v1977 = vsel %vm1960, %v1968, %v1976
        %v1979 = vshrl.u32 %v1581, 16
        %v1981 = vrot.slane %v1979, 1
        %v1982 = vshll.u32 %v1581, 16
        %v1984 = vrot.slane %v1982, 2
        %v1985 = vor.u32 %v1981, %v1984
        %v1987 = vshrl.u32 %v1583, 16
        %v1989 = vrot.slane %v1987, 1
        %v1990 = vshll.u32 %v1583, 16
        %v1992 = vrot.slane %v1990, 2
        %v1993 = vor.u32 %v1989, %v1992
        %v1994 = vsel %vm1960, %v1985, %v1993
        %v1996 = vshrl.u32 %v1584, 16
        %v1998 = vrot.slane %v1996, 1
        %v1999 = vshll.u32 %v1584, 16
        %v2001 = vrot.slane %v1999, 2
        %v2002 = vor.u32 %v1998, %v2001
        %v2003 = vsel %vm1960, %v1976, %v2002
        %v2005 = vshrl.u32 %v1585, 16
        %v2007 = vrot.slane %v2005, 1
        %v2008 = vshll.u32 %v1585, 16
        %v2010 = vrot.slane %v2008, 2
        %v2011 = vor.u32 %v2007, %v2010
        %v2012 = vsel %vm1960, %v1993, %v2011
        %v2014 = vshrl.u32 %v1586, 16
        %v2016 = vrot.slane %v2014, 1
        %v2017 = vshll.u32 %v1586, 16
        %v2019 = vrot.slane %v2017, 2
        %v2020 = vor.u32 %v2016, %v2019
        %v2021 = vsel %vm1960, %v2002, %v2020
        %v2023 = vshrl.u32 %v1587, 16
        %v2025 = vrot.slane %v2023, 1
        %v2026 = vshll.u32 %v1587, 16
        %v2028 = vrot.slane %v2026, 2
        %v2029 = vor.u32 %v2025, %v2028
        %v2030 = vsel %vm1960, %v2011, %v2029
        %v2032 = vshrl.u32 %v1588, 16
        %v2034 = vrot.slane %v2032, 1
        %v2035 = vshll.u32 %v1588, 16
        %v2037 = vrot.slane %v2035, 2
        %v2038 = vor.u32 %v2034, %v2037
        %v2039 = vsel %vm1960, %v2020, %v2038
        %v2041 = vshrl.u32 %v1589, 16
        %v2043 = vrot.slane %v2041, 1
        %v2044 = vshll.u32 %v1589, 16
        %v2046 = vrot.slane %v2044, 2
        %v2047 = vor.u32 %v2043, %v2046
        %v2048 = vsel %vm1960, %v2029, %v2047
        %v2050 = vshrl.u32 %v1590, 16
        %v2052 = vrot.slane %v2050, 1
        %v2053 = vshll.u32 %v1590, 16
        %v2055 = vrot.slane %v2053, 2
        %v2056 = vor.u32 %v2052, %v2055
        %v2057 = vsel %vm1960, %v2038, %v2056
        %v2059 = vshrl.u32 %v1591, 16
        %v2061 = vrot.slane %v2059, 1
        %v2062 = vshll.u32 %v1591, 16
        %v2064 = vrot.slane %v2062, 2
        %v2065 = vor.u32 %v2061, %v2064
        %v2066 = vsel %vm1960, %v2047, %v2065
        %v2068 = vshrl.u32 %v1958, 16
        %v2070 = vrot.slane %v2068, 1
        %v2071 = vshll.u32 %v1958, 16
        %v2073 = vrot.slane %v2071, 2
        %v2074 = vor.u32 %v2070, %v2073
        %v2075 = vsel %vm1960, %v2056, %v2074
        %v2077 = vshrl.u32 %v1959, 16
        %v2079 = vrot.slane %v2077, 1
        %v2080 = vshll.u32 %v1959, 16
        %v2082 = vrot.slane %v2080, 2
        %v2083 = vor.u32 %v2079, %v2082
        %v2084 = vsel %vm1960, %v2065, %v2083
        %v2131 = vunpack.c.l.b16 %v1923
        %v2132 = vunpack.c.h.b16 %v1923
        %v2133 = vunpack.c.l.b16 %v1924
        %v2134 = vunpack.c.h.b16 %v1924
        %v2135 = vunpack.c.l.b16 %v1925
        %v2136 = vunpack.c.h.b16 %v1925
        %v2137 = vunpack.c.l.b16 %v1926
        %v2138 = vunpack.c.h.b16 %v1926
        %v2139 = vunpack.c.l.b16 %v1927
        %v2140 = vunpack.c.h.b16 %v1927
        %v2141 = vunpack.c.l.b16 %v1928
        %v2142 = vunpack.c.h.b16 %v1928
        %v2143 = vunpack.c.l.b16 %v1929
        %v2144 = vunpack.c.h.b16 %v1929
        %v2145 = vunpack.c.l.b16 %v1930
        %v2146 = vunpack.c.h.b16 %v1930
        %v2147 = vunpack.c.l.b16 %v1931
        %v2148 = vunpack.c.h.b16 %v1931
        %v2149 = vunpack.c.l.b16 %v1932
        %v2150 = vunpack.c.h.b16 %v1932
        %v2151 = vunpack.c.l.b16 %v1933
        %v2152 = vunpack.c.h.b16 %v1933
        %v2153 = vunpack.c.l.b16 %v1934
        %v2154 = vunpack.c.h.b16 %v1934
        %v2155 = vunpack.c.l.b16 %v1935
        %v2156 = vunpack.c.h.b16 %v1935
        %v2157 = vunpack.c.l.b16 %v1936
        %v2158 = vunpack.c.h.b16 %v1936
        %v2159 = vunpack.c.l.b16 %v1937
        %v2160 = vunpack.c.h.b16 %v1937
        %v2161 = vunpack.c.l.b16 %v1938
        %v2162 = vunpack.c.h.b16 %v1938
        %v2163 = vunpack.c.l.b16 %v1939
        %v2164 = vunpack.c.h.b16 %v1939
        %v2165 = vunpack.c.l.b16 %v1940
        %v2166 = vunpack.c.h.b16 %v1940
        %v2167 = vunpack.c.l.b16 %v1941
        %v2168 = vunpack.c.h.b16 %v1941
        %v2169 = vunpack.c.l.b16 %v1942
        %v2170 = vunpack.c.h.b16 %v1942
        %v2171 = vunpack.c.l.b16 %v1943
        %v2172 = vunpack.c.h.b16 %v1943
        %v2173 = vunpack.c.l.b16 %v1944
        %v2174 = vunpack.c.h.b16 %v1944
        %v2175 = vunpack.c.l.b16 %v1945
        %v2176 = vunpack.c.h.b16 %v1945
        %v2177 = vunpack.c.l.b16 %v1946
        %v2178 = vunpack.c.h.b16 %v1946
        %v2179 = vunpack.c.l.b16 %v1947
        %v2180 = vunpack.c.h.b16 %v1947
        %v2181 = vunpack.c.l.b16 %v1948
        %v2182 = vunpack.c.h.b16 %v1948
        %v2183 = vunpack.c.l.b16 %v1949
        %v2184 = vunpack.c.h.b16 %v1949
        %v2185 = vunpack.c.l.b16 %v1950
        %v2186 = vunpack.c.h.b16 %v1950
        %v2187 = vunpack.c.l.b16 %v1951
        %v2188 = vunpack.c.h.b16 %v1951
        %v2189 = vunpack.c.l.b16 %v1952
        %v2190 = vunpack.c.h.b16 %v1952
        %v2191 = vunpack.c.l.b16 %v1953
        %v2192 = vunpack.c.h.b16 %v1953
        %v2193 = vunpack.c.l.b16 %v1954
        %v2194 = vunpack.c.h.b16 %v1954
        %v2195 = vpack.c.b16 %v2133, %v2131
        %v2196 = vpack.c.b16 %v2134, %v2132
        %v2197 = vpack.c.b16 %v2137, %v2135
        %v2198 = vpack.c.b16 %v2138, %v2136
        %v2199 = vpack.c.b16 %v2141, %v2139
        %v2200 = vpack.c.b16 %v2142, %v2140
        %v2201 = vpack.c.b16 %v2145, %v2143
        %v2202 = vpack.c.b16 %v2146, %v2144
        %v2203 = vpack.c.b16 %v2149, %v2147
        %v2204 = vpack.c.b16 %v2150, %v2148
        %v2205 = vpack.c.b16 %v2153, %v2151
        %v2206 = vpack.c.b16 %v2154, %v2152
        %v2207 = vpack.c.b16 %v2157, %v2155
        %v2208 = vpack.c.b16 %v2158, %v2156
        %v2209 = vpack.c.b16 %v2161, %v2159
        %v2210 = vpack.c.b16 %v2162, %v2160
        %v2211 = vpack.c.b16 %v2165, %v2163
        %v2212 = vpack.c.b16 %v2166, %v2164
        %v2213 = vpack.c.b16 %v2169, %v2167
        %v2214 = vpack.c.b16 %v2170, %v2168
        %v2215 = vpack.c.b16 %v2173, %v2171
        %v2216 = vpack.c.b16 %v2174, %v2172
        %v2217 = vpack.c.b16 %v2177, %v2175
        %v2218 = vpack.c.b16 %v2178, %v2176
        %v2219 = vpack.c.b16 %v2181, %v2179
        %v2220 = vpack.c.b16 %v2182, %v2180
        %v2221 = vpack.c.b16 %v2185, %v2183
        %v2222 = vpack.c.b16 %v2186, %v2184
        %v2223 = vpack.c.b16 %v2189, %v2187
        %v2224 = vpack.c.b16 %v2190, %v2188
        %v2225 = vpack.c.b16 %v2193, %v2191
        %v2226 = vpack.c.b16 %v2194, %v2192
        %2259 = vmatprep.subr.bf16.mxu0 %v2196
        %2260 = vmatpush1.bf16.msra.mxu0 %v2195
        %2261 = vmatprep.subr.bf16.mxu0 %v2198
        %2262 = vmatpush1.bf16.msra.mxu0 %v2197
        %2263 = vmatprep.subr.bf16.mxu0 %v2200
        %2264 = vmatpush1.bf16.msra.mxu0 %v2199
        %2265 = vmatprep.subr.bf16.mxu0 %v2202
        %2266 = vmatpush1.bf16.msra.mxu0 %v2201
        %2267 = vmatprep.subr.bf16.mxu0 %v2204
        %2268 = vmatpush1.bf16.msra.mxu0 %v2203
        %2269 = vmatprep.subr.bf16.mxu0 %v2206
        %2270 = vmatpush1.bf16.msra.mxu0 %v2205
        %2271 = vmatprep.subr.bf16.mxu0 %v2208
        %2272 = vmatpush1.bf16.msra.mxu0 %v2207
        %2273 = vmatprep.subr.bf16.mxu0 %v2210
        %2274 = vmatpush1.bf16.msra.mxu0 %v2209
        %2275 = vmatprep.subr.bf16.mxu0 %v2212
        %2276 = vmatpush1.bf16.msra.mxu0 %v2211
        %2277 = vmatprep.subr.bf16.mxu0 %v2214
        %2278 = vmatpush1.bf16.msra.mxu0 %v2213
        %2279 = vmatprep.subr.bf16.mxu0 %v2216
        %2280 = vmatpush1.bf16.msra.mxu0 %v2215
        %2281 = vmatprep.subr.bf16.mxu0 %v2218
        %2282 = vmatpush1.bf16.msra.mxu0 %v2217
        %2283 = vmatprep.subr.bf16.mxu0 %v2220
        %2284 = vmatpush1.bf16.msra.mxu0 %v2219
        %2285 = vmatprep.subr.bf16.mxu0 %v2222
        %2286 = vmatpush1.bf16.msra.mxu0 %v2221
        %2287 = vmatprep.subr.bf16.mxu0 %v2224
        %2288 = vmatpush1.bf16.msra.mxu0 %v2223
        %2289 = vmatprep.subr.bf16.mxu0 %v2226
        %2290 = vmatpush1.bf16.msra.mxu0 %v2225
        %2291 = vmatprep.mubr.bf16.mxu0 %v1994
        %2292 = vmatmul.mubr.bf16.gmra.mrb[0].mxu0 %v1977
        %v2293 = vpop.f32.mrb[0].mxu0
        %v2294 = vadd.f32 0.0, %v2293
        %v2295 = vpop.f32.mrb[0].mxu0
        %v2296 = vadd.f32 0.0, %v2295
        %v2297 = vpop.f32.mrb[0].mxu0
        %v2298 = vadd.f32 0.0, %v2297
        %v2299 = vpop.f32.mrb[0].mxu0
        %v2300 = vadd.f32 0.0, %v2299
        %2301 = vmatprep.mubr.bf16.mxu0 %v2012
        %2302 = vmatmul.mubr.bf16.gmra.mrb[0].mxu0 %v2003
        %v2303 = vpop.f32.mrb[0].mxu0
        %v2304 = vadd.f32 0.0, %v2303
        %v2305 = vpop.f32.mrb[0].mxu0
        %v2306 = vadd.f32 0.0, %v2305
        %v2307 = vpop.f32.mrb[0].mxu0
        %v2308 = vadd.f32 0.0, %v2307
        %v2309 = vpop.f32.mrb[0].mxu0
        %v2310 = vadd.f32 0.0, %v2309
        %2311 = vmatprep.mubr.bf16.mxu0 %v2030
        %2312 = vmatmul.mubr.bf16.gmra.mrb[0].mxu0 %v2021
        %v2313 = vpop.f32.mrb[0].mxu0
        %v2314 = vadd.f32 0.0, %v2313
        %v2315 = vpop.f32.mrb[0].mxu0
        %v2316 = vadd.f32 0.0, %v2315
        %v2317 = vpop.f32.mrb[0].mxu0
        %v2318 = vadd.f32 0.0, %v2317
        %v2319 = vpop.f32.mrb[0].mxu0
        %v2320 = vadd.f32 0.0, %v2319
        %2321 = vmatprep.mubr.bf16.mxu0 %v2048
        %2322 = vmatmul.mubr.bf16.gmra.mrb[0].mxu0 %v2039
        %v2323 = vpop.f32.mrb[0].mxu0
        %v2324 = vadd.f32 0.0, %v2323
        %v2325 = vpop.f32.mrb[0].mxu0
        %v2326 = vadd.f32 0.0, %v2325
        %v2327 = vpop.f32.mrb[0].mxu0
        %v2328 = vadd.f32 0.0, %v2327
        %v2329 = vpop.f32.mrb[0].mxu0
        %v2330 = vadd.f32 0.0, %v2329
        %2331 = vmatprep.mubr.bf16.mxu0 %v2066
        %2332 = vmatmul.mubr.bf16.gmra.mrb[0].mxu0 %v2057
        %v2333 = vpop.f32.mrb[0].mxu0
        %v2334 = vadd.f32 0.0, %v2333
        %v2335 = vpop.f32.mrb[0].mxu0
        %v2336 = vadd.f32 0.0, %v2335
        %v2337 = vpop.f32.mrb[0].mxu0
        %v2338 = vadd.f32 0.0, %v2337
        %v2339 = vpop.f32.mrb[0].mxu0
        %v2340 = vadd.f32 0.0, %v2339
        %2341 = vmatprep.mubr.bf16.mxu0 %v2084
        %2342 = vmatmul.mubr.bf16.gmra.mrb[0].mxu0 %v2075
        %v2343 = vpop.f32.mrb[0].mxu0
        %v2344 = vadd.f32 0.0, %v2343
        %v2345 = vpop.f32.mrb[0].mxu0
        %v2346 = vadd.f32 0.0, %v2345
        %v2347 = vpop.f32.mrb[0].mxu0
        %v2348 = vadd.f32 0.0, %v2347
        %v2349 = vpop.f32.mrb[0].mxu0
        %v2350 = vadd.f32 0.0, %v2349
        %2351 = vmatprep.mubr.bf16.mxu0 %v2083
        %2352 = vmatmul.mubr.bf16.gmra.mrb[0].mxu0 %v2074
        %v2353 = vpop.f32.mrb[0].mxu0
        %v2354 = vadd.f32 0.0, %v2353
        %v2355 = vpop.f32.mrb[0].mxu0
        %v2356 = vadd.f32 0.0, %v2355
        %v2357 = vpop.f32.mrb[0].mxu0
        %v2358 = vpop.f32.mrb[0].mxu0
        %2359 = vdwg.mxu0
        %v2360 = vadd.f32 %v1895, %v2294
        %v2361 = vadd.f32 %v1896, %v2296
        %v2362 = vadd.f32 %v1897, %v2298
        %v2363 = vadd.f32 %v1898, %v2300
        %v2364 = vadd.f32 %v1899, %v2304
        %v2365 = vadd.f32 %v1900, %v2306
        %v2366 = vadd.f32 %v1901, %v2308
        %v2367 = vadd.f32 %v1902, %v2310
        %v2368 = vadd.f32 %v1903, %v2314
        %v2369 = vadd.f32 %v1904, %v2316
        %v2370 = vadd.f32 %v1905, %v2318
        %v2371 = vadd.f32 %v1906, %v2320
        %v2372 = vadd.f32 %v1907, %v2324
        %v2373 = vadd.f32 %v1908, %v2326
        %v2374 = vadd.f32 %v1909, %v2328
        %v2375 = vadd.f32 %v1910, %v2330
        %v2376 = vadd.f32 %v1911, %v2334
        %v2377 = vadd.f32 %v1912, %v2336
        %v2378 = vadd.f32 %v1913, %v2338
        %v2379 = vadd.f32 %v1914, %v2340
        %v2380 = vadd.f32 %v1915, %v2344
        %v2381 = vadd.f32 %v1916, %v2346
        %v2382 = vadd.f32 %v1917, %v2348
        %v2383 = vadd.f32 %v1918, %v2350
        %v2384 = vadd.f32 %v1919, %v2354
        %v2385 = vadd.f32 %v1920, %v2356
        %v2386 = vld [vmem:[%s279 + $0x8] sm:$0xcc]
        %s2387 = scalar_lea.vmem [#allocation5], 1280
        %v2388 = vld [vmem:[%s2387] sm:$0xff]
        %v2389 = vld [vmem:[%s2387 + $0x8] sm:$0xff]
        %v2390 = vld [vmem:[%s2387 + $0x10] sm:$0xff]
        %v2391 = vld [vmem:[%s2387 + $0x18] sm:$0xff]
        %v2392 = vld [vmem:[%s2387 + $0x20] sm:$0xff]
        %v2393 = vld [vmem:[%s2387 + $0x28] sm:$0xff]
        %v2394 = vld [vmem:[%s2387 + $0x30] sm:$0xff]
        %v2395 = vld [vmem:[%s2387 + $0x38] sm:$0xff]
        %v2396 = vld [vmem:[%s2387 + $0x40] sm:$0xff]
        %v2397 = vld [vmem:[%s2387 + $0x48] sm:$0xff]
        %v2398 = vld [vmem:[%s2387 + $0x50] sm:$0xff]
        %v2399 = vld [vmem:[%s2387 + $0x58] sm:$0xff]
        %v2400 = vld [vmem:[%s2387 + $0x60] sm:$0xff]
        %v2401 = vld [vmem:[%s2387 + $0x68] sm:$0xff]
        %v2402 = vld [vmem:[%s2387 + $0x70] sm:$0xff]
        %v2403 = vld [vmem:[%s2387 + $0x78] sm:$0xff]
        %v2404 = vld [vmem:[%s2387 + $0x80] sm:$0xff]
        %v2405 = vld [vmem:[%s2387 + $0x88] sm:$0xff]
        %v2406 = vld [vmem:[%s2387 + $0x90] sm:$0xff]
        %v2407 = vld [vmem:[%s2387 + $0x98] sm:$0xff]
        %v2408 = vld [vmem:[%s2387 + $0xa0] sm:$0xff]
        %v2409 = vld [vmem:[%s2387 + $0xa8] sm:$0xff]
        %v2410 = vld [vmem:[%s2387 + $0xb0] sm:$0xff]
        %v2411 = vld [vmem:[%s2387 + $0xb8] sm:$0xff]
        %v2412 = vld [vmem:[%s2387 + $0xc0] sm:$0xff]
        %v2413 = vld [vmem:[%s2387 + $0xc8] sm:$0xff]
        %v2414 = vld [vmem:[%s2387 + $0xd0] sm:$0xff]
        %v2415 = vld [vmem:[%s2387 + $0xd8] sm:$0xff]
        %v2416 = vld [vmem:[%s2387 + $0xe0] sm:$0xff]
        %v2417 = vld [vmem:[%s2387 + $0xe8] sm:$0xff]
        %v2418 = vld [vmem:[%s2387 + $0xf0] sm:$0xff]
        %v2419 = vld [vmem:[%s2387 + $0xf8] sm:$0xff]
        %v2421 = vunpack.c.l.b16 %v2386
        %v2422 = vunpack.c.h.b16 %v2386
        %v2423 = vpack.c.b16 %v1556, %v2421
        %v2424 = vpack.c.b16 %v1557, %v2422
        %vm2425 = vcmask 1045504
        %v2426 = vrot.slane %v2423, 2
        %v2427 = vrot.slane %v1582, 2
        %v2428 = vsel %vm2425, %v2426, %v2427
        %v2429 = vrot.slane %v2424, 2
        %v2430 = vrot.slane %v1583, 2
        %v2431 = vsel %vm2425, %v2429, %v2430
        %v2432 = vrot.slane %v1584, 2
        %v2433 = vsel %vm2425, %v2427, %v2432
        %v2434 = vrot.slane %v1585, 2
        %v2435 = vsel %vm2425, %v2430, %v2434
        %v2436 = vrot.slane %v1586, 2
        %v2437 = vsel %vm2425, %v2432, %v2436
        %v2438 = vrot.slane %v1587, 2
        %v2439 = vsel %vm2425, %v2434, %v2438
        %v2440 = vrot.slane %v1588, 2
        %v2441 = vsel %vm2425, %v2436, %v2440
        %v2442 = vrot.slane %v1589, 2
        %v2443 = vsel %vm2425, %v2438, %v2442
        %v2444 = vrot.slane %v1590, 2
        %v2445 = vsel %vm2425, %v2440, %v2444
        %v2446 = vrot.slane %v1591, 2
        %v2447 = vsel %vm2425, %v2442, %v2446
        %v2448 = vrot.slane %v1958, 2
        %v2449 = vsel %vm2425, %v2444, %v2448
        %v2450 = vrot.slane %v1959, 2
        %v2451 = vsel %vm2425, %v2446, %v2450
        %v2498 = vunpack.c.l.b16 %v2388
        %v2499 = vunpack.c.h.b16 %v2388
        %v2500 = vunpack.c.l.b16 %v2389
        %v2501 = vunpack.c.h.b16 %v2389
        %v2502 = vunpack.c.l.b16 %v2390
        %v2503 = vunpack.c.h.b16 %v2390
        %v2504 = vunpack.c.l.b16 %v2391
        %v2505 = vunpack.c.h.b16 %v2391
        %v2506 = vunpack.c.l.b16 %v2392
        %v2507 = vunpack.c.h.b16 %v2392
        %v2508 = vunpack.c.l.b16 %v2393
        %v2509 = vunpack.c.h.b16 %v2393
        %v2510 = vunpack.c.l.b16 %v2394
        %v2511 = vunpack.c.h.b16 %v2394
        %v2512 = vunpack.c.l.b16 %v2395
        %v2513 = vunpack.c.h.b16 %v2395
        %v2514 = vunpack.c.l.b16 %v2396
        %v2515 = vunpack.c.h.b16 %v2396
        %v2516 = vunpack.c.l.b16 %v2397
        %v2517 = vunpack.c.h.b16 %v2397
        %v2518 = vunpack.c.l.b16 %v2398
        %v2519 = vunpack.c.h.b16 %v2398
        %v2520 = vunpack.c.l.b16 %v2399
        %v2521 = vunpack.c.h.b16 %v2399
        %v2522 = vunpack.c.l.b16 %v2400
        %v2523 = vunpack.c.h.b16 %v2400
        %v2524 = vunpack.c.l.b16 %v2401
        %v2525 = vunpack.c.h.b16 %v2401
        %v2526 = vunpack.c.l.b16 %v2402
        %v2527 = vunpack.c.h.b16 %v2402
        %v2528 = vunpack.c.l.b16 %v2403
        %v2529 = vunpack.c.h.b16 %v2403
        %v2530 = vunpack.c.l.b16 %v2404
        %v2531 = vunpack.c.h.b16 %v2404
        %v2532 = vunpack.c.l.b16 %v2405
        %v2533 = vunpack.c.h.b16 %v2405
        %v2534 = vunpack.c.l.b16 %v2406
        %v2535 = vunpack.c.h.b16 %v2406
        %v2536 = vunpack.c.l.b16 %v2407
        %v2537 = vunpack.c.h.b16 %v2407
        %v2538 = vunpack.c.l.b16 %v2408
        %v2539 = vunpack.c.h.b16 %v2408
        %v2540 = vunpack.c.l.b16 %v2409
        %v2541 = vunpack.c.h.b16 %v2409
        %v2542 = vunpack.c.l.b16 %v2410
        %v2543 = vunpack.c.h.b16 %v2410
        %v2544 = vunpack.c.l.b16 %v2411
        %v2545 = vunpack.c.h.b16 %v2411
        %v2546 = vunpack.c.l.b16 %v2412
        %v2547 = vunpack.c.h.b16 %v2412
        %v2548 = vunpack.c.l.b16 %v2413
        %v2549 = vunpack.c.h.b16 %v2413
        %v2550 = vunpack.c.l.b16 %v2414
        %v2551 = vunpack.c.h.b16 %v2414
        %v2552 = vunpack.c.l.b16 %v2415
        %v2553 = vunpack.c.h.b16 %v2415
        %v2554 = vunpack.c.l.b16 %v2416
        %v2555 = vunpack.c.h.b16 %v2416
        %v2556 = vunpack.c.l.b16 %v2417
        %v2557 = vunpack.c.h.b16 %v2417
        %v2558 = vunpack.c.l.b16 %v2418
        %v2559 = vunpack.c.h.b16 %v2418
        %v2560 = vunpack.c.l.b16 %v2419
        %v2561 = vunpack.c.h.b16 %v2419
        %v2562 = vpack.c.b16 %v2500, %v2498
        %v2563 = vpack.c.b16 %v2501, %v2499
        %v2564 = vpack.c.b16 %v2504, %v2502
        %v2565 = vpack.c.b16 %v2505, %v2503
        %v2566 = vpack.c.b16 %v2508, %v2506
        %v2567 = vpack.c.b16 %v2509, %v2507
        %v2568 = vpack.c.b16 %v2512, %v2510
        %v2569 = vpack.c.b16 %v2513, %v2511
        %v2570 = vpack.c.b16 %v2516, %v2514
        %v2571 = vpack.c.b16 %v2517, %v2515
        %v2572 = vpack.c.b16 %v2520, %v2518
        %v2573 = vpack.c.b16 %v2521, %v2519
        %v2574 = vpack.c.b16 %v2524, %v2522
        %v2575 = vpack.c.b16 %v2525, %v2523
        %v2576 = vpack.c.b16 %v2528, %v2526
        %v2577 = vpack.c.b16 %v2529, %v2527
        %v2578 = vpack.c.b16 %v2532, %v2530
        %v2579 = vpack.c.b16 %v2533, %v2531
        %v2580 = vpack.c.b16 %v2536, %v2534
        %v2581 = vpack.c.b16 %v2537, %v2535
        %v2582 = vpack.c.b16 %v2540, %v2538
        %v2583 = vpack.c.b16 %v2541, %v2539
        %v2584 = vpack.c.b16 %v2544, %v2542
        %v2585 = vpack.c.b16 %v2545, %v2543
        %v2586 = vpack.c.b16 %v2548, %v2546
        %v2587 = vpack.c.b16 %v2549, %v2547
        %v2588 = vpack.c.b16 %v2552, %v2550
        %v2589 = vpack.c.b16 %v2553, %v2551
        %v2590 = vpack.c.b16 %v2556, %v2554
        %v2591 = vpack.c.b16 %v2557, %v2555
        %v2592 = vpack.c.b16 %v2560, %v2558
        %v2593 = vpack.c.b16 %v2561, %v2559
        %2626 = vmatprep.subr.bf16.mxu0 %v2563
        %2627 = vmatpush1.bf16.msra.mxu0 %v2562
        %2628 = vmatprep.subr.bf16.mxu0 %v2565
        %2629 = vmatpush1.bf16.msra.mxu0 %v2564
        %2630 = vmatprep.subr.bf16.mxu0 %v2567
        %2631 = vmatpush1.bf16.msra.mxu0 %v2566
        %2632 = vmatprep.subr.bf16.mxu0 %v2569
        %2633 = vmatpush1.bf16.msra.mxu0 %v2568
        %2634 = vmatprep.subr.bf16.mxu0 %v2571
        %2635 = vmatpush1.bf16.msra.mxu0 %v2570
        %2636 = vmatprep.subr.bf16.mxu0 %v2573
        %2637 = vmatpush1.bf16.msra.mxu0 %v2572
        %2638 = vmatprep.subr.bf16.mxu0 %v2575
        %2639 = vmatpush1.bf16.msra.mxu0 %v2574
        %2640 = vmatprep.subr.bf16.mxu0 %v2577
        %2641 = vmatpush1.bf16.msra.mxu0 %v2576
        %2642 = vmatprep.subr.bf16.mxu0 %v2579
        %2643 = vmatpush1.bf16.msra.mxu0 %v2578
        %2644 = vmatprep.subr.bf16.mxu0 %v2581
        %2645 = vmatpush1.bf16.msra.mxu0 %v2580
        %2646 = vmatprep.subr.bf16.mxu0 %v2583
        %2647 = vmatpush1.bf16.msra.mxu0 %v2582
        %2648 = vmatprep.subr.bf16.mxu0 %v2585
        %2649 = vmatpush1.bf16.msra.mxu0 %v2584
        %2650 = vmatprep.subr.bf16.mxu0 %v2587
        %2651 = vmatpush1.bf16.msra.mxu0 %v2586
        %2652 = vmatprep.subr.bf16.mxu0 %v2589
        %2653 = vmatpush1.bf16.msra.mxu0 %v2588
        %2654 = vmatprep.subr.bf16.mxu0 %v2591
        %2655 = vmatpush1.bf16.msra.mxu0 %v2590
        %2656 = vmatprep.subr.bf16.mxu0 %v2593
        %2657 = vmatpush1.bf16.msra.mxu0 %v2592
        %2658 = vmatprep.mubr.bf16.mxu0 %v2431
        %2659 = vmatmul.mubr.bf16.gmra.mrb[0].mxu0 %v2428
        %v2660 = vpop.f32.mrb[0].mxu0
        %v2661 = vadd.f32 0.0, %v2660
        %v2662 = vpop.f32.mrb[0].mxu0
        %v2663 = vadd.f32 0.0, %v2662
        %v2664 = vpop.f32.mrb[0].mxu0
        %v2665 = vadd.f32 0.0, %v2664
        %v2666 = vpop.f32.mrb[0].mxu0
        %v2667 = vadd.f32 0.0, %v2666
        %2668 = vmatprep.mubr.bf16.mxu0 %v2435
        %2669 = vmatmul.mubr.bf16.gmra.mrb[0].mxu0 %v2433
        %v2670 = vpop.f32.mrb[0].mxu0
        %v2671 = vadd.f32 0.0, %v2670
        %v2672 = vpop.f32.mrb[0].mxu0
        %v2673 = vadd.f32 0.0, %v2672
        %v2674 = vpop.f32.mrb[0].mxu0
        %v2675 = vadd.f32 0.0, %v2674
        %v2676 = vpop.f32.mrb[0].mxu0
        %v2677 = vadd.f32 0.0, %v2676
        %2678 = vmatprep.mubr.bf16.mxu0 %v2439
        %2679 = vmatmul.mubr.bf16.gmra.mrb[0].mxu0 %v2437
        %v2680 = vpop.f32.mrb[0].mxu0
        %v2681 = vadd.f32 0.0, %v2680
        %v2682 = vpop.f32.mrb[0].mxu0
        %v2683 = vadd.f32 0.0, %v2682
        %v2684 = vpop.f32.mrb[0].mxu0
        %v2685 = vadd.f32 0.0, %v2684
        %v2686 = vpop.f32.mrb[0].mxu0
        %v2687 = vadd.f32 0.0, %v2686
        %2688 = vmatprep.mubr.bf16.mxu0 %v2443
        %2689 = vmatmul.mubr.bf16.gmra.mrb[0].mxu0 %v2441
        %v2690 = vpop.f32.mrb[0].mxu0
        %v2691 = vadd.f32 0.0, %v2690
        %v2692 = vpop.f32.mrb[0].mxu0
        %v2693 = vadd.f32 0.0, %v2692
        %v2694 = vpop.f32.mrb[0].mxu0
        %v2695 = vadd.f32 0.0, %v2694
        %v2696 = vpop.f32.mrb[0].mxu0
        %v2697 = vadd.f32 0.0, %v2696
        %2698 = vmatprep.mubr.bf16.mxu0 %v2447
        %2699 = vmatmul.mubr.bf16.gmra.mrb[0].mxu0 %v2445
        %v2700 = vpop.f32.mrb[0].mxu0
        %v2701 = vadd.f32 0.0, %v2700
        %v2702 = vpop.f32.mrb[0].mxu0
        %v2703 = vadd.f32 0.0, %v2702
        %v2704 = vpop.f32.mrb[0].mxu0
        %v2705 = vadd.f32 0.0, %v2704
        %v2706 = vpop.f32.mrb[0].mxu0
        %v2707 = vadd.f32 0.0, %v2706
        %2708 = vmatprep.mubr.bf16.mxu0 %v2451
        %2709 = vmatmul.mubr.bf16.gmra.mrb[0].mxu0 %v2449
        %v2710 = vpop.f32.mrb[0].mxu0
        %v2711 = vadd.f32 0.0, %v2710
        %v2712 = vpop.f32.mrb[0].mxu0
        %v2713 = vadd.f32 0.0, %v2712
        %v2714 = vpop.f32.mrb[0].mxu0
        %v2715 = vadd.f32 0.0, %v2714
        %v2716 = vpop.f32.mrb[0].mxu0
        %v2717 = vadd.f32 0.0, %v2716
        %2718 = vmatprep.mubr.bf16.mxu0 %v2450
        %2719 = vmatmul.mubr.bf16.gmra.mrb[0].mxu0 %v2448
        %v2720 = vpop.f32.mrb[0].mxu0
        %v2721 = vadd.f32 0.0, %v2720
        %v2722 = vpop.f32.mrb[0].mxu0
        %v2723 = vadd.f32 0.0, %v2722
        %v2724 = vpop.f32.mrb[0].mxu0
        %v2725 = vpop.f32.mrb[0].mxu0
        %2726 = vdwg.mxu0
        %v2727 = vadd.f32 %v2360, %v2661
        %v2728 = vadd.f32 %v2361, %v2663
        %v2729 = vadd.f32 %v2362, %v2665
        %v2730 = vadd.f32 %v2363, %v2667
        %v2731 = vadd.f32 %v2364, %v2671
        %v2732 = vadd.f32 %v2365, %v2673
        %v2733 = vadd.f32 %v2366, %v2675
        %v2734 = vadd.f32 %v2367, %v2677
        %v2735 = vadd.f32 %v2368, %v2681
        %v2736 = vadd.f32 %v2369, %v2683
        %v2737 = vadd.f32 %v2370, %v2685
        %v2738 = vadd.f32 %v2371, %v2687
        %v2739 = vadd.f32 %v2372, %v2691
        %v2740 = vadd.f32 %v2373, %v2693
        %v2741 = vadd.f32 %v2374, %v2695
        %v2742 = vadd.f32 %v2375, %v2697
        %v2743 = vadd.f32 %v2376, %v2701
        %v2744 = vadd.f32 %v2377, %v2703
        %v2745 = vadd.f32 %v2378, %v2705
        %v2746 = vadd.f32 %v2379, %v2707
        %v2747 = vadd.f32 %v2380, %v2711
        %v2748 = vadd.f32 %v2381, %v2713
        %v2749 = vadd.f32 %v2382, %v2715
        %v2750 = vadd.f32 %v2383, %v2717
        %v2751 = vadd.f32 %v2384, %v2721
        %v2752 = vadd.f32 %v2385, %v2723
        %v2753 = vld [vmem:[%s279 + $0x10] sm:$0xcc]
        %v2754 = vld [vmem:[%s279 + $0x18] sm:$0xff]
        %v2755 = vld [vmem:[%s279 + $0x20] sm:$0xff]
        %v2756 = vld [vmem:[%s279 + $0x28] sm:$0xff]
        %v2757 = vld [vmem:[%s279 + $0x30] sm:$0xff]
        %v2758 = vld [vmem:[%s279 + $0x38] sm:$0xff]
        %v2759 = vld [vmem:[%s279 + $0x40] sm:$0xff]
        %v2760 = vld [vmem:[%s279 + $0x48] sm:$0xff]
        %v2761 = vld [vmem:[%s279 + $0x50] sm:$0xff]
        %v2762 = vld [vmem:[%s279 + $0x58] sm:$0xff]
        %v2763 = vld [vmem:[%s279 + $0x60] sm:$0xff]
        %v2764 = vld [vmem:[%s279 + $0x68] sm:$0xff]
        %v2765 = vld [vmem:[%s279 + $0x70] sm:$0xff]
        %s2766 = scalar_lea.vmem [#allocation5], 1536
        %v2767 = vld [vmem:[%s2766] sm:$0xff]
        %v2768 = vld [vmem:[%s2766 + $0x8] sm:$0xff]
        %v2769 = vld [vmem:[%s2766 + $0x10] sm:$0xff]
        %v2770 = vld [vmem:[%s2766 + $0x18] sm:$0xff]
        %v2771 = vld [vmem:[%s2766 + $0x20] sm:$0xff]
        %v2772 = vld [vmem:[%s2766 + $0x28] sm:$0xff]
        %v2773 = vld [vmem:[%s2766 + $0x30] sm:$0xff]
        %v2774 = vld [vmem:[%s2766 + $0x38] sm:$0xff]
        %v2775 = vld [vmem:[%s2766 + $0x40] sm:$0xff]
        %v2776 = vld [vmem:[%s2766 + $0x48] sm:$0xff]
        %v2777 = vld [vmem:[%s2766 + $0x50] sm:$0xff]
        %v2778 = vld [vmem:[%s2766 + $0x58] sm:$0xff]
        %v2779 = vld [vmem:[%s2766 + $0x60] sm:$0xff]
        %v2780 = vld [vmem:[%s2766 + $0x68] sm:$0xff]
        %v2781 = vld [vmem:[%s2766 + $0x70] sm:$0xff]
        %v2782 = vld [vmem:[%s2766 + $0x78] sm:$0xff]
        %v2783 = vld [vmem:[%s2766 + $0x80] sm:$0xff]
        %v2784 = vld [vmem:[%s2766 + $0x88] sm:$0xff]
        %v2785 = vld [vmem:[%s2766 + $0x90] sm:$0xff]
        %v2786 = vld [vmem:[%s2766 + $0x98] sm:$0xff]
        %v2787 = vld [vmem:[%s2766 + $0xa0] sm:$0xff]
        %v2788 = vld [vmem:[%s2766 + $0xa8] sm:$0xff]
        %v2789 = vld [vmem:[%s2766 + $0xb0] sm:$0xff]
        %v2790 = vld [vmem:[%s2766 + $0xb8] sm:$0xff]
        %v2791 = vld [vmem:[%s2766 + $0xc0] sm:$0xff]
        %v2792 = vld [vmem:[%s2766 + $0xc8] sm:$0xff]
        %v2793 = vld [vmem:[%s2766 + $0xd0] sm:$0xff]
        %v2794 = vld [vmem:[%s2766 + $0xd8] sm:$0xff]
        %v2795 = vld [vmem:[%s2766 + $0xe0] sm:$0xff]
        %v2796 = vld [vmem:[%s2766 + $0xe8] sm:$0xff]
        %v2797 = vld [vmem:[%s2766 + $0xf0] sm:$0xff]
        %v2798 = vld [vmem:[%s2766 + $0xf8] sm:$0xff]
        %v2812 = vunpack.c.l.b16 %v2753
        %v2813 = vunpack.c.h.b16 %v2753
        %v2814 = vunpack.c.l.b16 %v2754
        %v2815 = vunpack.c.h.b16 %v2754
        %v2816 = vunpack.c.l.b16 %v2755
        %v2817 = vunpack.c.h.b16 %v2755
        %v2818 = vunpack.c.l.b16 %v2756
        %v2819 = vunpack.c.h.b16 %v2756
        %v2820 = vunpack.c.l.b16 %v2757
        %v2821 = vunpack.c.h.b16 %v2757
        %v2822 = vunpack.c.l.b16 %v2758
        %v2823 = vunpack.c.h.b16 %v2758
        %v2824 = vunpack.c.l.b16 %v2759
        %v2825 = vunpack.c.h.b16 %v2759
        %v2826 = vunpack.c.l.b16 %v2760
        %v2827 = vunpack.c.h.b16 %v2760
        %v2828 = vunpack.c.l.b16 %v2761
        %v2829 = vunpack.c.h.b16 %v2761
        %v2830 = vunpack.c.l.b16 %v2762
        %v2831 = vunpack.c.h.b16 %v2762
        %v2832 = vunpack.c.l.b16 %v2763
        %v2833 = vunpack.c.h.b16 %v2763
        %v2834 = vunpack.c.l.b16 %v2764
        %v2835 = vunpack.c.h.b16 %v2764
        %v2836 = vunpack.c.l.b16 %v2765
        %v2837 = vunpack.c.h.b16 %v2765
        %v2838 = vpack.c.b16 %v2814, %v2812
        %v2839 = vpack.c.b16 %v2815, %v2813
        %v2840 = vpack.c.b16 %v2818, %v2816
        %v2841 = vpack.c.b16 %v2819, %v2817
        %v2842 = vpack.c.b16 %v2822, %v2820
        %v2843 = vpack.c.b16 %v2823, %v2821
        %v2844 = vpack.c.b16 %v2826, %v2824
        %v2845 = vpack.c.b16 %v2827, %v2825
        %v2846 = vpack.c.b16 %v2830, %v2828
        %v2847 = vpack.c.b16 %v2831, %v2829
        %v2848 = vpack.c.b16 %v2834, %v2832
        %v2849 = vpack.c.b16 %v2835, %v2833
        %v2850 = vpack.c.b16 %v2836, %v2836
        %v2851 = vpack.c.b16 %v2837, %v2837
        %v2852 = vrot.slane %v2838, 2
        %v2853 = vrot.slane %v2840, 2
        %v2854 = vsel %vm2425, %v2852, %v2853
        %v2855 = vrot.slane %v2839, 2
        %v2856 = vrot.slane %v2841, 2
        %v2857 = vsel %vm2425, %v2855, %v2856
        %v2858 = vrot.slane %v2842, 2
        %v2859 = vsel %vm2425, %v2853, %v2858
        %v2860 = vrot.slane %v2843, 2
        %v2861 = vsel %vm2425, %v2856, %v2860
        %v2862 = vrot.slane %v2844, 2
        %v2863 = vsel %vm2425, %v2858, %v2862
        %v2864 = vrot.slane %v2845, 2
        %v2865 = vsel %vm2425, %v2860, %v2864
        %v2866 = vrot.slane %v2846, 2
        %v2867 = vsel %vm2425, %v2862, %v2866
        %v2868 = vrot.slane %v2847, 2
        %v2869 = vsel %vm2425, %v2864, %v2868
        %v2870 = vrot.slane %v2848, 2
        %v2871 = vsel %vm2425, %v2866, %v2870
        %v2872 = vrot.slane %v2849, 2
        %v2873 = vsel %vm2425, %v2868, %v2872
        %v2874 = vrot.slane %v2850, 2
        %v2875 = vsel %vm2425, %v2870, %v2874
        %v2876 = vrot.slane %v2851, 2
        %v2877 = vsel %vm2425, %v2872, %v2876
        %v2924 = vunpack.c.l.b16 %v2767
        %v2925 = vunpack.c.h.b16 %v2767
        %v2926 = vunpack.c.l.b16 %v2768
        %v2927 = vunpack.c.h.b16 %v2768
        %v2928 = vunpack.c.l.b16 %v2769
        %v2929 = vunpack.c.h.b16 %v2769
        %v2930 = vunpack.c.l.b16 %v2770
        %v2931 = vunpack.c.h.b16 %v2770
        %v2932 = vunpack.c.l.b16 %v2771
        %v2933 = vunpack.c.h.b16 %v2771
        %v2934 = vunpack.c.l.b16 %v2772
        %v2935 = vunpack.c.h.b16 %v2772
        %v2936 = vunpack.c.l.b16 %v2773
        %v2937 = vunpack.c.h.b16 %v2773
        %v2938 = vunpack.c.l.b16 %v2774
        %v2939 = vunpack.c.h.b16 %v2774
        %v2940 = vunpack.c.l.b16 %v2775
        %v2941 = vunpack.c.h.b16 %v2775
        %v2942 = vunpack.c.l.b16 %v2776
        %v2943 = vunpack.c.h.b16 %v2776
        %v2944 = vunpack.c.l.b16 %v2777
        %v2945 = vunpack.c.h.b16 %v2777
        %v2946 = vunpack.c.l.b16 %v2778
        %v2947 = vunpack.c.h.b16 %v2778
        %v2948 = vunpack.c.l.b16 %v2779
        %v2949 = vunpack.c.h.b16 %v2779
        %v2950 = vunpack.c.l.b16 %v2780
        %v2951 = vunpack.c.h.b16 %v2780
        %v2952 = vunpack.c.l.b16 %v2781
        %v2953 = vunpack.c.h.b16 %v2781
        %v2954 = vunpack.c.l.b16 %v2782
        %v2955 = vunpack.c.h.b16 %v2782
        %v2956 = vunpack.c.l.b16 %v2783
        %v2957 = vunpack.c.h.b16 %v2783
        %v2958 = vunpack.c.l.b16 %v2784
        %v2959 = vunpack.c.h.b16 %v2784
        %v2960 = vunpack.c.l.b16 %v2785
        %v2961 = vunpack.c.h.b16 %v2785
        %v2962 = vunpack.c.l.b16 %v2786
        %v2963 = vunpack.c.h.b16 %v2786
        %v2964 = vunpack.c.l.b16 %v2787
        %v2965 = vunpack.c.h.b16 %v2787
        %v2966 = vunpack.c.l.b16 %v2788
        %v2967 = vunpack.c.h.b16 %v2788
        %v2968 = vunpack.c.l.b16 %v2789
        %v2969 = vunpack.c.h.b16 %v2789
        %v2970 = vunpack.c.l.b16 %v2790
        %v2971 = vunpack.c.h.b16 %v2790
        %v2972 = vunpack.c.l.b16 %v2791
        %v2973 = vunpack.c.h.b16 %v2791
        %v2974 = vunpack.c.l.b16 %v2792
        %v2975 = vunpack.c.h.b16 %v2792
        %v2976 = vunpack.c.l.b16 %v2793
        %v2977 = vunpack.c.h.b16 %v2793
        %v2978 = vunpack.c.l.b16 %v2794
        %v2979 = vunpack.c.h.b16 %v2794
        %v2980 = vunpack.c.l.b16 %v2795
        %v2981 = vunpack.c.h.b16 %v2795
        %v2982 = vunpack.c.l.b16 %v2796
        %v2983 = vunpack.c.h.b16 %v2796
        %v2984 = vunpack.c.l.b16 %v2797
        %v2985 = vunpack.c.h.b16 %v2797
        %v2986 = vunpack.c.l.b16 %v2798
        %v2987 = vunpack.c.h.b16 %v2798
        %v2988 = vpack.c.b16 %v2926, %v2924
        %v2989 = vpack.c.b16 %v2927, %v2925
        %v2990 = vpack.c.b16 %v2930, %v2928
        %v2991 = vpack.c.b16 %v2931, %v2929
        %v2992 = vpack.c.b16 %v2934, %v2932
        %v2993 = vpack.c.b16 %v2935, %v2933
        %v2994 = vpack.c.b16 %v2938, %v2936
        %v2995 = vpack.c.b16 %v2939, %v2937
        %v2996 = vpack.c.b16 %v2942, %v2940
        %v2997 = vpack.c.b16 %v2943, %v2941
        %v2998 = vpack.c.b16 %v2946, %v2944
        %v2999 = vpack.c.b16 %v2947, %v2945
        %v3000 = vpack.c.b16 %v2950, %v2948
        %v3001 = vpack.c.b16 %v2951, %v2949
        %v3002 = vpack.c.b16 %v2954, %v2952
        %v3003 = vpack.c.b16 %v2955, %v2953
        %v3004 = vpack.c.b16 %v2958, %v2956
        %v3005 = vpack.c.b16 %v2959, %v2957
        %v3006 = vpack.c.b16 %v2962, %v2960
        %v3007 = vpack.c.b16 %v2963, %v2961
        %v3008 = vpack.c.b16 %v2966, %v2964
        %v3009 = vpack.c.b16 %v2967, %v2965
        %v3010 = vpack.c.b16 %v2970, %v2968
        %v3011 = vpack.c.b16 %v2971, %v2969
        %v3012 = vpack.c.b16 %v2974, %v2972
        %v3013 = vpack.c.b16 %v2975, %v2973
        %v3014 = vpack.c.b16 %v2978, %v2976
        %v3015 = vpack.c.b16 %v2979, %v2977
        %v3016 = vpack.c.b16 %v2982, %v2980
        %v3017 = vpack.c.b16 %v2983, %v2981
        %v3018 = vpack.c.b16 %v2986, %v2984
        %v3019 = vpack.c.b16 %v2987, %v2985
        %3052 = vmatprep.subr.bf16.mxu0 %v2989
        %3053 = vmatpush1.bf16.msra.mxu0 %v2988
        %3054 = vmatprep.subr.bf16.mxu0 %v2991
        %3055 = vmatpush1.bf16.msra.mxu0 %v2990
        %3056 = vmatprep.subr.bf16.mxu0 %v2993
        %3057 = vmatpush1.bf16.msra.mxu0 %v2992
        %3058 = vmatprep.subr.bf16.mxu0 %v2995
        %3059 = vmatpush1.bf16.msra.mxu0 %v2994
        %3060 = vmatprep.subr.bf16.mxu0 %v2997
        %3061 = vmatpush1.bf16.msra.mxu0 %v2996
        %3062 = vmatprep.subr.bf16.mxu0 %v2999
        %3063 = vmatpush1.bf16.msra.mxu0 %v2998
        %3064 = vmatprep.subr.bf16.mxu0 %v3001
        %3065 = vmatpush1.bf16.msra.mxu0 %v3000
        %3066 = vmatprep.subr.bf16.mxu0 %v3003
        %3067 = vmatpush1.bf16.msra.mxu0 %v3002
        %3068 = vmatprep.subr.bf16.mxu0 %v3005
        %3069 = vmatpush1.bf16.msra.mxu0 %v3004
        %3070 = vmatprep.subr.bf16.mxu0 %v3007
        %3071 = vmatpush1.bf16.msra.mxu0 %v3006
        %3072 = vmatprep.subr.bf16.mxu0 %v3009
        %3073 = vmatpush1.bf16.msra.mxu0 %v3008
        %3074 = vmatprep.subr.bf16.mxu0 %v3011
        %3075 = vmatpush1.bf16.msra.mxu0 %v3010
        %3076 = vmatprep.subr.bf16.mxu0 %v3013
        %3077 = vmatpush1.bf16.msra.mxu0 %v3012
        %3078 = vmatprep.subr.bf16.mxu0 %v3015
        %3079 = vmatpush1.bf16.msra.mxu0 %v3014
        %3080 = vmatprep.subr.bf16.mxu0 %v3017
        %3081 = vmatpush1.bf16.msra.mxu0 %v3016
        %3082 = vmatprep.subr.bf16.mxu0 %v3019
        %3083 = vmatpush1.bf16.msra.mxu0 %v3018
        %3084 = vmatprep.mubr.bf16.mxu0 %v2857
        %3085 = vmatmul.mubr.bf16.gmra.mrb[0].mxu0 %v2854
        %v3086 = vpop.f32.mrb[0].mxu0
        %v3087 = vadd.f32 0.0, %v3086
        %v3088 = vpop.f32.mrb[0].mxu0
        %v3089 = vadd.f32 0.0, %v3088
        %v3090 = vpop.f32.mrb[0].mxu0
        %v3091 = vadd.f32 0.0, %v3090
        %v3092 = vpop.f32.mrb[0].mxu0
        %v3093 = vadd.f32 0.0, %v3092
        %3094 = vmatprep.mubr.bf16.mxu0 %v2861
        %3095 = vmatmul.mubr.bf16.gmra.mrb[0].mxu0 %v2859
        %v3096 = vpop.f32.mrb[0].mxu0
        %v3097 = vadd.f32 0.0, %v3096
        %v3098 = vpop.f32.mrb[0].mxu0
        %v3099 = vadd.f32 0.0, %v3098
        %v3100 = vpop.f32.mrb[0].mxu0
        %v3101 = vadd.f32 0.0, %v3100
        %v3102 = vpop.f32.mrb[0].mxu0
        %v3103 = vadd.f32 0.0, %v3102
        %3104 = vmatprep.mubr.bf16.mxu0 %v2865
        %3105 = vmatmul.mubr.bf16.gmra.mrb[0].mxu0 %v2863
        %v3106 = vpop.f32.mrb[0].mxu0
        %v3107 = vadd.f32 0.0, %v3106
        %v3108 = vpop.f32.mrb[0].mxu0
        %v3109 = vadd.f32 0.0, %v3108
        %v3110 = vpop.f32.mrb[0].mxu0
        %v3111 = vadd.f32 0.0, %v3110
        %v3112 = vpop.f32.mrb[0].mxu0
        %v3113 = vadd.f32 0.0, %v3112
        %3114 = vmatprep.mubr.bf16.mxu0 %v2869
        %3115 = vmatmul.mubr.bf16.gmra.mrb[0].mxu0 %v2867
        %v3116 = vpop.f32.mrb[0].mxu0
        %v3117 = vadd.f32 0.0, %v3116
        %v3118 = vpop.f32.mrb[0].mxu0
        %v3119 = vadd.f32 0.0, %v3118
        %v3120 = vpop.f32.mrb[0].mxu0
        %v3121 = vadd.f32 0.0, %v3120
        %v3122 = vpop.f32.mrb[0].mxu0
        %v3123 = vadd.f32 0.0, %v3122
        %3124 = vmatprep.mubr.bf16.mxu0 %v2873
        %3125 = vmatmul.mubr.bf16.gmra.mrb[0].mxu0 %v2871
        %v3126 = vpop.f32.mrb[0].mxu0
        %v3127 = vadd.f32 0.0, %v3126
        %v3128 = vpop.f32.mrb[0].mxu0
        %v3129 = vadd.f32 0.0, %v3128
        %v3130 = vpop.f32.mrb[0].mxu0
        %v3131 = vadd.f32 0.0, %v3130
        %v3132 = vpop.f32.mrb[0].mxu0
        %v3133 = vadd.f32 0.0, %v3132
        %3134 = vmatprep.mubr.bf16.mxu0 %v2877
        %3135 = vmatmul.mubr.bf16.gmra.mrb[0].mxu0 %v2875
        %v3136 = vpop.f32.mrb[0].mxu0
        %v3137 = vadd.f32 0.0, %v3136
        %v3138 = vpop.f32.mrb[0].mxu0
        %v3139 = vadd.f32 0.0, %v3138
        %v3140 = vpop.f32.mrb[0].mxu0
        %v3141 = vadd.f32 0.0, %v3140
        %v3142 = vpop.f32.mrb[0].mxu0
        %v3143 = vadd.f32 0.0, %v3142
        %3144 = vmatprep.mubr.bf16.mxu0 %v2876
        %3145 = vmatmul.mubr.bf16.gmra.mrb[0].mxu0 %v2874
        %v3146 = vpop.f32.mrb[0].mxu0
        %v3147 = vadd.f32 0.0, %v3146
        %v3148 = vpop.f32.mrb[0].mxu0
        %v3149 = vadd.f32 0.0, %v3148
        %v3150 = vpop.f32.mrb[0].mxu0
        %v3151 = vpop.f32.mrb[0].mxu0
        %3152 = vdwg.mxu0
        %v3153 = vadd.f32 %v2727, %v3087
        %v3154 = vadd.f32 %v2728, %v3089
        %v3155 = vadd.f32 %v2729, %v3091
        %v3156 = vadd.f32 %v2730, %v3093
        %v3157 = vadd.f32 %v2731, %v3097
        %v3158 = vadd.f32 %v2732, %v3099
        %v3159 = vadd.f32 %v2733, %v3101
        %v3160 = vadd.f32 %v2734, %v3103
        %v3161 = vadd.f32 %v2735, %v3107
        %v3162 = vadd.f32 %v2736, %v3109
        %v3163 = vadd.f32 %v2737, %v3111
        %v3164 = vadd.f32 %v2738, %v3113
        %v3165 = vadd.f32 %v2739, %v3117
        %v3166 = vadd.f32 %v2740, %v3119
        %v3167 = vadd.f32 %v2741, %v3121
        %v3168 = vadd.f32 %v2742, %v3123
        %v3169 = vadd.f32 %v2743, %v3127
        %v3170 = vadd.f32 %v2744, %v3129
        %v3171 = vadd.f32 %v2745, %v3131
        %v3172 = vadd.f32 %v2746, %v3133
        %v3173 = vadd.f32 %v2747, %v3137
        %v3174 = vadd.f32 %v2748, %v3139
        %v3175 = vadd.f32 %v2749, %v3141
        %v3176 = vadd.f32 %v2750, %v3143
        %v3177 = vadd.f32 %v2751, %v3147
        %v3178 = vadd.f32 %v2752, %v3149
        %v3179 = vld [vmem:[%s279 + $0x10] sm:$0xcc]
        %v3180 = vld [vmem:[%s279 + $0x18] sm:$0xff]
        %v3181 = vld [vmem:[%s279 + $0x20] sm:$0xff]
        %v3182 = vld [vmem:[%s279 + $0x28] sm:$0xff]
        %v3183 = vld [vmem:[%s279 + $0x30] sm:$0xff]
        %v3184 = vld [vmem:[%s279 + $0x38] sm:$0xff]
        %v3185 = vld [vmem:[%s279 + $0x40] sm:$0xff]
        %v3186 = vld [vmem:[%s279 + $0x48] sm:$0xff]
        %v3187 = vld [vmem:[%s279 + $0x50] sm:$0xff]
        %v3188 = vld [vmem:[%s279 + $0x58] sm:$0xff]
        %v3189 = vld [vmem:[%s279 + $0x60] sm:$0xff]
        %v3190 = vld [vmem:[%s279 + $0x68] sm:$0xff]
        %v3191 = vld [vmem:[%s279 + $0x70] sm:$0xff]
        %v3192 = vld [vmem:[%s279 + $0x78] sm:$0x11]
        %s3193 = scalar_lea.vmem [#allocation5], 1792
        %v3194 = vld [vmem:[%s3193] sm:$0xff]
        %v3195 = vld [vmem:[%s3193 + $0x8] sm:$0xff]
        %v3196 = vld [vmem:[%s3193 + $0x10] sm:$0xff]
        %v3197 = vld [vmem:[%s3193 + $0x18] sm:$0xff]
        %v3198 = vld [vmem:[%s3193 + $0x20] sm:$0xff]
        %v3199 = vld [vmem:[%s3193 + $0x28] sm:$0xff]
        %v3200 = vld [vmem:[%s3193 + $0x30] sm:$0xff]
        %v3201 = vld [vmem:[%s3193 + $0x38] sm:$0xff]
        %v3202 = vld [vmem:[%s3193 + $0x40] sm:$0xff]
        %v3203 = vld [vmem:[%s3193 + $0x48] sm:$0xff]
        %v3204 = vld [vmem:[%s3193 + $0x50] sm:$0xff]
        %v3205 = vld [vmem:[%s3193 + $0x58] sm:$0xff]
        %v3206 = vld [vmem:[%s3193 + $0x60] sm:$0xff]
        %v3207 = vld [vmem:[%s3193 + $0x68] sm:$0xff]
        %v3208 = vld [vmem:[%s3193 + $0x70] sm:$0xff]
        %v3209 = vld [vmem:[%s3193 + $0x78] sm:$0xff]
        %v3210 = vld [vmem:[%s3193 + $0x80] sm:$0xff]
        %v3211 = vld [vmem:[%s3193 + $0x88] sm:$0xff]
        %v3212 = vld [vmem:[%s3193 + $0x90] sm:$0xff]
        %v3213 = vld [vmem:[%s3193 + $0x98] sm:$0xff]
        %v3214 = vld [vmem:[%s3193 + $0xa0] sm:$0xff]
        %v3215 = vld [vmem:[%s3193 + $0xa8] sm:$0xff]
        %v3216 = vld [vmem:[%s3193 + $0xb0] sm:$0xff]
        %v3217 = vld [vmem:[%s3193 + $0xb8] sm:$0xff]
        %v3218 = vld [vmem:[%s3193 + $0xc0] sm:$0xff]
        %v3219 = vld [vmem:[%s3193 + $0xc8] sm:$0xff]
        %v3220 = vld [vmem:[%s3193 + $0xd0] sm:$0xff]
        %v3221 = vld [vmem:[%s3193 + $0xd8] sm:$0xff]
        %v3222 = vld [vmem:[%s3193 + $0xe0] sm:$0xff]
        %v3223 = vld [vmem:[%s3193 + $0xe8] sm:$0xff]
        %v3224 = vld [vmem:[%s3193 + $0xf0] sm:$0xff]
        %v3225 = vld [vmem:[%s3193 + $0xf8] sm:$0xff]
        %v3240 = vunpack.c.l.b16 %v3179
        %v3241 = vunpack.c.h.b16 %v3179
        %v3242 = vunpack.c.l.b16 %v3180
        %v3243 = vunpack.c.h.b16 %v3180
        %v3244 = vunpack.c.l.b16 %v3181
        %v3245 = vunpack.c.h.b16 %v3181
        %v3246 = vunpack.c.l.b16 %v3182
        %v3247 = vunpack.c.h.b16 %v3182
        %v3248 = vunpack.c.l.b16 %v3183
        %v3249 = vunpack.c.h.b16 %v3183
        %v3250 = vunpack.c.l.b16 %v3184
        %v3251 = vunpack.c.h.b16 %v3184
        %v3252 = vunpack.c.l.b16 %v3185
        %v3253 = vunpack.c.h.b16 %v3185
        %v3254 = vunpack.c.l.b16 %v3186
        %v3255 = vunpack.c.h.b16 %v3186
        %v3256 = vunpack.c.l.b16 %v3187
        %v3257 = vunpack.c.h.b16 %v3187
        %v3258 = vunpack.c.l.b16 %v3188
        %v3259 = vunpack.c.h.b16 %v3188
        %v3260 = vunpack.c.l.b16 %v3189
        %v3261 = vunpack.c.h.b16 %v3189
        %v3262 = vunpack.c.l.b16 %v3190
        %v3263 = vunpack.c.h.b16 %v3190
        %v3264 = vunpack.c.l.b16 %v3191
        %v3265 = vunpack.c.h.b16 %v3191
        %v3266 = vunpack.c.l.b16 %v3192
        %v3267 = vunpack.c.h.b16 %v3192
        %v3268 = vpack.c.b16 %v3242, %v3240
        %v3269 = vpack.c.b16 %v3243, %v3241
        %v3270 = vpack.c.b16 %v3246, %v3244
        %v3271 = vpack.c.b16 %v3247, %v3245
        %v3272 = vpack.c.b16 %v3250, %v3248
        %v3273 = vpack.c.b16 %v3251, %v3249
        %v3274 = vpack.c.b16 %v3254, %v3252
        %v3275 = vpack.c.b16 %v3255, %v3253
        %v3276 = vpack.c.b16 %v3258, %v3256
        %v3277 = vpack.c.b16 %v3259, %v3257
        %v3278 = vpack.c.b16 %v3262, %v3260
        %v3279 = vpack.c.b16 %v3263, %v3261
        %v3280 = vpack.c.b16 %v3266, %v3264
        %v3281 = vpack.c.b16 %v3267, %v3265
        %vm3282 = vsmask.f32 5376
        %v3284 = vshrl.u32 %v3268, 16
        %v3286 = vrot.slane %v3284, 2
        %v3287 = vshll.u32 %v3268, 16
        %v3289 = vrot.slane %v3287, 3
        %v3290 = vor.u32 %v3286, %v3289
        %v3292 = vshrl.u32 %v3270, 16
        %v3294 = vrot.slane %v3292, 2
        %v3295 = vshll.u32 %v3270, 16
        %v3297 = vrot.slane %v3295, 3
        %v3298 = vor.u32 %v3294, %v3297
        %v3299 = vsel %vm3282, %v3290, %v3298
        %v3301 = vshrl.u32 %v3269, 16
        %v3303 = vrot.slane %v3301, 2
        %v3304 = vshll.u32 %v3269, 16
        %v3306 = vrot.slane %v3304, 3
        %v3307 = vor.u32 %v3303, %v3306
        %v3309 = vshrl.u32 %v3271, 16
        %v3311 = vrot.slane %v3309, 2
        %v3312 = vshll.u32 %v3271, 16
        %v3314 = vrot.slane %v3312, 3
        %v3315 = vor.u32 %v3311, %v3314
        %v3316 = vsel %vm3282, %v3307, %v3315
        %v3318 = vshrl.u32 %v3272, 16
        %v3320 = vrot.slane %v3318, 2
        %v3321 = vshll.u32 %v3272, 16
        %v3323 = vrot.slane %v3321, 3
        %v3324 = vor.u32 %v3320, %v3323
        %v3325 = vsel %vm3282, %v3298, %v3324
        %v3327 = vshrl.u32 %v3273, 16
        %v3329 = vrot.slane %v3327, 2
        %v3330 = vshll.u32 %v3273, 16
        %v3332 = vrot.slane %v3330, 3
        %v3333 = vor.u32 %v3329, %v3332
        %v3334 = vsel %vm3282, %v3315, %v3333
        %v3336 = vshrl.u32 %v3274, 16
        %v3338 = vrot.slane %v3336, 2
        %v3339 = vshll.u32 %v3274, 16
        %v3341 = vrot.slane %v3339, 3
        %v3342 = vor.u32 %v3338, %v3341
        %v3343 = vsel %vm3282, %v3324, %v3342
        %v3345 = vshrl.u32 %v3275, 16
        %v3347 = vrot.slane %v3345, 2
        %v3348 = vshll.u32 %v3275, 16
        %v3350 = vrot.slane %v3348, 3
        %v3351 = vor.u32 %v3347, %v3350
        %v3352 = vsel %vm3282, %v3333, %v3351
        %v3354 = vshrl.u32 %v3276, 16
        %v3356 = vrot.slane %v3354, 2
        %v3357 = vshll.u32 %v3276, 16
        %v3359 = vrot.slane %v3357, 3
        %v3360 = vor.u32 %v3356, %v3359
        %v3361 = vsel %vm3282, %v3342, %v3360
        %v3363 = vshrl.u32 %v3277, 16
        %v3365 = vrot.slane %v3363, 2
        %v3366 = vshll.u32 %v3277, 16
        %v3368 = vrot.slane %v3366, 3
        %v3369 = vor.u32 %v3365, %v3368
        %v3370 = vsel %vm3282, %v3351, %v3369
        %v3372 = vshrl.u32 %v3278, 16
        %v3374 = vrot.slane %v3372, 2
        %v3375 = vshll.u32 %v3278, 16
        %v3377 = vrot.slane %v3375, 3
        %v3378 = vor.u32 %v3374, %v3377
        %v3379 = vsel %vm3282, %v3360, %v3378
        %v3381 = vshrl.u32 %v3279, 16
        %v3383 = vrot.slane %v3381, 2
        %v3384 = vshll.u32 %v3279, 16
        %v3386 = vrot.slane %v3384, 3
        %v3387 = vor.u32 %v3383, %v3386
        %v3388 = vsel %vm3282, %v3369, %v3387
        %v3390 = vshrl.u32 %v3280, 16
        %v3392 = vrot.slane %v3390, 2
        %v3393 = vshll.u32 %v3280, 16
        %v3395 = vrot.slane %v3393, 3
        %v3396 = vor.u32 %v3392, %v3395
        %v3397 = vsel %vm3282, %v3378, %v3396
        %v3399 = vshrl.u32 %v3281, 16
        %v3401 = vrot.slane %v3399, 2
        %v3402 = vshll.u32 %v3281, 16
        %v3404 = vrot.slane %v3402, 3
        %v3405 = vor.u32 %v3401, %v3404
        %v3406 = vsel %vm3282, %v3387, %v3405
        %v3453 = vunpack.c.l.b16 %v3194
        %v3454 = vunpack.c.h.b16 %v3194
        %v3455 = vunpack.c.l.b16 %v3195
        %v3456 = vunpack.c.h.b16 %v3195
        %v3457 = vunpack.c.l.b16 %v3196
        %v3458 = vunpack.c.h.b16 %v3196
        %v3459 = vunpack.c.l.b16 %v3197
        %v3460 = vunpack.c.h.b16 %v3197
        %v3461 = vunpack.c.l.b16 %v3198
        %v3462 = vunpack.c.h.b16 %v3198
        %v3463 = vunpack.c.l.b16 %v3199
        %v3464 = vunpack.c.h.b16 %v3199
        %v3465 = vunpack.c.l.b16 %v3200
        %v3466 = vunpack.c.h.b16 %v3200
        %v3467 = vunpack.c.l.b16 %v3201
        %v3468 = vunpack.c.h.b16 %v3201
        %v3469 = vunpack.c.l.b16 %v3202
        %v3470 = vunpack.c.h.b16 %v3202
        %v3471 = vunpack.c.l.b16 %v3203
        %v3472 = vunpack.c.h.b16 %v3203
        %v3473 = vunpack.c.l.b16 %v3204
        %v3474 = vunpack.c.h.b16 %v3204
        %v3475 = vunpack.c.l.b16 %v3205
        %v3476 = vunpack.c.h.b16 %v3205
        %v3477 = vunpack.c.l.b16 %v3206
        %v3478 = vunpack.c.h.b16 %v3206
        %v3479 = vunpack.c.l.b16 %v3207
        %v3480 = vunpack.c.h.b16 %v3207
        %v3481 = vunpack.c.l.b16 %v3208
        %v3482 = vunpack.c.h.b16 %v3208
        %v3483 = vunpack.c.l.b16 %v3209
        %v3484 = vunpack.c.h.b16 %v3209
        %v3485 = vunpack.c.l.b16 %v3210
        %v3486 = vunpack.c.h.b16 %v3210
        %v3487 = vunpack.c.l.b16 %v3211
        %v3488 = vunpack.c.h.b16 %v3211
        %v3489 = vunpack.c.l.b16 %v3212
        %v3490 = vunpack.c.h.b16 %v3212
        %v3491 = vunpack.c.l.b16 %v3213
        %v3492 = vunpack.c.h.b16 %v3213
        %v3493 = vunpack.c.l.b16 %v3214
        %v3494 = vunpack.c.h.b16 %v3214
        %v3495 = vunpack.c.l.b16 %v3215
        %v3496 = vunpack.c.h.b16 %v3215
        %v3497 = vunpack.c.l.b16 %v3216
        %v3498 = vunpack.c.h.b16 %v3216
        %v3499 = vunpack.c.l.b16 %v3217
        %v3500 = vunpack.c.h.b16 %v3217
        %v3501 = vunpack.c.l.b16 %v3218
        %v3502 = vunpack.c.h.b16 %v3218
        %v3503 = vunpack.c.l.b16 %v3219
        %v3504 = vunpack.c.h.b16 %v3219
        %v3505 = vunpack.c.l.b16 %v3220
        %v3506 = vunpack.c.h.b16 %v3220
        %v3507 = vunpack.c.l.b16 %v3221
        %v3508 = vunpack.c.h.b16 %v3221
        %v3509 = vunpack.c.l.b16 %v3222
        %v3510 = vunpack.c.h.b16 %v3222
        %v3511 = vunpack.c.l.b16 %v3223
        %v3512 = vunpack.c.h.b16 %v3223
        %v3513 = vunpack.c.l.b16 %v3224
        %v3514 = vunpack.c.h.b16 %v3224
        %v3515 = vunpack.c.l.b16 %v3225
        %v3516 = vunpack.c.h.b16 %v3225
        %v3517 = vpack.c.b16 %v3455, %v3453
        %v3518 = vpack.c.b16 %v3456, %v3454
        %v3519 = vpack.c.b16 %v3459, %v3457
        %v3520 = vpack.c.b16 %v3460, %v3458
        %v3521 = vpack.c.b16 %v3463, %v3461
        %v3522 = vpack.c.b16 %v3464, %v3462
        %v3523 = vpack.c.b16 %v3467, %v3465
        %v3524 = vpack.c.b16 %v3468, %v3466
        %v3525 = vpack.c.b16 %v3471, %v3469
        %v3526 = vpack.c.b16 %v3472, %v3470
        %v3527 = vpack.c.b16 %v3475, %v3473
        %v3528 = vpack.c.b16 %v3476, %v3474
        %v3529 = vpack.c.b16 %v3479, %v3477
        %v3530 = vpack.c.b16 %v3480, %v3478
        %v3531 = vpack.c.b16 %v3483, %v3481
        %v3532 = vpack.c.b16 %v3484, %v3482
        %v3533 = vpack.c.b16 %v3487, %v3485
        %v3534 = vpack.c.b16 %v3488, %v3486
        %v3535 = vpack.c.b16 %v3491, %v3489
        %v3536 = vpack.c.b16 %v3492, %v3490
        %v3537 = vpack.c.b16 %v3495, %v3493
        %v3538 = vpack.c.b16 %v3496, %v3494
        %v3539 = vpack.c.b16 %v3499, %v3497
        %v3540 = vpack.c.b16 %v3500, %v3498
        %v3541 = vpack.c.b16 %v3503, %v3501
        %v3542 = vpack.c.b16 %v3504, %v3502
        %v3543 = vpack.c.b16 %v3507, %v3505
        %v3544 = vpack.c.b16 %v3508, %v3506
        %v3545 = vpack.c.b16 %v3511, %v3509
        %v3546 = vpack.c.b16 %v3512, %v3510
        %v3547 = vpack.c.b16 %v3515, %v3513
        %v3548 = vpack.c.b16 %v3516, %v3514
        %3581 = vmatprep.subr.bf16.mxu0 %v3518
        %3582 = vmatpush1.bf16.msra.mxu0 %v3517
        %3583 = vmatprep.subr.bf16.mxu0 %v3520
        %3584 = vmatpush1.bf16.msra.mxu0 %v3519
        %3585 = vmatprep.subr.bf16.mxu0 %v3522
        %3586 = vmatpush1.bf16.msra.mxu0 %v3521
        %3587 = vmatprep.subr.bf16.mxu0 %v3524
        %3588 = vmatpush1.bf16.msra.mxu0 %v3523
        %3589 = vmatprep.subr.bf16.mxu0 %v3526
        %3590 = vmatpush1.bf16.msra.mxu0 %v3525
        %3591 = vmatprep.subr.bf16.mxu0 %v3528
        %3592 = vmatpush1.bf16.msra.mxu0 %v3527
        %3593 = vmatprep.subr.bf16.mxu0 %v3530
        %3594 = vmatpush1.bf16.msra.mxu0 %v3529
        %3595 = vmatprep.subr.bf16.mxu0 %v3532
        %3596 = vmatpush1.bf16.msra.mxu0 %v3531
        %3597 = vmatprep.subr.bf16.mxu0 %v3534
        %3598 = vmatpush1.bf16.msra.mxu0 %v3533
        %3599 = vmatprep.subr.bf16.mxu0 %v3536
        %3600 = vmatpush1.bf16.msra.mxu0 %v3535
        %3601 = vmatprep.subr.bf16.mxu0 %v3538
        %3602 = vmatpush1.bf16.msra.mxu0 %v3537
        %3603 = vmatprep.subr.bf16.mxu0 %v3540
        %3604 = vmatpush1.bf16.msra.mxu0 %v3539
        %3605 = vmatprep.subr.bf16.mxu0 %v3542
        %3606 = vmatpush1.bf16.msra.mxu0 %v3541
        %3607 = vmatprep.subr.bf16.mxu0 %v3544
        %3608 = vmatpush1.bf16.msra.mxu0 %v3543
        %3609 = vmatprep.subr.bf16.mxu0 %v3546
        %3610 = vmatpush1.bf16.msra.mxu0 %v3545
        %3611 = vmatprep.subr.bf16.mxu0 %v3548
        %3612 = vmatpush1.bf16.msra.mxu0 %v3547
        %3613 = vmatprep.mubr.bf16.mxu0 %v3316
        %3614 = vmatmul.mubr.bf16.gmra.mrb[0].mxu0 %v3299
        %v3615 = vpop.f32.mrb[0].mxu0
        %v3616 = vadd.f32 0.0, %v3615
        %v3617 = vpop.f32.mrb[0].mxu0
        %v3618 = vadd.f32 0.0, %v3617
        %v3619 = vpop.f32.mrb[0].mxu0
        %v3620 = vadd.f32 0.0, %v3619
        %v3621 = vpop.f32.mrb[0].mxu0
        %v3622 = vadd.f32 0.0, %v3621
        %3623 = vmatprep.mubr.bf16.mxu0 %v3334
        %3624 = vmatmul.mubr.bf16.gmra.mrb[0].mxu0 %v3325
        %v3625 = vpop.f32.mrb[0].mxu0
        %v3626 = vadd.f32 0.0, %v3625
        %v3627 = vpop.f32.mrb[0].mxu0
        %v3628 = vadd.f32 0.0, %v3627
        %v3629 = vpop.f32.mrb[0].mxu0
        %v3630 = vadd.f32 0.0, %v3629
        %v3631 = vpop.f32.mrb[0].mxu0
        %v3632 = vadd.f32 0.0, %v3631
        %3633 = vmatprep.mubr.bf16.mxu0 %v3352
        %3634 = vmatmul.mubr.bf16.gmra.mrb[0].mxu0 %v3343
        %v3635 = vpop.f32.mrb[0].mxu0
        %v3636 = vadd.f32 0.0, %v3635
        %v3637 = vpop.f32.mrb[0].mxu0
        %v3638 = vadd.f32 0.0, %v3637
        %v3639 = vpop.f32.mrb[0].mxu0
        %v3640 = vadd.f32 0.0, %v3639
        %v3641 = vpop.f32.mrb[0].mxu0
        %v3642 = vadd.f32 0.0, %v3641
        %3643 = vmatprep.mubr.bf16.mxu0 %v3370
        %3644 = vmatmul.mubr.bf16.gmra.mrb[0].mxu0 %v3361
        %v3645 = vpop.f32.mrb[0].mxu0
        %v3646 = vadd.f32 0.0, %v3645
        %v3647 = vpop.f32.mrb[0].mxu0
        %v3648 = vadd.f32 0.0, %v3647
        %v3649 = vpop.f32.mrb[0].mxu0
        %v3650 = vadd.f32 0.0, %v3649
        %v3651 = vpop.f32.mrb[0].mxu0
        %v3652 = vadd.f32 0.0, %v3651
        %3653 = vmatprep.mubr.bf16.mxu0 %v3388
        %3654 = vmatmul.mubr.bf16.gmra.mrb[0].mxu0 %v3379
        %v3655 = vpop.f32.mrb[0].mxu0
        %v3656 = vadd.f32 0.0, %v3655
        %v3657 = vpop.f32.mrb[0].mxu0
        %v3658 = vadd.f32 0.0, %v3657
        %v3659 = vpop.f32.mrb[0].mxu0
        %v3660 = vadd.f32 0.0, %v3659
        %v3661 = vpop.f32.mrb[0].mxu0
        %v3662 = vadd.f32 0.0, %v3661
        %3663 = vmatprep.mubr.bf16.mxu0 %v3406
        %3664 = vmatmul.mubr.bf16.gmra.mrb[0].mxu0 %v3397
        %v3665 = vpop.f32.mrb[0].mxu0
        %v3666 = vadd.f32 0.0, %v3665
        %v3667 = vpop.f32.mrb[0].mxu0
        %v3668 = vadd.f32 0.0, %v3667
        %v3669 = vpop.f32.mrb[0].mxu0
        %v3670 = vadd.f32 0.0, %v3669
        %v3671 = vpop.f32.mrb[0].mxu0
        %v3672 = vadd.f32 0.0, %v3671
        %3673 = vmatprep.mubr.bf16.mxu0 %v3405
        %3674 = vmatmul.mubr.bf16.gmra.mrb[0].mxu0 %v3396
        %v3675 = vpop.f32.mrb[0].mxu0
        %v3676 = vadd.f32 0.0, %v3675
        %v3677 = vpop.f32.mrb[0].mxu0
        %v3678 = vadd.f32 0.0, %v3677
        %v3679 = vpop.f32.mrb[0].mxu0
        %v3680 = vpop.f32.mrb[0].mxu0
        %3681 = vdwg.mxu0
        %v3682 = vadd.f32 %v3153, %v3616
        %v3683 = vadd.f32 %v3154, %v3618
        %v3684 = vadd.f32 %v3155, %v3620
        %v3685 = vadd.f32 %v3156, %v3622
        %v3686 = vadd.f32 %v3157, %v3626
        %v3687 = vadd.f32 %v3158, %v3628
        %v3688 = vadd.f32 %v3159, %v3630
        %v3689 = vadd.f32 %v3160, %v3632
        %v3690 = vadd.f32 %v3161, %v3636
        %v3691 = vadd.f32 %v3162, %v3638
        %v3692 = vadd.f32 %v3163, %v3640
        %v3693 = vadd.f32 %v3164, %v3642
        %v3694 = vadd.f32 %v3165, %v3646
        %v3695 = vadd.f32 %v3166, %v3648
        %v3696 = vadd.f32 %v3167, %v3650
        %v3697 = vadd.f32 %v3168, %v3652
        %v3698 = vadd.f32 %v3169, %v3656
        %v3699 = vadd.f32 %v3170, %v3658
        %v3700 = vadd.f32 %v3171, %v3660
        %v3701 = vadd.f32 %v3172, %v3662
        %v3702 = vadd.f32 %v3173, %v3666
        %v3703 = vadd.f32 %v3174, %v3668
        %v3704 = vadd.f32 %v3175, %v3670
        %v3705 = vadd.f32 %v3176, %v3672
        %v3706 = vadd.f32 %v3177, %v3676
        %v3707 = vadd.f32 %v3178, %v3678
        %v3708 = vld [vmem:[%s279 + $0x10] sm:$0x88]
        %s3709 = scalar_lea.vmem [#allocation5], 2048
        %v3710 = vld [vmem:[%s3709] sm:$0xff]
        %v3711 = vld [vmem:[%s3709 + $0x8] sm:$0xff]
        %v3712 = vld [vmem:[%s3709 + $0x10] sm:$0xff]
        %v3713 = vld [vmem:[%s3709 + $0x18] sm:$0xff]
        %v3714 = vld [vmem:[%s3709 + $0x20] sm:$0xff]
        %v3715 = vld [vmem:[%s3709 + $0x28] sm:$0xff]
        %v3716 = vld [vmem:[%s3709 + $0x30] sm:$0xff]
        %v3717 = vld [vmem:[%s3709 + $0x38] sm:$0xff]
        %v3718 = vld [vmem:[%s3709 + $0x40] sm:$0xff]
        %v3719 = vld [vmem:[%s3709 + $0x48] sm:$0xff]
        %v3720 = vld [vmem:[%s3709 + $0x50] sm:$0xff]
        %v3721 = vld [vmem:[%s3709 + $0x58] sm:$0xff]
        %v3722 = vld [vmem:[%s3709 + $0x60] sm:$0xff]
        %v3723 = vld [vmem:[%s3709 + $0x68] sm:$0xff]
        %v3724 = vld [vmem:[%s3709 + $0x70] sm:$0xff]
        %v3725 = vld [vmem:[%s3709 + $0x78] sm:$0xff]
        %v3726 = vld [vmem:[%s3709 + $0x80] sm:$0xff]
        %v3727 = vld [vmem:[%s3709 + $0x88] sm:$0xff]
        %v3728 = vld [vmem:[%s3709 + $0x90] sm:$0xff]
        %v3729 = vld [vmem:[%s3709 + $0x98] sm:$0xff]
        %v3730 = vld [vmem:[%s3709 + $0xa0] sm:$0xff]
        %v3731 = vld [vmem:[%s3709 + $0xa8] sm:$0xff]
        %v3732 = vld [vmem:[%s3709 + $0xb0] sm:$0xff]
        %v3733 = vld [vmem:[%s3709 + $0xb8] sm:$0xff]
        %v3734 = vld [vmem:[%s3709 + $0xc0] sm:$0xff]
        %v3735 = vld [vmem:[%s3709 + $0xc8] sm:$0xff]
        %v3736 = vld [vmem:[%s3709 + $0xd0] sm:$0xff]
        %v3737 = vld [vmem:[%s3709 + $0xd8] sm:$0xff]
        %v3738 = vld [vmem:[%s3709 + $0xe0] sm:$0xff]
        %v3739 = vld [vmem:[%s3709 + $0xe8] sm:$0xff]
        %v3740 = vld [vmem:[%s3709 + $0xf0] sm:$0xff]
        %v3741 = vld [vmem:[%s3709 + $0xf8] sm:$0xff]
        %v3743 = vunpack.c.l.b16 %v3708
        %v3744 = vunpack.c.h.b16 %v3708
        %v3745 = vpack.c.b16 %v3242, %v3743
        %v3746 = vpack.c.b16 %v3243, %v3744
        %vm3747 = vcmask 1044480
        %v3748 = vrot.slane %v3745, 3
        %v3749 = vrot.slane %v3270, 3
        %v3750 = vsel %vm3747, %v3748, %v3749
        %v3751 = vrot.slane %v3746, 3
        %v3752 = vrot.slane %v3271, 3
        %v3753 = vsel %vm3747, %v3751, %v3752
        %v3754 = vrot.slane %v3272, 3
        %v3755 = vsel %vm3747, %v3749, %v3754
        %v3756 = vrot.slane %v3273, 3
        %v3757 = vsel %vm3747, %v3752, %v3756
        %v3758 = vrot.slane %v3274, 3
        %v3759 = vsel %vm3747, %v3754, %v3758
        %v3760 = vrot.slane %v3275, 3
        %v3761 = vsel %vm3747, %v3756, %v3760
        %v3762 = vrot.slane %v3276, 3
        %v3763 = vsel %vm3747, %v3758, %v3762
        %v3764 = vrot.slane %v3277, 3
        %v3765 = vsel %vm3747, %v3760, %v3764
        %v3766 = vrot.slane %v3278, 3
        %v3767 = vsel %vm3747, %v3762, %v3766
        %v3768 = vrot.slane %v3279, 3
        %v3769 = vsel %vm3747, %v3764, %v3768
        %v3770 = vrot.slane %v3280, 3
        %v3771 = vsel %vm3747, %v3766, %v3770
        %v3772 = vrot.slane %v3281, 3
        %v3773 = vsel %vm3747, %v3768, %v3772
        %v3820 = vunpack.c.l.b16 %v3710
        %v3821 = vunpack.c.h.b16 %v3710
        %v3822 = vunpack.c.l.b16 %v3711
        %v3823 = vunpack.c.h.b16 %v3711
        %v3824 = vunpack.c.l.b16 %v3712
        %v3825 = vunpack.c.h.b16 %v3712
        %v3826 = vunpack.c.l.b16 %v3713
        %v3827 = vunpack.c.h.b16 %v3713
        %v3828 = vunpack.c.l.b16 %v3714
        %v3829 = vunpack.c.h.b16 %v3714
        %v3830 = vunpack.c.l.b16 %v3715
        %v3831 = vunpack.c.h.b16 %v3715
        %v3832 = vunpack.c.l.b16 %v3716
        %v3833 = vunpack.c.h.b16 %v3716
        %v3834 = vunpack.c.l.b16 %v3717
        %v3835 = vunpack.c.h.b16 %v3717
        %v3836 = vunpack.c.l.b16 %v3718
        %v3837 = vunpack.c.h.b16 %v3718
        %v3838 = vunpack.c.l.b16 %v3719
        %v3839 = vunpack.c.h.b16 %v3719
        %v3840 = vunpack.c.l.b16 %v3720
        %v3841 = vunpack.c.h.b16 %v3720
        %v3842 = vunpack.c.l.b16 %v3721
        %v3843 = vunpack.c.h.b16 %v3721
        %v3844 = vunpack.c.l.b16 %v3722
        %v3845 = vunpack.c.h.b16 %v3722
        %v3846 = vunpack.c.l.b16 %v3723
        %v3847 = vunpack.c.h.b16 %v3723
        %v3848 = vunpack.c.l.b16 %v3724
        %v3849 = vunpack.c.h.b16 %v3724
        %v3850 = vunpack.c.l.b16 %v3725
        %v3851 = vunpack.c.h.b16 %v3725
        %v3852 = vunpack.c.l.b16 %v3726
        %v3853 = vunpack.c.h.b16 %v3726
        %v3854 = vunpack.c.l.b16 %v3727
        %v3855 = vunpack.c.h.b16 %v3727
        %v3856 = vunpack.c.l.b16 %v3728
        %v3857 = vunpack.c.h.b16 %v3728
        %v3858 = vunpack.c.l.b16 %v3729
        %v3859 = vunpack.c.h.b16 %v3729
        %v3860 = vunpack.c.l.b16 %v3730
        %v3861 = vunpack.c.h.b16 %v3730
        %v3862 = vunpack.c.l.b16 %v3731
        %v3863 = vunpack.c.h.b16 %v3731
        %v3864 = vunpack.c.l.b16 %v3732
        %v3865 = vunpack.c.h.b16 %v3732
        %v3866 = vunpack.c.l.b16 %v3733
        %v3867 = vunpack.c.h.b16 %v3733
        %v3868 = vunpack.c.l.b16 %v3734
        %v3869 = vunpack.c.h.b16 %v3734
        %v3870 = vunpack.c.l.b16 %v3735
        %v3871 = vunpack.c.h.b16 %v3735
        %v3872 = vunpack.c.l.b16 %v3736
        %v3873 = vunpack.c.h.b16 %v3736
        %v3874 = vunpack.c.l.b16 %v3737
        %v3875 = vunpack.c.h.b16 %v3737
        %v3876 = vunpack.c.l.b16 %v3738
        %v3877 = vunpack.c.h.b16 %v3738
        %v3878 = vunpack.c.l.b16 %v3739
        %v3879 = vunpack.c.h.b16 %v3739
        %v3880 = vunpack.c.l.b16 %v3740
        %v3881 = vunpack.c.h.b16 %v3740
        %v3882 = vunpack.c.l.b16 %v3741
        %v3883 = vunpack.c.h.b16 %v3741
        %v3884 = vpack.c.b16 %v3822, %v3820
        %v3885 = vpack.c.b16 %v3823, %v3821
        %v3886 = vpack.c.b16 %v3826, %v3824
        %v3887 = vpack.c.b16 %v3827, %v3825
        %v3888 = vpack.c.b16 %v3830, %v3828
        %v3889 = vpack.c.b16 %v3831, %v3829
        %v3890 = vpack.c.b16 %v3834, %v3832
        %v3891 = vpack.c.b16 %v3835, %v3833
        %v3892 = vpack.c.b16 %v3838, %v3836
        %v3893 = vpack.c.b16 %v3839, %v3837
        %v3894 = vpack.c.b16 %v3842, %v3840
        %v3895 = vpack.c.b16 %v3843, %v3841
        %v3896 = vpack.c.b16 %v3846, %v3844
        %v3897 = vpack.c.b16 %v3847, %v3845
        %v3898 = vpack.c.b16 %v3850, %v3848
        %v3899 = vpack.c.b16 %v3851, %v3849
        %v3900 = vpack.c.b16 %v3854, %v3852
        %v3901 = vpack.c.b16 %v3855, %v3853
        %v3902 = vpack.c.b16 %v3858, %v3856
        %v3903 = vpack.c.b16 %v3859, %v3857
        %v3904 = vpack.c.b16 %v3862, %v3860
        %v3905 = vpack.c.b16 %v3863, %v3861
        %v3906 = vpack.c.b16 %v3866, %v3864
        %v3907 = vpack.c.b16 %v3867, %v3865
        %v3908 = vpack.c.b16 %v3870, %v3868
        %v3909 = vpack.c.b16 %v3871, %v3869
        %v3910 = vpack.c.b16 %v3874, %v3872
        %v3911 = vpack.c.b16 %v3875, %v3873
        %v3912 = vpack.c.b16 %v3878, %v3876
        %v3913 = vpack.c.b16 %v3879, %v3877
        %v3914 = vpack.c.b16 %v3882, %v3880
        %v3915 = vpack.c.b16 %v3883, %v3881
        %3948 = vmatprep.subr.bf16.mxu0 %v3885
        %3949 = vmatpush1.bf16.msra.mxu0 %v3884
        %3950 = vmatprep.subr.bf16.mxu0 %v3887
        %3951 = vmatpush1.bf16.msra.mxu0 %v3886
        %3952 = vmatprep.subr.bf16.mxu0 %v3889
        %3953 = vmatpush1.bf16.msra.mxu0 %v3888
        %3954 = vmatprep.subr.bf16.mxu0 %v3891
        %3955 = vmatpush1.bf16.msra.mxu0 %v3890
        %3956 = vmatprep.subr.bf16.mxu0 %v3893
        %3957 = vmatpush1.bf16.msra.mxu0 %v3892
        %3958 = vmatprep.subr.bf16.mxu0 %v3895
        %3959 = vmatpush1.bf16.msra.mxu0 %v3894
        %3960 = vmatprep.subr.bf16.mxu0 %v3897
        %3961 = vmatpush1.bf16.msra.mxu0 %v3896
        %3962 = vmatprep.subr.bf16.mxu0 %v3899
        %3963 = vmatpush1.bf16.msra.mxu0 %v3898
        %3964 = vmatprep.subr.bf16.mxu0 %v3901
        %3965 = vmatpush1.bf16.msra.mxu0 %v3900
        %3966 = vmatprep.subr.bf16.mxu0 %v3903
        %3967 = vmatpush1.bf16.msra.mxu0 %v3902
        %3968 = vmatprep.subr.bf16.mxu0 %v3905
        %3969 = vmatpush1.bf16.msra.mxu0 %v3904
        %3970 = vmatprep.subr.bf16.mxu0 %v3907
        %3971 = vmatpush1.bf16.msra.mxu0 %v3906
        %3972 = vmatprep.subr.bf16.mxu0 %v3909
        %3973 = vmatpush1.bf16.msra.mxu0 %v3908
        %3974 = vmatprep.subr.bf16.mxu0 %v3911
        %3975 = vmatpush1.bf16.msra.mxu0 %v3910
        %3976 = vmatprep.subr.bf16.mxu0 %v3913
        %3977 = vmatpush1.bf16.msra.mxu0 %v3912
        %3978 = vmatprep.subr.bf16.mxu0 %v3915
        %3979 = vmatpush1.bf16.msra.mxu0 %v3914
        %3980 = vmatprep.mubr.bf16.mxu0 %v3753
        %3981 = vmatmul.mubr.bf16.gmra.mrb[0].mxu0 %v3750
        %v3982 = vpop.f32.mrb[0].mxu0
        %v3983 = vadd.f32 0.0, %v3982
        %v3984 = vpop.f32.mrb[0].mxu0
        %v3985 = vadd.f32 0.0, %v3984
        %v3986 = vpop.f32.mrb[0].mxu0
        %v3987 = vadd.f32 0.0, %v3986
        %v3988 = vpop.f32.mrb[0].mxu0
        %v3989 = vadd.f32 0.0, %v3988
        %3990 = vmatprep.mubr.bf16.mxu0 %v3757
        %3991 = vmatmul.mubr.bf16.gmra.mrb[0].mxu0 %v3755
        %v3992 = vpop.f32.mrb[0].mxu0
        %v3993 = vadd.f32 0.0, %v3992
        %v3994 = vpop.f32.mrb[0].mxu0
        %v3995 = vadd.f32 0.0, %v3994
        %v3996 = vpop.f32.mrb[0].mxu0
        %v3997 = vadd.f32 0.0, %v3996
        %v3998 = vpop.f32.mrb[0].mxu0
        %v3999 = vadd.f32 0.0, %v3998
        %4000 = vmatprep.mubr.bf16.mxu0 %v3761
        %4001 = vmatmul.mubr.bf16.gmra.mrb[0].mxu0 %v3759
        %v4002 = vpop.f32.mrb[0].mxu0
        %v4003 = vadd.f32 0.0, %v4002
        %v4004 = vpop.f32.mrb[0].mxu0
        %v4005 = vadd.f32 0.0, %v4004
        %v4006 = vpop.f32.mrb[0].mxu0
        %v4007 = vadd.f32 0.0, %v4006
        %v4008 = vpop.f32.mrb[0].mxu0
        %v4009 = vadd.f32 0.0, %v4008
        %4010 = vmatprep.mubr.bf16.mxu0 %v3765
        %4011 = vmatmul.mubr.bf16.gmra.mrb[0].mxu0 %v3763
        %v4012 = vpop.f32.mrb[0].mxu0
        %v4013 = vadd.f32 0.0, %v4012
        %v4014 = vpop.f32.mrb[0].mxu0
        %v4015 = vadd.f32 0.0, %v4014
        %v4016 = vpop.f32.mrb[0].mxu0
        %v4017 = vadd.f32 0.0, %v4016
        %v4018 = vpop.f32.mrb[0].mxu0
        %v4019 = vadd.f32 0.0, %v4018
        %4020 = vmatprep.mubr.bf16.mxu0 %v3769
        %4021 = vmatmul.mubr.bf16.gmra.mrb[0].mxu0 %v3767
        %v4022 = vpop.f32.mrb[0].mxu0
        %v4023 = vadd.f32 0.0, %v4022
        %v4024 = vpop.f32.mrb[0].mxu0
        %v4025 = vadd.f32 0.0, %v4024
        %v4026 = vpop.f32.mrb[0].mxu0
        %v4027 = vadd.f32 0.0, %v4026
        %v4028 = vpop.f32.mrb[0].mxu0
        %v4029 = vadd.f32 0.0, %v4028
        %4030 = vmatprep.mubr.bf16.mxu0 %v3773
        %4031 = vmatmul.mubr.bf16.gmra.mrb[0].mxu0 %v3771
        %v4032 = vpop.f32.mrb[0].mxu0
        %v4033 = vadd.f32 0.0, %v4032
        %v4034 = vpop.f32.mrb[0].mxu0
        %v4035 = vadd.f32 0.0, %v4034
        %v4036 = vpop.f32.mrb[0].mxu0
        %v4037 = vadd.f32 0.0, %v4036
        %v4038 = vpop.f32.mrb[0].mxu0
        %v4039 = vadd.f32 0.0, %v4038
        %4040 = vmatprep.mubr.bf16.mxu0 %v3772
        %4041 = vmatmul.mubr.bf16.gmra.mrb[0].mxu0 %v3770
        %v4042 = vpop.f32.mrb[0].mxu0
        %v4043 = vadd.f32 0.0, %v4042
        %v4044 = vpop.f32.mrb[0].mxu0
        %v4045 = vadd.f32 0.0, %v4044
        %v4046 = vpop.f32.mrb[0].mxu0
        %v4047 = vpop.f32.mrb[0].mxu0
        %4048 = vdwg.mxu0
        %v4049 = vadd.f32 %v3682, %v3983
        %v4050 = vadd.f32 %v3683, %v3985
        %v4051 = vadd.f32 %v3684, %v3987
        %v4052 = vadd.f32 %v3685, %v3989
        %v4053 = vadd.f32 %v3686, %v3993
        %v4054 = vadd.f32 %v3687, %v3995
        %v4055 = vadd.f32 %v3688, %v3997
        %v4056 = vadd.f32 %v3689, %v3999
        %v4057 = vadd.f32 %v3690, %v4003
        %v4058 = vadd.f32 %v3691, %v4005
        %v4059 = vadd.f32 %v3692, %v4007
        %v4060 = vadd.f32 %v3693, %v4009
        %v4061 = vadd.f32 %v3694, %v4013
        %v4062 = vadd.f32 %v3695, %v4015
        %v4063 = vadd.f32 %v3696, %v4017
        %v4064 = vadd.f32 %v3697, %v4019
        %v4065 = vadd.f32 %v3698, %v4023
        %v4066 = vadd.f32 %v3699, %v4025
        %v4067 = vadd.f32 %v3700, %v4027
        %v4068 = vadd.f32 %v3701, %v4029
        %v4069 = vadd.f32 %v3702, %v4033
        %v4070 = vadd.f32 %v3703, %v4035
        %v4071 = vadd.f32 %v3704, %v4037
        %v4072 = vadd.f32 %v3705, %v4039
        %v4073 = vadd.f32 %v3706, %v4043
        %v4074 = vadd.f32 %v3707, %v4045
        %v4075 = vld [vmem:[#allocation7] sm:$0x3]
        %v4077 = vlaneseq
        %v4078 = vshrl.u32 %v4077, 7
        %v4079 = vsub.s32 0, %v4078
        %v4080 = vrot.slane %v4075, %v4079
        %v4081 = vlaneseq
        %v4082 = vshrl.u32 %v4081, 7
        %v4083 = vsub.s32 1, %v4082
        %v4084 = vrot.slane %v4075, %v4083
        %v4087 = vadd.f32 %v4049, %v4080
        %v4088 = vadd.f32 %v4050, %v4084
        %v4089 = vadd.f32 %v4051, %v4080
        %v4090 = vadd.f32 %v4052, %v4084
        %v4091 = vadd.f32 %v4053, %v4080
        %v4092 = vadd.f32 %v4054, %v4084
        %v4093 = vadd.f32 %v4055, %v4080
        %v4094 = vadd.f32 %v4056, %v4084
        %v4095 = vadd.f32 %v4057, %v4080
        %v4096 = vadd.f32 %v4058, %v4084
        %v4097 = vadd.f32 %v4059, %v4080
        %v4098 = vadd.f32 %v4060, %v4084
        %v4099 = vadd.f32 %v4061, %v4080
        %v4100 = vadd.f32 %v4062, %v4084
        %v4101 = vadd.f32 %v4063, %v4080
        %v4102 = vadd.f32 %v4064, %v4084
        %v4103 = vadd.f32 %v4065, %v4080
        %v4104 = vadd.f32 %v4066, %v4084
        %v4105 = vadd.f32 %v4067, %v4080
        %v4106 = vadd.f32 %v4068, %v4084
        %v4107 = vadd.f32 %v4069, %v4080
        %v4108 = vadd.f32 %v4070, %v4084
        %v4109 = vadd.f32 %v4071, %v4080
        %v4110 = vadd.f32 %v4072, %v4084
        %v4111 = vadd.f32 %v4073, %v4080
        %v4112 = vadd.f32 %v4074, %v4084
        %4113 = vst [vmem:[%s315] sm:$0xff] %v4087
        %4114 = vst [vmem:[%s315 + $0x8] sm:$0xff] %v4088
        %4115 = vst [vmem:[%s315 + $0x10] sm:$0xff] %v4089
        %4116 = vst [vmem:[%s315 + $0x18] sm:$0xff] %v4090
        %4117 = vst [vmem:[%s315 + $0x20] sm:$0xff] %v4091
        %4118 = vst [vmem:[%s315 + $0x28] sm:$0xff] %v4092
        %4119 = vst [vmem:[%s315 + $0x30] sm:$0xff] %v4093
        %4120 = vst [vmem:[%s315 + $0x38] sm:$0xff] %v4094
        %4121 = vst [vmem:[%s315 + $0x40] sm:$0xff] %v4095
        %4122 = vst [vmem:[%s315 + $0x48] sm:$0xff] %v4096
        %4123 = vst [vmem:[%s315 + $0x50] sm:$0xff] %v4097
        %4124 = vst [vmem:[%s315 + $0x58] sm:$0xff] %v4098
        %4125 = vst [vmem:[%s315 + $0x60] sm:$0xff] %v4099
        %4126 = vst [vmem:[%s315 + $0x68] sm:$0xff] %v4100
        %4127 = vst [vmem:[%s315 + $0x70] sm:$0xff] %v4101
        %4128 = vst [vmem:[%s315 + $0x78] sm:$0xff] %v4102
        %4129 = vst [vmem:[%s315 + $0x80] sm:$0xff] %v4103
        %4130 = vst [vmem:[%s315 + $0x88] sm:$0xff] %v4104
        %4131 = vst [vmem:[%s315 + $0x90] sm:$0xff] %v4105
        %4132 = vst [vmem:[%s315 + $0x98] sm:$0xff] %v4106
        %4133 = vst [vmem:[%s315 + $0xa0] sm:$0xff] %v4107
        %4134 = vst [vmem:[%s315 + $0xa8] sm:$0xff] %v4108
        %4135 = vst [vmem:[%s315 + $0xb0] sm:$0xff] %v4109
        %4136 = vst [vmem:[%s315 + $0xb8] sm:$0xff] %v4110
        %4137 = vst [vmem:[%s315 + $0xc0] sm:$0xf] %v4111
        %4138 = vst [vmem:[%s315 + $0xc8] sm:$0xf] %v4112
        %v4139 = vld [vmem:[#allocation8] sm:$0xff]
        %v4140 = vld [vmem:[#allocation8 + $0x8] sm:$0xff]
        %v4141 = vld [vmem:[#allocation8 + $0x10] sm:$0xff]
        %v4142 = vld [vmem:[#allocation8 + $0x18] sm:$0xff]
        %v4143 = vld [vmem:[#allocation8 + $0x20] sm:$0xff]
        %v4144 = vld [vmem:[#allocation8 + $0x28] sm:$0xff]
        %v4145 = vld [vmem:[#allocation8 + $0x30] sm:$0xff]
        %v4146 = vld [vmem:[#allocation8 + $0x38] sm:$0xff]
        %v4147 = vld [vmem:[#allocation8 + $0x40] sm:$0xff]
        %v4148 = vld [vmem:[#allocation8 + $0x48] sm:$0xff]
        %v4149 = vld [vmem:[#allocation8 + $0x50] sm:$0xff]
        %v4150 = vld [vmem:[#allocation8 + $0x58] sm:$0xff]
        %v4151 = vld [vmem:[#allocation8 + $0x60] sm:$0xf]
        %4153 = vset.pattern.permute.xlu0 0
        %4154 = vperm.xlu0 %4153, %v4139
        %v4155 = vpop.permute.xlu0 %4154
        %4158 = vset.pattern.permute.xlu0 0
        %4159 = vperm.xlu0 %4158, %v4140
        %v4160 = vpop.permute.xlu0 %4159
        %4163 = vset.pattern.permute.xlu0 0
        %4164 = vperm.xlu0 %4163, %v4141
        %v4165 = vpop.permute.xlu0 %4164
        %4168 = vset.pattern.permute.xlu0 0
        %4169 = vperm.xlu0 %4168, %v4142
        %v4170 = vpop.permute.xlu0 %4169
        %4173 = vset.pattern.permute.xlu0 0
        %4174 = vperm.xlu0 %4173, %v4143
        %v4175 = vpop.permute.xlu0 %4174
        %4178 = vset.pattern.permute.xlu0 0
        %4179 = vperm.xlu0 %4178, %v4144
        %v4180 = vpop.permute.xlu0 %4179
        %4183 = vset.pattern.permute.xlu0 0
        %4184 = vperm.xlu0 %4183, %v4145
        %v4185 = vpop.permute.xlu0 %4184
        %4188 = vset.pattern.permute.xlu0 0
        %4189 = vperm.xlu0 %4188, %v4146
        %v4190 = vpop.permute.xlu0 %4189
        %4193 = vset.pattern.permute.xlu0 0
        %4194 = vperm.xlu0 %4193, %v4147
        %v4195 = vpop.permute.xlu0 %4194
        %4198 = vset.pattern.permute.xlu0 0
        %4199 = vperm.xlu0 %4198, %v4148
        %v4200 = vpop.permute.xlu0 %4199
        %4203 = vset.pattern.permute.xlu0 0
        %4204 = vperm.xlu0 %4203, %v4149
        %v4205 = vpop.permute.xlu0 %4204
        %4208 = vset.pattern.permute.xlu0 0
        %4209 = vperm.xlu0 %4208, %v4150
        %v4210 = vpop.permute.xlu0 %4209
        %4213 = vset.pattern.permute.xlu0 0
        %4214 = vperm.xlu0 %4213, %v4151
        %v4215 = vpop.permute.xlu0 %4214
        %v4217 = vmul.f32 %v4087, %v4155
        %v4218 = vmul.f32 %v4088, %v4155
        %v4219 = vmul.f32 %v4089, %v4160
        %v4220 = vmul.f32 %v4090, %v4160
        %v4221 = vmul.f32 %v4091, %v4165
        %v4222 = vmul.f32 %v4092, %v4165
        %v4223 = vmul.f32 %v4093, %v4170
        %v4224 = vmul.f32 %v4094, %v4170
        %v4225 = vmul.f32 %v4095, %v4175
        %v4226 = vmul.f32 %v4096, %v4175
        %v4227 = vmul.f32 %v4097, %v4180
        %v4228 = vmul.f32 %v4098, %v4180
        %v4229 = vmul.f32 %v4099, %v4185
        %v4230 = vmul.f32 %v4100, %v4185
        %v4231 = vmul.f32 %v4101, %v4190
        %v4232 = vmul.f32 %v4102, %v4190
        %v4233 = vmul.f32 %v4103, %v4195
        %v4234 = vmul.f32 %v4104, %v4195
        %v4235 = vmul.f32 %v4105, %v4200
        %v4236 = vmul.f32 %v4106, %v4200
        %v4237 = vmul.f32 %v4107, %v4205
        %v4238 = vmul.f32 %v4108, %v4205
        %v4239 = vmul.f32 %v4109, %v4210
        %v4240 = vmul.f32 %v4110, %v4210
        %v4241 = vmul.f32 %v4111, %v4215
        %v4242 = vmul.f32 %v4112, %v4215
        %v4243 = vadd.f32 %v4217, %v4219
        %v4244 = vadd.f32 %v4243, %v4221
        %v4245 = vadd.f32 %v4244, %v4223
        %v4246 = vadd.f32 %v4245, %v4225
        %v4247 = vadd.f32 %v4246, %v4227
        %v4248 = vadd.f32 %v4247, %v4229
        %v4249 = vadd.f32 %v4248, %v4231
        %v4250 = vadd.f32 %v4249, %v4233
        %v4251 = vadd.f32 %v4250, %v4235
        %v4252 = vadd.f32 %v4251, %v4237
        %v4253 = vadd.f32 %v4252, %v4239
        %vm4254 = vcmask 1043456
        %v4255 = vsel %vm4254, %v4241, 0.0
        %v4256 = vadd.f32 %v4253, %v4255
        %v4257 = vrot.slane %v4256, 4
        %v4258 = vadd.f32 %v4256, %v4257
        %v4259 = vrot.slane %v4258, 2
        %v4260 = vadd.f32 %v4258, %v4259
        %v4261 = vrot.slane %v4260, 1
        %v4262 = vadd.f32 %v4260, %v4261
        %v4263 = vadd.f32 %v4218, %v4220
        %v4264 = vadd.f32 %v4263, %v4222
        %v4265 = vadd.f32 %v4264, %v4224
        %v4266 = vadd.f32 %v4265, %v4226
        %v4267 = vadd.f32 %v4266, %v4228
        %v4268 = vadd.f32 %v4267, %v4230
        %v4269 = vadd.f32 %v4268, %v4232
        %v4270 = vadd.f32 %v4269, %v4234
        %v4271 = vadd.f32 %v4270, %v4236
        %v4272 = vadd.f32 %v4271, %v4238
        %v4273 = vadd.f32 %v4272, %v4240
        %v4274 = vsel %vm4254, %v4242, 0.0
        %v4275 = vadd.f32 %v4273, %v4274
        %v4276 = vrot.slane %v4275, 4
        %v4277 = vadd.f32 %v4275, %v4276
        %v4278 = vrot.slane %v4277, 2
        %v4279 = vadd.f32 %v4277, %v4278
        %v4280 = vrot.slane %v4279, 1
        %v4281 = vadd.f32 %v4279, %v4280
        %v4284 = vcombine.low %v4262, %v4281
        %v4286 = vunpack.c.l.s4 1966171168
        %v4287 = vunpack.c.0.s8 %v4286
        %v4288 = vlaneseq
        %v4289 = vshrl.u32 %v4288, 7
        %v4290 = vsub.s32 %v4287, %v4289
        %v4291 = vrot.slane %v4284, %v4290
        %v4293 = vunpack.c.l.s4 1966171168
        %v4294 = vunpack.c.0.s8 %v4293
        %v4295 = vlaneseq
        %v4296 = vshrl.u32 %v4295, 7
        %v4297 = vsub.s32 %v4294, %v4296
        %v4298 = vrot.slane %v4291, %v4297
        %v4300 = vlaneseq
        %vm4301 = vcmp.ge.s32.totalorder %v4300, 0
        %vm4302 = vcmp.lt.s32.totalorder %v4300, 256
        %vm4303 = vmand %vm4301, %vm4302
        %4304 = vst.msk [vmem:[%s322] sm:$0x3] %vm4303, %v4298
        %v4305 = vmul.f32 %v4217, %v4087
        %v4306 = vmul.f32 %v4218, %v4088
        %v4307 = vmul.f32 %v4219, %v4089
        %v4308 = vmul.f32 %v4220, %v4090
        %v4309 = vmul.f32 %v4221, %v4091
        %v4310 = vmul.f32 %v4222, %v4092
        %v4311 = vmul.f32 %v4223, %v4093
        %v4312 = vmul.f32 %v4224, %v4094
        %v4313 = vmul.f32 %v4225, %v4095
        %v4314 = vmul.f32 %v4226, %v4096
        %v4315 = vmul.f32 %v4227, %v4097
        %v4316 = vmul.f32 %v4228, %v4098
        %v4317 = vmul.f32 %v4229, %v4099
        %v4318 = vmul.f32 %v4230, %v4100
        %v4319 = vmul.f32 %v4231, %v4101
        %v4320 = vmul.f32 %v4232, %v4102
        %v4321 = vmul.f32 %v4233, %v4103
        %v4322 = vmul.f32 %v4234, %v4104
        %v4323 = vmul.f32 %v4235, %v4105
        %v4324 = vmul.f32 %v4236, %v4106
        %v4325 = vmul.f32 %v4237, %v4107
        %v4326 = vmul.f32 %v4238, %v4108
        %v4327 = vmul.f32 %v4239, %v4109
        %v4328 = vmul.f32 %v4240, %v4110
        %v4329 = vmul.f32 %v4241, %v4111
        %v4330 = vmul.f32 %v4242, %v4112
        %v4331 = vadd.f32 %v4305, %v4307
        %v4332 = vadd.f32 %v4331, %v4309
        %v4333 = vadd.f32 %v4332, %v4311
        %v4334 = vadd.f32 %v4333, %v4313
        %v4335 = vadd.f32 %v4334, %v4315
        %v4336 = vadd.f32 %v4335, %v4317
        %v4337 = vadd.f32 %v4336, %v4319
        %v4338 = vadd.f32 %v4337, %v4321
        %v4339 = vadd.f32 %v4338, %v4323
        %v4340 = vadd.f32 %v4339, %v4325
        %v4341 = vadd.f32 %v4340, %v4327
        %v4342 = vsel %vm4254, %v4329, 0.0
        %v4343 = vadd.f32 %v4341, %v4342
        %v4344 = vrot.slane %v4343, 4
        %v4345 = vadd.f32 %v4343, %v4344
        %v4346 = vrot.slane %v4345, 2
        %v4347 = vadd.f32 %v4345, %v4346
        %v4348 = vrot.slane %v4347, 1
        %v4349 = vadd.f32 %v4347, %v4348
        %v4350 = vadd.f32 %v4306, %v4308
        %v4351 = vadd.f32 %v4350, %v4310
        %v4352 = vadd.f32 %v4351, %v4312
        %v4353 = vadd.f32 %v4352, %v4314
        %v4354 = vadd.f32 %v4353, %v4316
        %v4355 = vadd.f32 %v4354, %v4318
        %v4356 = vadd.f32 %v4355, %v4320
        %v4357 = vadd.f32 %v4356, %v4322
        %v4358 = vadd.f32 %v4357, %v4324
        %v4359 = vadd.f32 %v4358, %v4326
        %v4360 = vadd.f32 %v4359, %v4328
        %v4361 = vsel %vm4254, %v4330, 0.0
        %v4362 = vadd.f32 %v4360, %v4361
        %v4363 = vrot.slane %v4362, 4
        %v4364 = vadd.f32 %v4362, %v4363
        %v4365 = vrot.slane %v4364, 2
        %v4366 = vadd.f32 %v4364, %v4365
        %v4367 = vrot.slane %v4366, 1
        %v4368 = vadd.f32 %v4366, %v4367
        %v4371 = vcombine.low %v4349, %v4368
        %v4373 = vunpack.c.l.s4 1966171168
        %v4374 = vunpack.c.0.s8 %v4373
        %v4375 = vlaneseq
        %v4376 = vshrl.u32 %v4375, 7
        %v4377 = vsub.s32 %v4374, %v4376
        %v4378 = vrot.slane %v4371, %v4377
        %v4380 = vunpack.c.l.s4 1966171168
        %v4381 = vunpack.c.0.s8 %v4380
        %v4382 = vlaneseq
        %v4383 = vshrl.u32 %v4382, 7
        %v4384 = vsub.s32 %v4381, %v4383
        %v4385 = vrot.slane %v4378, %v4384
        %4387 = vst.msk [vmem:[%s329] sm:$0x3] %vm4303, %v4385
        %s4388 = sand.u32 %s126, 1
        %s4389 = scalar_lea.sflag [#allocation4], %s4388
        %s4390 = sand.u32 %s126, 1
        %s4391 = smul.addr %s4390, 208
        %s4392 = scalar_lea.vmem [#allocation10], %s4391
        %s4393 = sand.u32 %s29, 1
        %s4394 = scalar_lea.sflag [#allocation12], %s4393
        %s4395 = sand.u32 %s152, 1
        %s4396 = smul.addr %s4395, 2
        %s4397 = scalar_lea.vmem [#allocation11], %s4396
        %s4398 = sand.u32 %s29, 1
        %s4399 = scalar_lea.sflag [#allocation12], %s4398
        %s4400 = sand.u32 %s178, 1
        %s4401 = smul.addr %s4400, 2
        %s4402 = scalar_lea.vmem [#allocation13], %s4401
        // Predicated region
        $region53: #{block_of_dmt3.2} parent=35 // pred_check
          %p4403 = pneg %p136
        $region54: #{block_of_dmt3.2} parent=35 // pred_check_branch
          %4405 = sbr.rel (%p4403) target = $region56
        $region55: #{block_of_dmt3.2} parent=35 // pred_region
          %s4407 = ssub.s32 3328, 3328
          %4408 = vsyncadd %s4389, %s4407
          %s4409 = smul.addr %s29, 26
          %s4410 = smul.addr %s4409, 128
          %s4411 = scalar_lea.hbm %s4, %s4410
          %s4412 = sshll.u32 %s4392, 4
          %s4413 = int_to_ptr.vmem [resolvable:$true] %s4412
          %4418 = dma.vmem_to_hbm [thread:$0]  %s4413, 3328, %s4411, %s4389, 256, 256, 16
        $region56: #{block_of_dmt3.2} parent=35 // pred_fallthru
          _
        // Predicated region
        $region57: #{block_of_dmt3.2} parent=35 // pred_check
          %p4419 = pneg %p162
        $region58: #{block_of_dmt3.2} parent=35 // pred_check_branch
          %4421 = sbr.rel (%p4419) target = $region60
        $region59: #{block_of_dmt3.2} parent=35 // pred_region
          %s4423 = ssub.s32 32, 32
          %4424 = vsyncadd %s4394, %s4423
          %s4425 = smul.addr %s29, 2
          %s4426 = smul.addr %s4425, 16
          %s4427 = scalar_lea.hbm %s5, %s4426
          %s4429 = sshll.u32 %s4397, 4
          %s4430 = int_to_ptr.vmem [resolvable:$true] %s4429
          %4432 = dma.vmem_to_hbm [thread:$0]  %s4430, 32, %s4427, %s4394
        $region60: #{block_of_dmt3.2} parent=35 // pred_fallthru
          _
        // Predicated region
        $region61: #{block_of_dmt3.2} parent=35 // pred_check
          %p4433 = pneg %p188
        $region62: #{block_of_dmt3.2} parent=35 // pred_check_branch
          %4435 = sbr.rel (%p4433) target = $region64
        $region63: #{block_of_dmt3.2} parent=35 // pred_region
          %s4437 = ssub.s32 32, 32
          %4438 = vsyncadd %s4399, %s4437
          %s4439 = smul.addr %s29, 2
          %s4440 = smul.addr %s4439, 16
          %s4441 = scalar_lea.hbm %s6, %s4440
          %s4443 = sshll.u32 %s4402, 4
          %s4444 = int_to_ptr.vmem [resolvable:$true] %s4443
          %4446 = dma.vmem_to_hbm [thread:$0]  %s4444, 32, %s4441, %s4399
        $region64: #{block_of_dmt3.2} parent=35 // pred_fallthru
          _
      $region36: #{block_of_dmt3.2} parent=5 // pred_fallthru
        _
      %p4447 = scmp.le.s32.totalorder 2, %s24
      // Predicated region
      $region65: #{block_of_dmt3.2} parent=5 // pred_check
        %p4448 = pneg %p4447
      $region66: #{block_of_dmt3.2} parent=5 // pred_check_branch
        %4450 = sbr.rel (%p4448) target = $region68
      $region67: #{block_of_dmt3.2} parent=5 // pred_region
        %s4451 = ssub.s32 %s24, 2
        // Predicated region
        $region69: #{block_of_dmt3.2} parent=67 // pred_check
          %p4452 = pneg %p142
        $region70: #{block_of_dmt3.2} parent=67 // pred_check_branch
          %4454 = sbr.rel (%p4452) target = $region72
        $region71: #{block_of_dmt3.2} parent=67 // pred_region
          %s4455 = sand.u32 %s127, 1
          %s4456 = scalar_lea.sflag [#allocation4], %s4455
          %s4457 = sand.u32 %s127, 1
          %s4458 = smul.addr %s4457, 208
          %s4459 = scalar_lea.vmem [#allocation10], %s4458
          %4460 = dma.done %s4456, 3328
        $region72: #{block_of_dmt3.2} parent=67 // pred_fallthru
          _
        // Predicated region
        $region73: #{block_of_dmt3.2} parent=67 // pred_check
          %p4461 = pneg %p168
        $region74: #{block_of_dmt3.2} parent=67 // pred_check_branch
          %4463 = sbr.rel (%p4461) target = $region76
        $region75: #{block_of_dmt3.2} parent=67 // pred_region
          %s4464 = sand.u32 %s30, 1
          %s4465 = scalar_lea.sflag [#allocation12], %s4464
          %s4466 = sand.u32 %s153, 1
          %s4467 = smul.addr %s4466, 2
          %s4468 = scalar_lea.vmem [#allocation11], %s4467
          %4469 = dma.done %s4465, 32
        $region76: #{block_of_dmt3.2} parent=67 // pred_fallthru
          _
        // Predicated region
        $region77: #{block_of_dmt3.2} parent=67 // pred_check
          %p4470 = pneg %p194
        $region78: #{block_of_dmt3.2} parent=67 // pred_check_branch
          %4472 = sbr.rel (%p4470) target = $region80
        $region79: #{block_of_dmt3.2} parent=67 // pred_region
          %s4473 = sand.u32 %s30, 1
          %s4474 = scalar_lea.sflag [#allocation12], %s4473
          %s4475 = sand.u32 %s179, 1
          %s4476 = smul.addr %s4475, 2
          %s4477 = scalar_lea.vmem [#allocation13], %s4476
          %4478 = dma.done %s4474, 32
        $region80: #{block_of_dmt3.2} parent=67 // pred_fallthru
          _
      $region68: #{block_of_dmt3.2} parent=5 // pred_fallthru
        _
    $region6: #{block_of_dmt3.2} parent=1 // loop_footer
      %s28 = sadd.s32 1, %s24
    $region7: #{block_of_dmt3.2} parent=1 // loop_footer_branch
      %23 = sbr.rel target = $region3
    $region8: #{block_of_dmt3.2} parent=1 // loop_exit
      _
    %4479 = vsyncpa [#allocation3], 1
    %s4480 = scalar_lea.sflag [#allocation3], 1
    %4481 = vsyncpa %s4480, 1
    %4482 = vsyncpa [#allocation6], 1
    %4483 = vsyncpa [#allocation9], 1
    %4484 = vsyncpa [#allocation4], 1
    %s4485 = scalar_lea.sflag [#allocation4], 1
    %4486 = vsyncpa %s4485, 1
    %4487 = vsyncpa [#allocation12], 1
    %s4488 = scalar_lea.sflag [#allocation12], 1
    %4489 = vsyncpa %s4488, 1

</llo_original>
